<compile_context>
chip_gen: v5e
topology: v5e:2x2
jax: 0.10.0
libtpu: 0.0.40
codegen_flags: <defaults>
</compile_context>

<pallas_src>
import functools
import math

import jax
import jax.numpy as jnp
from jax import lax
from jax.experimental import pallas as pl
from jax.experimental.pallas import tpu as pltpu

LN_EPS = 1e-5  # PyTorch nn.LayerNorm / GPT2 layer_norm_epsilon default


def _round_up(x, m):
    return (x + m - 1) // m * m


def _mish(y):
    # mish(y) = y * tanh(softplus(y)).  tanh(softplus(y)) = (1 - s^2) / (1 + s^2)
    # with s = sigmoid(-y): one EUP transcendental, stable for all y.
    s = jax.nn.sigmoid(-y)
    s2 = s * s
    return y * (1.0 - s2) / (1.0 + s2)


def _ln(x, g, b):
    mean = jnp.mean(x, axis=-1, keepdims=True)
    c = x - mean
    var = jnp.mean(c * c, axis=-1, keepdims=True)
    inv = lax.rsqrt(var + LN_EPS)
    return c * (inv * g) + b


def sinusoidal_pos_emb(t, dim):
    half = dim // 2
    freq = math.log(10000.0) / (half - 1)
    freqs = jnp.exp(-freq * jnp.arange(half, dtype=jnp.float32))
    args = t.astype(jnp.float32)[:, None] * freqs[None, :]
    return jnp.concatenate([jnp.sin(args), jnp.cos(args)], axis=-1)


# --------------------------------------------------------------------------------------
# Fused GPT2 transformer kernel: one grid step per batch row, everything in VMEM.
# --------------------------------------------------------------------------------------
def _gpt2_stack_kernel(
    x_ref,                       # (1, S, H)   stacked inputs (pre embed_ln)
    wpe_ref,                     # (S, H)
    eln_g_ref, eln_b_ref,        # (1, H)
    ln1_g_ref, ln1_b_ref,        # (L, 1, H)
    attn_w_ref, attn_b_ref,      # (L, H, 3H), (L, 1, 3H)
    proj_w_ref, proj_b_ref,      # (L, H, H),  (L, 1, H)
    ln2_g_ref, ln2_b_ref,        # (L, 1, H)
    fc_w_ref, fc_b_ref,          # (L, H, NI), (L, 1, NI)
    mproj_w_ref, mproj_b_ref,    # (L, NI, H), (L, 1, H)
    lnf_g_ref, lnf_b_ref,        # (1, H)
    pred_w_ref, pred_b_ref,      # (H, TP),    (1, TP)  (TP = transition_dim padded to 128)
    out_ref,                     # (1, horizon, TP)
    *, n_layer, n_head, horizon,
):
    f32 = jnp.float32
    h = x_ref[0].astype(f32)                                     # (S, H)
    S, H = h.shape
    Dh = H // n_head
    scale = 1.0 / math.sqrt(Dh)

    # embed_ln then learned absolute position embedding (GPT2 wpe); dropout = identity.
    h = _ln(h, eln_g_ref[...].astype(f32), eln_b_ref[...].astype(f32))
    h = h + wpe_ref[...].astype(f32)

    # Causal mask (attention_mask == all ones path), built once.
    row = lax.broadcasted_iota(jnp.int32, (S, S), 0)
    col = lax.broadcasted_iota(jnp.int32, (S, S), 1)
    causal = col <= row

    for l in range(n_layer):                                     # static unroll (n_layer=4)
        # ---------------- attention sub-block ----------------
        a_in = _ln(h, ln1_g_ref[l].astype(f32), ln1_b_ref[l].astype(f32))
        qkv = jnp.dot(a_in, attn_w_ref[l].astype(f32),
                      preferred_element_type=f32) + attn_b_ref[l].astype(f32)  # (S, 3H)
        proj_w = proj_w_ref[l].astype(f32)                       # (H, H)

        attn_proj = jnp.zeros((S, H), f32)
        for hd in range(n_head):                                 # static unroll (n_head=2)
            q = qkv[:, hd * Dh:(hd + 1) * Dh]
            k = qkv[:, H + hd * Dh:H + (hd + 1) * Dh]
            v = qkv[:, 2 * H + hd * Dh:2 * H + (hd + 1) * Dh]
            s = jnp.dot(q, k.T, preferred_element_type=f32) * scale            # (S, S)
            s = jnp.where(causal, s, -1e30)
            m = jnp.max(s, axis=-1, keepdims=True)
            p = jnp.exp(s - m)
            denom = jnp.sum(p, axis=-1, keepdims=True)
            o = jnp.dot(p, v, preferred_element_type=f32)
            o = o * pl.reciprocal(denom, approx=True)            # EUP reciprocal, not VPU div
            # Merge heads by summing per-head slices of the output projection —
            # avoids a lane-axis concat entirely.
            attn_proj = attn_proj + jnp.dot(
                o, proj_w[hd * Dh:(hd + 1) * Dh, :], preferred_element_type=f32)
        h = h + attn_proj + proj_b_ref[l].astype(f32)            # fused residual add

        # ---------------- MLP sub-block (activation 'mish') ----------------
        m_in = _ln(h, ln2_g_ref[l].astype(f32), ln2_b_ref[l].astype(f32))
        mm = jnp.dot(m_in, fc_w_ref[l].astype(f32),
                     preferred_element_type=f32) + fc_b_ref[l].astype(f32)
        mm = _mish(mm)
        h = h + jnp.dot(mm, mproj_w_ref[l].astype(f32),
                        preferred_element_type=f32) + mproj_b_ref[l].astype(f32)

    # final ln_f + predict_transition on the last `horizon` tokens
    h = _ln(h, lnf_g_ref[...].astype(f32), lnf_b_ref[...].astype(f32))
    tail = h[S - horizon:, :]
    pred = jnp.dot(tail, pred_w_ref[...].astype(f32),
                   preferred_element_type=f32) + pred_b_ref[...].astype(f32)
    out_ref[...] = pred[None].astype(out_ref.dtype)              # lane-dense (TP=128k) store


def gpt2_transformer_pallas(stacked, params, *, horizon, n_layer, n_head):
    """stacked: (B, S, H) pre-embed_ln inputs -> (B, horizon, transition_dim)."""
    B, S, H = stacked.shape
    T = params["pred_w"].shape[1]
    TP = _round_up(T, 128)  # pad the only HBM-facing output to a 128-lane-dense last dim
    pred_w = jnp.pad(params["pred_w"], ((0, 0), (0, TP - T)))
    pred_b = jnp.pad(params["pred_b"].reshape(1, T), ((0, 0), (0, TP - T)))

    weight_args = (
        params["wpe"], params["embed_ln_g"], params["embed_ln_b"],
        params["ln1_g"], params["ln1_b"],
        params["attn_w"], params["attn_b"],
        params["proj_w"], params["proj_b"],
        params["ln2_g"], params["ln2_b"],
        params["fc_w"], params["fc_b"],
        params["mproj_w"], params["mproj_b"],
        params["lnf_g"], params["lnf_b"],
        pred_w, pred_b,
    )

    def const_spec(a):
        nd = a.ndim
        return pl.BlockSpec(a.shape, lambda b, _nd=nd: (0,) * _nd)  # resident across grid

    in_specs = [pl.BlockSpec((1, S, H), lambda b: (b, 0, 0))]
    in_specs += [const_spec(a) for a in weight_args]

    out = pl.pallas_call(
        functools.partial(_gpt2_stack_kernel,
                          n_layer=n_layer, n_head=n_head, horizon=horizon),
        out_shape=jax.ShapeDtypeStruct((B, horizon, TP), stacked.dtype),
        grid_spec=pltpu.PrefetchScalarGridSpec(
            num_scalar_prefetch=0,
            grid=(B,),
            in_specs=in_specs,
            out_specs=pl.BlockSpec((1, horizon, TP), lambda b: (b, 0, 0)),
        ),
        compiler_params=pltpu.CompilerParams(
            dimension_semantics=("parallel",)),  # lets v7x shard batch over its 2 TCs
    )(stacked, *weight_args)
    return out[:, :, :T]


# --------------------------------------------------------------------------------------
# GPT2Backbone forward (inference semantics: dropout = identity, attention_mask = None)
# --------------------------------------------------------------------------------------
@functools.partial(jax.jit, static_argnames=("n_layer", "n_head"))
def gpt2_backbone_forward(params, x, time, x_condition, *, n_layer, n_head):
    """x: (B, horizon, transition_dim), time: (B,), x_condition: (B, hist, obs_dim)."""
    B, horizon, _ = x.shape
    HIGH = lax.Precision.HIGHEST

    # Tiny (2-4 row) MLP chains stay in plain XLA — as Pallas kernels they are pure
    # dispatch overhead (per review).
    sin_dim = params["time_w1"].shape[0]
    temb = sinusoidal_pos_emb(time, sin_dim)
    temb = _mish(jnp.dot(temb, params["time_w1"], precision=HIGH) + params["time_b1"])
    temb = jnp.dot(temb, params["time_w2"], precision=HIGH) + params["time_b2"]
    t = temb[:, None, :]                                          # (B, 1, H)

    o = _ln(x_condition, params["obs_ln_g"], params["obs_ln_b"])
    o = _mish(jnp.dot(o, params["obs_w1"], precision=HIGH) + params["obs_b1"])
    o = _mish(jnp.dot(o, params["obs_w2"], precision=HIGH) + params["obs_b2"])
    o = jnp.dot(o, params["obs_w3"], precision=HIGH) + params["obs_b3"]  # (B, hist, H)

    tr = jnp.dot(x, params["trans_w"], precision=HIGH) + params["trans_b"]  # (B, horizon, H)

    stacked = jnp.concatenate([t, o, tr], axis=1)                 # (B, S, H)
    stacked = t * stacked + params["position_emb"]

    # TODO(synk): non-trivial attention_mask (padding) is not implemented; the original
    # forward builds an all-ones mask, which is equivalent to causal-only attention.
    return gpt2_transformer_pallas(stacked, params,
                                   horizon=horizon, n_layer=n_layer, n_head=n_head)


# --------------------------------------------------------------------------------------
# Pure-JAX reference (same params, HIGHEST-precision matmuls) for validation
# --------------------------------------------------------------------------------------
def reference_forward(params, x, time, x_condition, *, n_layer, n_head):
    HIGH = lax.Precision.HIGHEST
    B, horizon, _ = x.shape
    sin_dim = params["time_w1"].shape[0]
    temb = sinusoidal_pos_emb(time, sin_dim)
    temb = _mish(jnp.dot(temb, params["time_w1"], precision=HIGH) + params["time_b1"])
    temb = jnp.dot(temb, params["time_w2"], precision=HIGH) + params["time_b2"]
    t = temb[:, None, :]
    o = _ln(x_condition, params["obs_ln_g"], params["obs_ln_b"])
    o = _mish(jnp.dot(o, params["obs_w1"], precision=HIGH) + params["obs_b1"])
    o = _mish(jnp.dot(o, params["obs_w2"], precision=HIGH) + params["obs_b2"])
    o = jnp.dot(o, params["obs_w3"], precision=HIGH) + params["obs_b3"]
    tr = jnp.dot(x, params["trans_w"], precision=HIGH) + params["trans_b"]
    stacked = jnp.concatenate([t, o, tr], axis=1)
    stacked = t * stacked + params["position_emb"]

    h = _ln(stacked, params["embed_ln_g"], params["embed_ln_b"])
    S = h.shape[1]
    H = h.shape[-1]
    Dh = H // n_head
    h = h + params["wpe"][None]
    mask = jnp.tril(jnp.ones((S, S), dtype=bool))
    for l in range(n_layer):
        a_in = _ln(h, params["ln1_g"][l], params["ln1_b"][l])
        qkv = jnp.dot(a_in, params["attn_w"][l], precision=HIGH) + params["attn_b"][l]
        q, k, v = jnp.split(qkv, 3, axis=-1)
        q = q.reshape(B, S, n_head, Dh).transpose(0, 2, 1, 3)
        k = k.reshape(B, S, n_head, Dh).transpose(0, 2, 1, 3)
        v = v.reshape(B, S, n_head, Dh).transpose(0, 2, 1, 3)
        sc = jnp.einsum("bhqd,bhkd->bhqk", q, k, precision=HIGH) / math.sqrt(Dh)
        sc = jnp.where(mask, sc, -1e30)
        m = jnp.max(sc, axis=-1, keepdims=True)
        p = jnp.exp(sc - m)
        p = p / jnp.sum(p, axis=-1, keepdims=True)
        att = jnp.einsum("bhqk,bhkd->bhqd", p, v, precision=HIGH)
        att = att.transpose(0, 2, 1, 3).reshape(B, S, H)
        h = h + jnp.dot(att, params["proj_w"][l], precision=HIGH) + params["proj_b"][l]
        m_in = _ln(h, params["ln2_g"][l], params["ln2_b"][l])
        mm = _mish(jnp.dot(m_in, params["fc_w"][l], precision=HIGH) + params["fc_b"][l])
        h = h + jnp.dot(mm, params["mproj_w"][l], precision=HIGH) + params["mproj_b"][l]
    h = _ln(h, params["lnf_g"], params["lnf_b"])
    return jnp.dot(h[:, -horizon:, :], params["pred_w"], precision=HIGH) + params["pred_b"]


# --------------------------------------------------------------------------------------
# Parameters (per-layer tensors stacked along a leading n_layer axis for the fused kernel)
# --------------------------------------------------------------------------------------
def init_params(key, *, dim, hidden, n_layer, n_head, n_inner,
                transition_dim, obs_dim, horizon, historical_horizon):
    keys = iter(jax.random.split(key, 64))

    def w(shape, std=0.02):
        return std * jax.random.normal(next(keys), shape, jnp.float32)

    S = 1 + historical_horizon + horizon
    H = hidden
    L = n_layer
    return dict(
        time_w1=w((2 * dim, 4 * dim)), time_b1=w((4 * dim,)),
        time_w2=w((4 * dim, H)), time_b2=w((H,)),
        obs_ln_g=1.0 + w((obs_dim,), 0.1), obs_ln_b=w((obs_dim,)),
        obs_w1=w((obs_dim, 2 * H)), obs_b1=w((2 * H,)),
        obs_w2=w((2 * H, 4 * H)), obs_b2=w((4 * H,)),
        obs_w3=w((4 * H, H)), obs_b3=w((H,)),
        trans_w=w((transition_dim, H)), trans_b=w((H,)),
        position_emb=w((1, S, H)),
        embed_ln_g=1.0 + w((1, H), 0.1), embed_ln_b=w((1, H)),
        wpe=w((S, H)),
        ln1_g=1.0 + w((L, 1, H), 0.1), ln1_b=w((L, 1, H)),
        attn_w=w((L, H, 3 * H)), attn_b=w((L, 1, 3 * H)),
        proj_w=w((L, H, H)), proj_b=w((L, 1, H)),
        ln2_g=1.0 + w((L, 1, H), 0.1), ln2_b=w((L, 1, H)),
        fc_w=w((L, H, n_inner)), fc_b=w((L, 1, n_inner)),
        mproj_w=w((L, n_inner, H)), mproj_b=w((L, 1, H)),
        lnf_g=1.0 + w((1, H), 0.1), lnf_b=w((1, H)),
        pred_w=w((H, transition_dim)), pred_b=w((transition_dim,)),
    )


if __name__ == "__main__":
    key = jax.random.PRNGKey(0)

    # Small shapes consistent with the module's forward.
    B = 2
    horizon = 8
    historical_horizon = 2
    transition_dim = 10
    obs_dim = 11
    dim = 32
    hidden = 64
    n_layer = 4
    n_head = 2
    n_inner = 4 * hidden

    kp, kx, kc, kt = jax.random.split(key, 4)
    params = init_params(
        kp, dim=dim, hidden=hidden, n_layer=n_layer, n_head=n_head, n_inner=n_inner,
        transition_dim=transition_dim, obs_dim=obs_dim,
        horizon=horizon, historical_horizon=historical_horizon)

    x = jax.random.normal(kx, (B, horizon, transition_dim), dtype=jnp.float32)
    x_condition = jax.random.normal(kc, (B, historical_horizon, obs_dim), dtype=jnp.float32)
    time = jax.random.randint(kt, (B,), 0, 1000).astype(jnp.float32)

    out = gpt2_backbone_forward(params, x, time, x_condition,
                                n_layer=n_layer, n_head=n_head)
    out = jax.block_until_ready(out)
    assert out.shape == (B, horizon, transition_dim)

    ref = reference_forward(params, x, time, x_condition,
                            n_layer=n_layer, n_head=n_head)
    err = float(jnp.max(jnp.abs(out - ref)))
    assert err < 1e-2, f"mismatch vs reference: {err}"

    print("KERNEL_OK")
</pallas_src>

<mosaic_0001>
module attributes {stable_mosaic.version = 11 : i64} {
  func.func @_gpt2_stack_kernel(%arg0: i32, %arg1: memref<1x11x64xf32, #tpu.memory_space<vmem>>, %arg2: memref<11x64xf32, #tpu.memory_space<vmem>>, %arg3: memref<1x64xf32, #tpu.memory_space<vmem>>, %arg4: memref<1x64xf32, #tpu.memory_space<vmem>>, %arg5: memref<4x1x64xf32, #tpu.memory_space<vmem>>, %arg6: memref<4x1x64xf32, #tpu.memory_space<vmem>>, %arg7: memref<4x64x192xf32, #tpu.memory_space<vmem>>, %arg8: memref<4x1x192xf32, #tpu.memory_space<vmem>>, %arg9: memref<4x64x64xf32, #tpu.memory_space<vmem>>, %arg10: memref<4x1x64xf32, #tpu.memory_space<vmem>>, %arg11: memref<4x1x64xf32, #tpu.memory_space<vmem>>, %arg12: memref<4x1x64xf32, #tpu.memory_space<vmem>>, %arg13: memref<4x64x256xf32, #tpu.memory_space<vmem>>, %arg14: memref<4x1x256xf32, #tpu.memory_space<vmem>>, %arg15: memref<4x256x64xf32, #tpu.memory_space<vmem>>, %arg16: memref<4x1x64xf32, #tpu.memory_space<vmem>>, %arg17: memref<1x64xf32, #tpu.memory_space<vmem>>, %arg18: memref<1x64xf32, #tpu.memory_space<vmem>>, %arg19: memref<64x128xf32, #tpu.memory_space<vmem>>, %arg20: memref<1x128xf32, #tpu.memory_space<vmem>>, %arg21: memref<1x8x128xf32, #tpu.memory_space<vmem>>) attributes {dimension_semantics = [#tpu.dimension_semantics<parallel>], iteration_bounds = array<i64: 2>, scalar_prefetch = 0 : i64, scratch_operands = 0 : i64, tpu.core_type = #tpu.core_type<tc>, window_params = [{transform_indices = @transform_0, window_bounds = array<i64: 1, 11, 64>}, {pipeline_mode = #tpu.pipeline_mode<synchronous>, transform_indices = @transform_1, window_bounds = array<i64: 11, 64>}, {pipeline_mode = #tpu.pipeline_mode<synchronous>, transform_indices = @transform_2, window_bounds = array<i64: 1, 64>}, {pipeline_mode = #tpu.pipeline_mode<synchronous>, transform_indices = @transform_3, window_bounds = array<i64: 1, 64>}, {pipeline_mode = #tpu.pipeline_mode<synchronous>, transform_indices = @transform_4, window_bounds = array<i64: 4, 1, 64>}, {pipeline_mode = #tpu.pipeline_mode<synchronous>, transform_indices = @transform_5, window_bounds = array<i64: 4, 1, 64>}, {pipeline_mode = #tpu.pipeline_mode<synchronous>, transform_indices = @transform_6, window_bounds = array<i64: 4, 64, 192>}, {pipeline_mode = #tpu.pipeline_mode<synchronous>, transform_indices = @transform_7, window_bounds = array<i64: 4, 1, 192>}, {pipeline_mode = #tpu.pipeline_mode<synchronous>, transform_indices = @transform_8, window_bounds = array<i64: 4, 64, 64>}, {pipeline_mode = #tpu.pipeline_mode<synchronous>, transform_indices = @transform_9, window_bounds = array<i64: 4, 1, 64>}, {pipeline_mode = #tpu.pipeline_mode<synchronous>, transform_indices = @transform_10, window_bounds = array<i64: 4, 1, 64>}, {pipeline_mode = #tpu.pipeline_mode<synchronous>, transform_indices = @transform_11, window_bounds = array<i64: 4, 1, 64>}, {pipeline_mode = #tpu.pipeline_mode<synchronous>, transform_indices = @transform_12, window_bounds = array<i64: 4, 64, 256>}, {pipeline_mode = #tpu.pipeline_mode<synchronous>, transform_indices = @transform_13, window_bounds = array<i64: 4, 1, 256>}, {pipeline_mode = #tpu.pipeline_mode<synchronous>, transform_indices = @transform_14, window_bounds = array<i64: 4, 256, 64>}, {pipeline_mode = #tpu.pipeline_mode<synchronous>, transform_indices = @transform_15, window_bounds = array<i64: 4, 1, 64>}, {pipeline_mode = #tpu.pipeline_mode<synchronous>, transform_indices = @transform_16, window_bounds = array<i64: 1, 64>}, {pipeline_mode = #tpu.pipeline_mode<synchronous>, transform_indices = @transform_17, window_bounds = array<i64: 1, 64>}, {pipeline_mode = #tpu.pipeline_mode<synchronous>, transform_indices = @transform_18, window_bounds = array<i64: 64, 128>}, {pipeline_mode = #tpu.pipeline_mode<synchronous>, transform_indices = @transform_19, window_bounds = array<i64: 1, 128>}, {transform_indices = @transform_20, window_bounds = array<i64: 1, 8, 128>}]} {
    %c0 = arith.constant 0 : index
    %c0_0 = arith.constant 0 : index
    %c0_1 = arith.constant 0 : index
    %0 = vector.load %arg1[%c0, %c0_0, %c0_1] : memref<1x11x64xf32, #tpu.memory_space<vmem>>, vector<1x11x64xf32>
    %1 = vector.shape_cast %0 : vector<1x11x64xf32> to vector<11x64xf32>
    %c0_2 = arith.constant 0 : index
    %c0_3 = arith.constant 0 : index
    %2 = vector.load %arg3[%c0_2, %c0_3] : memref<1x64xf32, #tpu.memory_space<vmem>>, vector<1x64xf32>
    %c0_4 = arith.constant 0 : index
    %c0_5 = arith.constant 0 : index
    %3 = vector.load %arg4[%c0_4, %c0_5] : memref<1x64xf32, #tpu.memory_space<vmem>>, vector<1x64xf32>
    %cst = arith.constant dense<0.000000e+00> : vector<11xf32>
    %4 = vector.multi_reduction <add>, %1, %cst [1] : vector<11x64xf32> to vector<11xf32>
    %5 = vector.shape_cast %4 : vector<11xf32> to vector<11x1xf32>
    %cst_6 = arith.constant 6.400000e+01 : f32
    %6 = vector.broadcast %cst_6 : f32 to vector<11x1xf32>
    %7 = arith.divf %5, %6 : vector<11x1xf32>
    %8 = vector.broadcast %7 : vector<11x1xf32> to vector<11x64xf32>
    %9 = arith.subf %1, %8 : vector<11x64xf32>
    %10 = arith.mulf %9, %9 : vector<11x64xf32>
    %cst_7 = arith.constant dense<0.000000e+00> : vector<11xf32>
    %11 = vector.multi_reduction <add>, %10, %cst_7 [1] : vector<11x64xf32> to vector<11xf32>
    %12 = vector.shape_cast %11 : vector<11xf32> to vector<11x1xf32>
    %cst_8 = arith.constant 6.400000e+01 : f32
    %13 = vector.broadcast %cst_8 : f32 to vector<11x1xf32>
    %14 = arith.divf %12, %13 : vector<11x1xf32>
    %cst_9 = arith.constant 9.99999974E-6 : f32
    %15 = vector.broadcast %cst_9 : f32 to vector<11x1xf32>
    %16 = arith.addf %14, %15 : vector<11x1xf32>
    %17 = math.rsqrt %16 : vector<11x1xf32>
    %18 = vector.broadcast %17 : vector<11x1xf32> to vector<11x64xf32>
    %19 = vector.broadcast %2 : vector<1x64xf32> to vector<11x64xf32>
    %20 = arith.mulf %18, %19 : vector<11x64xf32>
    %21 = arith.mulf %9, %20 : vector<11x64xf32>
    %22 = vector.broadcast %3 : vector<1x64xf32> to vector<11x64xf32>
    %23 = arith.addf %21, %22 : vector<11x64xf32>
    %c0_10 = arith.constant 0 : index
    %c0_11 = arith.constant 0 : index
    %24 = vector.load %arg2[%c0_10, %c0_11] : memref<11x64xf32, #tpu.memory_space<vmem>>, vector<11x64xf32>
    %25 = arith.addf %23, %24 : vector<11x64xf32>
    %26 = tpu.iota {dimensions = array<i32: 0>} : vector<11x11xi32>
    %27 = tpu.iota {dimensions = array<i32: 1>} : vector<11x11xi32>
    %28 = arith.cmpi sle, %27, %26 : vector<11x11xi32>
    %c0_12 = arith.constant 0 : index
    %c0_13 = arith.constant 0 : index
    %c0_14 = arith.constant 0 : index
    %29 = vector.load %arg5[%c0_12, %c0_13, %c0_14] : memref<4x1x64xf32, #tpu.memory_space<vmem>>, vector<1x1x64xf32>
    %30 = vector.shape_cast %29 : vector<1x1x64xf32> to vector<1x64xf32>
    %c0_15 = arith.constant 0 : index
    %c0_16 = arith.constant 0 : index
    %c0_17 = arith.constant 0 : index
    %31 = vector.load %arg6[%c0_15, %c0_16, %c0_17] : memref<4x1x64xf32, #tpu.memory_space<vmem>>, vector<1x1x64xf32>
    %32 = vector.shape_cast %31 : vector<1x1x64xf32> to vector<1x64xf32>
    %cst_18 = arith.constant dense<0.000000e+00> : vector<11xf32>
    %33 = vector.multi_reduction <add>, %25, %cst_18 [1] : vector<11x64xf32> to vector<11xf32>
    %34 = vector.shape_cast %33 : vector<11xf32> to vector<11x1xf32>
    %cst_19 = arith.constant 6.400000e+01 : f32
    %35 = vector.broadcast %cst_19 : f32 to vector<11x1xf32>
    %36 = arith.divf %34, %35 : vector<11x1xf32>
    %37 = vector.broadcast %36 : vector<11x1xf32> to vector<11x64xf32>
    %38 = arith.subf %25, %37 : vector<11x64xf32>
    %39 = arith.mulf %38, %38 : vector<11x64xf32>
    %cst_20 = arith.constant dense<0.000000e+00> : vector<11xf32>
    %40 = vector.multi_reduction <add>, %39, %cst_20 [1] : vector<11x64xf32> to vector<11xf32>
    %41 = vector.shape_cast %40 : vector<11xf32> to vector<11x1xf32>
    %cst_21 = arith.constant 6.400000e+01 : f32
    %42 = vector.broadcast %cst_21 : f32 to vector<11x1xf32>
    %43 = arith.divf %41, %42 : vector<11x1xf32>
    %cst_22 = arith.constant 9.99999974E-6 : f32
    %44 = vector.broadcast %cst_22 : f32 to vector<11x1xf32>
    %45 = arith.addf %43, %44 : vector<11x1xf32>
    %46 = math.rsqrt %45 : vector<11x1xf32>
    %47 = vector.broadcast %46 : vector<11x1xf32> to vector<11x64xf32>
    %48 = vector.broadcast %30 : vector<1x64xf32> to vector<11x64xf32>
    %49 = arith.mulf %47, %48 : vector<11x64xf32>
    %50 = arith.mulf %38, %49 : vector<11x64xf32>
    %51 = vector.broadcast %32 : vector<1x64xf32> to vector<11x64xf32>
    %52 = arith.addf %50, %51 : vector<11x64xf32>
    %c0_23 = arith.constant 0 : index
    %c0_24 = arith.constant 0 : index
    %c0_25 = arith.constant 0 : index
    %53 = vector.load %arg7[%c0_23, %c0_24, %c0_25] : memref<4x64x192xf32, #tpu.memory_space<vmem>>, vector<1x64x192xf32>
    %54 = vector.shape_cast %53 : vector<1x64x192xf32> to vector<64x192xf32>
    %cst_26 = arith.constant dense<0.000000e+00> : vector<11x192xf32>
    %55 = tpu.matmul %52, %54, %cst_26 {dimension_numbers = #tpu.dot_dimension_numbers<[1], [0], [0], [1], [0, 0, 1, 1], [], []>} : vector<11x64xf32>, vector<64x192xf32>, vector<11x192xf32> -> vector<11x192xf32>
    %c0_27 = arith.constant 0 : index
    %c0_28 = arith.constant 0 : index
    %c0_29 = arith.constant 0 : index
    %56 = vector.load %arg8[%c0_27, %c0_28, %c0_29] : memref<4x1x192xf32, #tpu.memory_space<vmem>>, vector<1x1x192xf32>
    %57 = vector.shape_cast %56 : vector<1x1x192xf32> to vector<1x192xf32>
    %58 = vector.broadcast %57 : vector<1x192xf32> to vector<11x192xf32>
    %59 = arith.addf %55, %58 : vector<11x192xf32>
    %c0_30 = arith.constant 0 : index
    %c0_31 = arith.constant 0 : index
    %c0_32 = arith.constant 0 : index
    %60 = vector.load %arg9[%c0_30, %c0_31, %c0_32] : memref<4x64x64xf32, #tpu.memory_space<vmem>>, vector<1x64x64xf32>
    %61 = vector.shape_cast %60 : vector<1x64x64xf32> to vector<64x64xf32>
    %cst_33 = arith.constant 0.000000e+00 : f32
    %62 = vector.broadcast %cst_33 : f32 to vector<11x64xf32>
    %63 = vector.extract_strided_slice %59 {offsets = [0, 0], sizes = [11, 32], strides = [1, 1]} : vector<11x192xf32> to vector<11x32xf32>
    %64 = vector.extract_strided_slice %59 {offsets = [0, 64], sizes = [11, 32], strides = [1, 1]} : vector<11x192xf32> to vector<11x32xf32>
    %65 = vector.extract_strided_slice %59 {offsets = [0, 128], sizes = [11, 32], strides = [1, 1]} : vector<11x192xf32> to vector<11x32xf32>
    %66 = tpu.transpose %64, [1, 0] : vector<11x32xf32> -> vector<32x11xf32>
    %cst_34 = arith.constant dense<0.000000e+00> : vector<11x11xf32>
    %67 = tpu.matmul %63, %66, %cst_34 {dimension_numbers = #tpu.dot_dimension_numbers<[1], [0], [0], [1], [0, 0, 1, 1], [], []>} : vector<11x32xf32>, vector<32x11xf32>, vector<11x11xf32> -> vector<11x11xf32>
    %cst_35 = arith.constant 0.176776692 : f32
    %68 = vector.broadcast %cst_35 : f32 to vector<11x11xf32>
    %69 = arith.mulf %67, %68 : vector<11x11xf32>
    %cst_36 = arith.constant -1.000000e+30 : f32
    %70 = vector.broadcast %cst_36 : f32 to vector<11x11xf32>
    %71 = arith.select %28, %69, %70 : vector<11x11xi1>, vector<11x11xf32>
    %cst_37 = arith.constant dense<0xFF800000> : vector<11xf32>
    %72 = vector.multi_reduction <maximumf>, %71, %cst_37 [1] : vector<11x11xf32> to vector<11xf32>
    %73 = vector.shape_cast %72 : vector<11xf32> to vector<11x1xf32>
    %74 = vector.broadcast %73 : vector<11x1xf32> to vector<11x11xf32>
    %75 = arith.subf %71, %74 : vector<11x11xf32>
    %76 = math.exp %75 : vector<11x11xf32>
    %cst_38 = arith.constant dense<0.000000e+00> : vector<11xf32>
    %77 = vector.multi_reduction <add>, %76, %cst_38 [1] : vector<11x11xf32> to vector<11xf32>
    %78 = vector.shape_cast %77 : vector<11xf32> to vector<11x1xf32>
    %cst_39 = arith.constant dense<0.000000e+00> : vector<11x32xf32>
    %79 = tpu.matmul %76, %65, %cst_39 {dimension_numbers = #tpu.dot_dimension_numbers<[1], [0], [0], [1], [0, 0, 1, 1], [], []>} : vector<11x11xf32>, vector<11x32xf32>, vector<11x32xf32> -> vector<11x32xf32>
    %80 = tpu.reciprocal %78 {approx = true} : vector<11x1xf32> -> vector<11x1xf32>
    %81 = vector.broadcast %80 : vector<11x1xf32> to vector<11x32xf32>
    %82 = arith.mulf %79, %81 : vector<11x32xf32>
    %83 = vector.extract_strided_slice %61 {offsets = [0, 0], sizes = [32, 64], strides = [1, 1]} : vector<64x64xf32> to vector<32x64xf32>
    %cst_40 = arith.constant dense<0.000000e+00> : vector<11x64xf32>
    %84 = tpu.matmul %82, %83, %cst_40 {dimension_numbers = #tpu.dot_dimension_numbers<[1], [0], [0], [1], [0, 0, 1, 1], [], []>} : vector<11x32xf32>, vector<32x64xf32>, vector<11x64xf32> -> vector<11x64xf32>
    %85 = arith.addf %62, %84 : vector<11x64xf32>
    %86 = vector.extract_strided_slice %59 {offsets = [0, 32], sizes = [11, 32], strides = [1, 1]} : vector<11x192xf32> to vector<11x32xf32>
    %87 = vector.extract_strided_slice %59 {offsets = [0, 96], sizes = [11, 32], strides = [1, 1]} : vector<11x192xf32> to vector<11x32xf32>
    %88 = vector.extract_strided_slice %59 {offsets = [0, 160], sizes = [11, 32], strides = [1, 1]} : vector<11x192xf32> to vector<11x32xf32>
    %89 = tpu.transpose %87, [1, 0] : vector<11x32xf32> -> vector<32x11xf32>
    %cst_41 = arith.constant dense<0.000000e+00> : vector<11x11xf32>
    %90 = tpu.matmul %86, %89, %cst_41 {dimension_numbers = #tpu.dot_dimension_numbers<[1], [0], [0], [1], [0, 0, 1, 1], [], []>} : vector<11x32xf32>, vector<32x11xf32>, vector<11x11xf32> -> vector<11x11xf32>
    %cst_42 = arith.constant 0.176776692 : f32
    %91 = vector.broadcast %cst_42 : f32 to vector<11x11xf32>
    %92 = arith.mulf %90, %91 : vector<11x11xf32>
    %cst_43 = arith.constant -1.000000e+30 : f32
    %93 = vector.broadcast %cst_43 : f32 to vector<11x11xf32>
    %94 = arith.select %28, %92, %93 : vector<11x11xi1>, vector<11x11xf32>
    %cst_44 = arith.constant dense<0xFF800000> : vector<11xf32>
    %95 = vector.multi_reduction <maximumf>, %94, %cst_44 [1] : vector<11x11xf32> to vector<11xf32>
    %96 = vector.shape_cast %95 : vector<11xf32> to vector<11x1xf32>
    %97 = vector.broadcast %96 : vector<11x1xf32> to vector<11x11xf32>
    %98 = arith.subf %94, %97 : vector<11x11xf32>
    %99 = math.exp %98 : vector<11x11xf32>
    %cst_45 = arith.constant dense<0.000000e+00> : vector<11xf32>
    %100 = vector.multi_reduction <add>, %99, %cst_45 [1] : vector<11x11xf32> to vector<11xf32>
    %101 = vector.shape_cast %100 : vector<11xf32> to vector<11x1xf32>
    %cst_46 = arith.constant dense<0.000000e+00> : vector<11x32xf32>
    %102 = tpu.matmul %99, %88, %cst_46 {dimension_numbers = #tpu.dot_dimension_numbers<[1], [0], [0], [1], [0, 0, 1, 1], [], []>} : vector<11x11xf32>, vector<11x32xf32>, vector<11x32xf32> -> vector<11x32xf32>
    %103 = tpu.reciprocal %101 {approx = true} : vector<11x1xf32> -> vector<11x1xf32>
    %104 = vector.broadcast %103 : vector<11x1xf32> to vector<11x32xf32>
    %105 = arith.mulf %102, %104 : vector<11x32xf32>
    %106 = vector.extract_strided_slice %61 {offsets = [32, 0], sizes = [32, 64], strides = [1, 1]} : vector<64x64xf32> to vector<32x64xf32>
    %cst_47 = arith.constant dense<0.000000e+00> : vector<11x64xf32>
    %107 = tpu.matmul %105, %106, %cst_47 {dimension_numbers = #tpu.dot_dimension_numbers<[1], [0], [0], [1], [0, 0, 1, 1], [], []>} : vector<11x32xf32>, vector<32x64xf32>, vector<11x64xf32> -> vector<11x64xf32>
    %108 = arith.addf %85, %107 : vector<11x64xf32>
    %109 = arith.addf %25, %108 : vector<11x64xf32>
    %c0_48 = arith.constant 0 : index
    %c0_49 = arith.constant 0 : index
    %c0_50 = arith.constant 0 : index
    %110 = vector.load %arg10[%c0_48, %c0_49, %c0_50] : memref<4x1x64xf32, #tpu.memory_space<vmem>>, vector<1x1x64xf32>
    %111 = vector.shape_cast %110 : vector<1x1x64xf32> to vector<1x64xf32>
    %112 = vector.broadcast %111 : vector<1x64xf32> to vector<11x64xf32>
    %113 = arith.addf %109, %112 : vector<11x64xf32>
    %c0_51 = arith.constant 0 : index
    %c0_52 = arith.constant 0 : index
    %c0_53 = arith.constant 0 : index
    %114 = vector.load %arg11[%c0_51, %c0_52, %c0_53] : memref<4x1x64xf32, #tpu.memory_space<vmem>>, vector<1x1x64xf32>
    %115 = vector.shape_cast %114 : vector<1x1x64xf32> to vector<1x64xf32>
    %c0_54 = arith.constant 0 : index
    %c0_55 = arith.constant 0 : index
    %c0_56 = arith.constant 0 : index
    %116 = vector.load %arg12[%c0_54, %c0_55, %c0_56] : memref<4x1x64xf32, #tpu.memory_space<vmem>>, vector<1x1x64xf32>
    %117 = vector.shape_cast %116 : vector<1x1x64xf32> to vector<1x64xf32>
    %cst_57 = arith.constant dense<0.000000e+00> : vector<11xf32>
    %118 = vector.multi_reduction <add>, %113, %cst_57 [1] : vector<11x64xf32> to vector<11xf32>
    %119 = vector.shape_cast %118 : vector<11xf32> to vector<11x1xf32>
    %cst_58 = arith.constant 6.400000e+01 : f32
    %120 = vector.broadcast %cst_58 : f32 to vector<11x1xf32>
    %121 = arith.divf %119, %120 : vector<11x1xf32>
    %122 = vector.broadcast %121 : vector<11x1xf32> to vector<11x64xf32>
    %123 = arith.subf %113, %122 : vector<11x64xf32>
    %124 = arith.mulf %123, %123 : vector<11x64xf32>
    %cst_59 = arith.constant dense<0.000000e+00> : vector<11xf32>
    %125 = vector.multi_reduction <add>, %124, %cst_59 [1] : vector<11x64xf32> to vector<11xf32>
    %126 = vector.shape_cast %125 : vector<11xf32> to vector<11x1xf32>
    %cst_60 = arith.constant 6.400000e+01 : f32
    %127 = vector.broadcast %cst_60 : f32 to vector<11x1xf32>
    %128 = arith.divf %126, %127 : vector<11x1xf32>
    %cst_61 = arith.constant 9.99999974E-6 : f32
    %129 = vector.broadcast %cst_61 : f32 to vector<11x1xf32>
    %130 = arith.addf %128, %129 : vector<11x1xf32>
    %131 = math.rsqrt %130 : vector<11x1xf32>
    %132 = vector.broadcast %131 : vector<11x1xf32> to vector<11x64xf32>
    %133 = vector.broadcast %115 : vector<1x64xf32> to vector<11x64xf32>
    %134 = arith.mulf %132, %133 : vector<11x64xf32>
    %135 = arith.mulf %123, %134 : vector<11x64xf32>
    %136 = vector.broadcast %117 : vector<1x64xf32> to vector<11x64xf32>
    %137 = arith.addf %135, %136 : vector<11x64xf32>
    %c0_62 = arith.constant 0 : index
    %c0_63 = arith.constant 0 : index
    %c0_64 = arith.constant 0 : index
    %138 = vector.load %arg13[%c0_62, %c0_63, %c0_64] : memref<4x64x256xf32, #tpu.memory_space<vmem>>, vector<1x64x256xf32>
    %139 = vector.shape_cast %138 : vector<1x64x256xf32> to vector<64x256xf32>
    %cst_65 = arith.constant dense<0.000000e+00> : vector<11x256xf32>
    %140 = tpu.matmul %137, %139, %cst_65 {dimension_numbers = #tpu.dot_dimension_numbers<[1], [0], [0], [1], [0, 0, 1, 1], [], []>} : vector<11x64xf32>, vector<64x256xf32>, vector<11x256xf32> -> vector<11x256xf32>
    %c0_66 = arith.constant 0 : index
    %c0_67 = arith.constant 0 : index
    %c0_68 = arith.constant 0 : index
    %141 = vector.load %arg14[%c0_66, %c0_67, %c0_68] : memref<4x1x256xf32, #tpu.memory_space<vmem>>, vector<1x1x256xf32>
    %142 = vector.shape_cast %141 : vector<1x1x256xf32> to vector<1x256xf32>
    %143 = vector.broadcast %142 : vector<1x256xf32> to vector<11x256xf32>
    %144 = arith.addf %140, %143 : vector<11x256xf32>
    %cst_69 = arith.constant 0.000000e+00 : f32
    %145 = vector.broadcast %cst_69 : f32 to vector<11x256xf32>
    %146 = arith.subf %145, %144 : vector<11x256xf32>
    %147 = arith.negf %146 : vector<11x256xf32>
    %148 = math.exp %147 : vector<11x256xf32>
    %cst_70 = arith.constant 1.000000e+00 : f32
    %149 = vector.broadcast %cst_70 : f32 to vector<11x256xf32>
    %150 = arith.addf %149, %148 : vector<11x256xf32>
    %151 = arith.divf %149, %150 : vector<11x256xf32>
    %152 = arith.mulf %151, %151 : vector<11x256xf32>
    %cst_71 = arith.constant 1.000000e+00 : f32
    %153 = vector.broadcast %cst_71 : f32 to vector<11x256xf32>
    %154 = arith.subf %153, %152 : vector<11x256xf32>
    %155 = arith.mulf %144, %154 : vector<11x256xf32>
    %cst_72 = arith.constant 1.000000e+00 : f32
    %156 = vector.broadcast %cst_72 : f32 to vector<11x256xf32>
    %157 = arith.addf %156, %152 : vector<11x256xf32>
    %158 = arith.divf %155, %157 : vector<11x256xf32>
    %c0_73 = arith.constant 0 : index
    %c0_74 = arith.constant 0 : index
    %c0_75 = arith.constant 0 : index
    %159 = vector.load %arg15[%c0_73, %c0_74, %c0_75] : memref<4x256x64xf32, #tpu.memory_space<vmem>>, vector<1x256x64xf32>
    %160 = vector.shape_cast %159 : vector<1x256x64xf32> to vector<256x64xf32>
    %cst_76 = arith.constant dense<0.000000e+00> : vector<11x64xf32>
    %161 = tpu.matmul %158, %160, %cst_76 {dimension_numbers = #tpu.dot_dimension_numbers<[1], [0], [0], [1], [0, 0, 1, 1], [], []>} : vector<11x256xf32>, vector<256x64xf32>, vector<11x64xf32> -> vector<11x64xf32>
    %162 = arith.addf %113, %161 : vector<11x64xf32>
    %c0_77 = arith.constant 0 : index
    %c0_78 = arith.constant 0 : index
    %c0_79 = arith.constant 0 : index
    %163 = vector.load %arg16[%c0_77, %c0_78, %c0_79] : memref<4x1x64xf32, #tpu.memory_space<vmem>>, vector<1x1x64xf32>
    %164 = vector.shape_cast %163 : vector<1x1x64xf32> to vector<1x64xf32>
    %165 = vector.broadcast %164 : vector<1x64xf32> to vector<11x64xf32>
    %166 = arith.addf %162, %165 : vector<11x64xf32>
    %c1 = arith.constant 1 : index
    %c0_80 = arith.constant 0 : index
    %c0_81 = arith.constant 0 : index
    %167 = vector.load %arg5[%c1, %c0_80, %c0_81] : memref<4x1x64xf32, #tpu.memory_space<vmem>>, vector<1x1x64xf32>
    %168 = vector.shape_cast %167 : vector<1x1x64xf32> to vector<1x64xf32>
    %c1_82 = arith.constant 1 : index
    %c0_83 = arith.constant 0 : index
    %c0_84 = arith.constant 0 : index
    %169 = vector.load %arg6[%c1_82, %c0_83, %c0_84] : memref<4x1x64xf32, #tpu.memory_space<vmem>>, vector<1x1x64xf32>
    %170 = vector.shape_cast %169 : vector<1x1x64xf32> to vector<1x64xf32>
    %cst_85 = arith.constant dense<0.000000e+00> : vector<11xf32>
    %171 = vector.multi_reduction <add>, %166, %cst_85 [1] : vector<11x64xf32> to vector<11xf32>
    %172 = vector.shape_cast %171 : vector<11xf32> to vector<11x1xf32>
    %cst_86 = arith.constant 6.400000e+01 : f32
    %173 = vector.broadcast %cst_86 : f32 to vector<11x1xf32>
    %174 = arith.divf %172, %173 : vector<11x1xf32>
    %175 = vector.broadcast %174 : vector<11x1xf32> to vector<11x64xf32>
    %176 = arith.subf %166, %175 : vector<11x64xf32>
    %177 = arith.mulf %176, %176 : vector<11x64xf32>
    %cst_87 = arith.constant dense<0.000000e+00> : vector<11xf32>
    %178 = vector.multi_reduction <add>, %177, %cst_87 [1] : vector<11x64xf32> to vector<11xf32>
    %179 = vector.shape_cast %178 : vector<11xf32> to vector<11x1xf32>
    %cst_88 = arith.constant 6.400000e+01 : f32
    %180 = vector.broadcast %cst_88 : f32 to vector<11x1xf32>
    %181 = arith.divf %179, %180 : vector<11x1xf32>
    %cst_89 = arith.constant 9.99999974E-6 : f32
    %182 = vector.broadcast %cst_89 : f32 to vector<11x1xf32>
    %183 = arith.addf %181, %182 : vector<11x1xf32>
    %184 = math.rsqrt %183 : vector<11x1xf32>
    %185 = vector.broadcast %184 : vector<11x1xf32> to vector<11x64xf32>
    %186 = vector.broadcast %168 : vector<1x64xf32> to vector<11x64xf32>
    %187 = arith.mulf %185, %186 : vector<11x64xf32>
    %188 = arith.mulf %176, %187 : vector<11x64xf32>
    %189 = vector.broadcast %170 : vector<1x64xf32> to vector<11x64xf32>
    %190 = arith.addf %188, %189 : vector<11x64xf32>
    %c1_90 = arith.constant 1 : index
    %c0_91 = arith.constant 0 : index
    %c0_92 = arith.constant 0 : index
    %191 = vector.load %arg7[%c1_90, %c0_91, %c0_92] : memref<4x64x192xf32, #tpu.memory_space<vmem>>, vector<1x64x192xf32>
    %192 = vector.shape_cast %191 : vector<1x64x192xf32> to vector<64x192xf32>
    %cst_93 = arith.constant dense<0.000000e+00> : vector<11x192xf32>
    %193 = tpu.matmul %190, %192, %cst_93 {dimension_numbers = #tpu.dot_dimension_numbers<[1], [0], [0], [1], [0, 0, 1, 1], [], []>} : vector<11x64xf32>, vector<64x192xf32>, vector<11x192xf32> -> vector<11x192xf32>
    %c1_94 = arith.constant 1 : index
    %c0_95 = arith.constant 0 : index
    %c0_96 = arith.constant 0 : index
    %194 = vector.load %arg8[%c1_94, %c0_95, %c0_96] : memref<4x1x192xf32, #tpu.memory_space<vmem>>, vector<1x1x192xf32>
    %195 = vector.shape_cast %194 : vector<1x1x192xf32> to vector<1x192xf32>
    %196 = vector.broadcast %195 : vector<1x192xf32> to vector<11x192xf32>
    %197 = arith.addf %193, %196 : vector<11x192xf32>
    %c1_97 = arith.constant 1 : index
    %c0_98 = arith.constant 0 : index
    %c0_99 = arith.constant 0 : index
    %198 = vector.load %arg9[%c1_97, %c0_98, %c0_99] : memref<4x64x64xf32, #tpu.memory_space<vmem>>, vector<1x64x64xf32>
    %199 = vector.shape_cast %198 : vector<1x64x64xf32> to vector<64x64xf32>
    %cst_100 = arith.constant 0.000000e+00 : f32
    %200 = vector.broadcast %cst_100 : f32 to vector<11x64xf32>
    %201 = vector.extract_strided_slice %197 {offsets = [0, 0], sizes = [11, 32], strides = [1, 1]} : vector<11x192xf32> to vector<11x32xf32>
    %202 = vector.extract_strided_slice %197 {offsets = [0, 64], sizes = [11, 32], strides = [1, 1]} : vector<11x192xf32> to vector<11x32xf32>
    %203 = vector.extract_strided_slice %197 {offsets = [0, 128], sizes = [11, 32], strides = [1, 1]} : vector<11x192xf32> to vector<11x32xf32>
    %204 = tpu.transpose %202, [1, 0] : vector<11x32xf32> -> vector<32x11xf32>
    %cst_101 = arith.constant dense<0.000000e+00> : vector<11x11xf32>
    %205 = tpu.matmul %201, %204, %cst_101 {dimension_numbers = #tpu.dot_dimension_numbers<[1], [0], [0], [1], [0, 0, 1, 1], [], []>} : vector<11x32xf32>, vector<32x11xf32>, vector<11x11xf32> -> vector<11x11xf32>
    %cst_102 = arith.constant 0.176776692 : f32
    %206 = vector.broadcast %cst_102 : f32 to vector<11x11xf32>
    %207 = arith.mulf %205, %206 : vector<11x11xf32>
    %cst_103 = arith.constant -1.000000e+30 : f32
    %208 = vector.broadcast %cst_103 : f32 to vector<11x11xf32>
    %209 = arith.select %28, %207, %208 : vector<11x11xi1>, vector<11x11xf32>
    %cst_104 = arith.constant dense<0xFF800000> : vector<11xf32>
    %210 = vector.multi_reduction <maximumf>, %209, %cst_104 [1] : vector<11x11xf32> to vector<11xf32>
    %211 = vector.shape_cast %210 : vector<11xf32> to vector<11x1xf32>
    %212 = vector.broadcast %211 : vector<11x1xf32> to vector<11x11xf32>
    %213 = arith.subf %209, %212 : vector<11x11xf32>
    %214 = math.exp %213 : vector<11x11xf32>
    %cst_105 = arith.constant dense<0.000000e+00> : vector<11xf32>
    %215 = vector.multi_reduction <add>, %214, %cst_105 [1] : vector<11x11xf32> to vector<11xf32>
    %216 = vector.shape_cast %215 : vector<11xf32> to vector<11x1xf32>
    %cst_106 = arith.constant dense<0.000000e+00> : vector<11x32xf32>
    %217 = tpu.matmul %214, %203, %cst_106 {dimension_numbers = #tpu.dot_dimension_numbers<[1], [0], [0], [1], [0, 0, 1, 1], [], []>} : vector<11x11xf32>, vector<11x32xf32>, vector<11x32xf32> -> vector<11x32xf32>
    %218 = tpu.reciprocal %216 {approx = true} : vector<11x1xf32> -> vector<11x1xf32>
    %219 = vector.broadcast %218 : vector<11x1xf32> to vector<11x32xf32>
    %220 = arith.mulf %217, %219 : vector<11x32xf32>
    %221 = vector.extract_strided_slice %199 {offsets = [0, 0], sizes = [32, 64], strides = [1, 1]} : vector<64x64xf32> to vector<32x64xf32>
    %cst_107 = arith.constant dense<0.000000e+00> : vector<11x64xf32>
    %222 = tpu.matmul %220, %221, %cst_107 {dimension_numbers = #tpu.dot_dimension_numbers<[1], [0], [0], [1], [0, 0, 1, 1], [], []>} : vector<11x32xf32>, vector<32x64xf32>, vector<11x64xf32> -> vector<11x64xf32>
    %223 = arith.addf %200, %222 : vector<11x64xf32>
    %224 = vector.extract_strided_slice %197 {offsets = [0, 32], sizes = [11, 32], strides = [1, 1]} : vector<11x192xf32> to vector<11x32xf32>
    %225 = vector.extract_strided_slice %197 {offsets = [0, 96], sizes = [11, 32], strides = [1, 1]} : vector<11x192xf32> to vector<11x32xf32>
    %226 = vector.extract_strided_slice %197 {offsets = [0, 160], sizes = [11, 32], strides = [1, 1]} : vector<11x192xf32> to vector<11x32xf32>
    %227 = tpu.transpose %225, [1, 0] : vector<11x32xf32> -> vector<32x11xf32>
    %cst_108 = arith.constant dense<0.000000e+00> : vector<11x11xf32>
    %228 = tpu.matmul %224, %227, %cst_108 {dimension_numbers = #tpu.dot_dimension_numbers<[1], [0], [0], [1], [0, 0, 1, 1], [], []>} : vector<11x32xf32>, vector<32x11xf32>, vector<11x11xf32> -> vector<11x11xf32>
    %cst_109 = arith.constant 0.176776692 : f32
    %229 = vector.broadcast %cst_109 : f32 to vector<11x11xf32>
    %230 = arith.mulf %228, %229 : vector<11x11xf32>
    %cst_110 = arith.constant -1.000000e+30 : f32
    %231 = vector.broadcast %cst_110 : f32 to vector<11x11xf32>
    %232 = arith.select %28, %230, %231 : vector<11x11xi1>, vector<11x11xf32>
    %cst_111 = arith.constant dense<0xFF800000> : vector<11xf32>
    %233 = vector.multi_reduction <maximumf>, %232, %cst_111 [1] : vector<11x11xf32> to vector<11xf32>
    %234 = vector.shape_cast %233 : vector<11xf32> to vector<11x1xf32>
    %235 = vector.broadcast %234 : vector<11x1xf32> to vector<11x11xf32>
    %236 = arith.subf %232, %235 : vector<11x11xf32>
    %237 = math.exp %236 : vector<11x11xf32>
    %cst_112 = arith.constant dense<0.000000e+00> : vector<11xf32>
    %238 = vector.multi_reduction <add>, %237, %cst_112 [1] : vector<11x11xf32> to vector<11xf32>
    %239 = vector.shape_cast %238 : vector<11xf32> to vector<11x1xf32>
    %cst_113 = arith.constant dense<0.000000e+00> : vector<11x32xf32>
    %240 = tpu.matmul %237, %226, %cst_113 {dimension_numbers = #tpu.dot_dimension_numbers<[1], [0], [0], [1], [0, 0, 1, 1], [], []>} : vector<11x11xf32>, vector<11x32xf32>, vector<11x32xf32> -> vector<11x32xf32>
    %241 = tpu.reciprocal %239 {approx = true} : vector<11x1xf32> -> vector<11x1xf32>
    %242 = vector.broadcast %241 : vector<11x1xf32> to vector<11x32xf32>
    %243 = arith.mulf %240, %242 : vector<11x32xf32>
    %244 = vector.extract_strided_slice %199 {offsets = [32, 0], sizes = [32, 64], strides = [1, 1]} : vector<64x64xf32> to vector<32x64xf32>
    %cst_114 = arith.constant dense<0.000000e+00> : vector<11x64xf32>
    %245 = tpu.matmul %243, %244, %cst_114 {dimension_numbers = #tpu.dot_dimension_numbers<[1], [0], [0], [1], [0, 0, 1, 1], [], []>} : vector<11x32xf32>, vector<32x64xf32>, vector<11x64xf32> -> vector<11x64xf32>
    %246 = arith.addf %223, %245 : vector<11x64xf32>
    %247 = arith.addf %166, %246 : vector<11x64xf32>
    %c1_115 = arith.constant 1 : index
    %c0_116 = arith.constant 0 : index
    %c0_117 = arith.constant 0 : index
    %248 = vector.load %arg10[%c1_115, %c0_116, %c0_117] : memref<4x1x64xf32, #tpu.memory_space<vmem>>, vector<1x1x64xf32>
    %249 = vector.shape_cast %248 : vector<1x1x64xf32> to vector<1x64xf32>
    %250 = vector.broadcast %249 : vector<1x64xf32> to vector<11x64xf32>
    %251 = arith.addf %247, %250 : vector<11x64xf32>
    %c1_118 = arith.constant 1 : index
    %c0_119 = arith.constant 0 : index
    %c0_120 = arith.constant 0 : index
    %252 = vector.load %arg11[%c1_118, %c0_119, %c0_120] : memref<4x1x64xf32, #tpu.memory_space<vmem>>, vector<1x1x64xf32>
    %253 = vector.shape_cast %252 : vector<1x1x64xf32> to vector<1x64xf32>
    %c1_121 = arith.constant 1 : index
    %c0_122 = arith.constant 0 : index
    %c0_123 = arith.constant 0 : index
    %254 = vector.load %arg12[%c1_121, %c0_122, %c0_123] : memref<4x1x64xf32, #tpu.memory_space<vmem>>, vector<1x1x64xf32>
    %255 = vector.shape_cast %254 : vector<1x1x64xf32> to vector<1x64xf32>
    %cst_124 = arith.constant dense<0.000000e+00> : vector<11xf32>
    %256 = vector.multi_reduction <add>, %251, %cst_124 [1] : vector<11x64xf32> to vector<11xf32>
    %257 = vector.shape_cast %256 : vector<11xf32> to vector<11x1xf32>
    %cst_125 = arith.constant 6.400000e+01 : f32
    %258 = vector.broadcast %cst_125 : f32 to vector<11x1xf32>
    %259 = arith.divf %257, %258 : vector<11x1xf32>
    %260 = vector.broadcast %259 : vector<11x1xf32> to vector<11x64xf32>
    %261 = arith.subf %251, %260 : vector<11x64xf32>
    %262 = arith.mulf %261, %261 : vector<11x64xf32>
    %cst_126 = arith.constant dense<0.000000e+00> : vector<11xf32>
    %263 = vector.multi_reduction <add>, %262, %cst_126 [1] : vector<11x64xf32> to vector<11xf32>
    %264 = vector.shape_cast %263 : vector<11xf32> to vector<11x1xf32>
    %cst_127 = arith.constant 6.400000e+01 : f32
    %265 = vector.broadcast %cst_127 : f32 to vector<11x1xf32>
    %266 = arith.divf %264, %265 : vector<11x1xf32>
    %cst_128 = arith.constant 9.99999974E-6 : f32
    %267 = vector.broadcast %cst_128 : f32 to vector<11x1xf32>
    %268 = arith.addf %266, %267 : vector<11x1xf32>
    %269 = math.rsqrt %268 : vector<11x1xf32>
    %270 = vector.broadcast %269 : vector<11x1xf32> to vector<11x64xf32>
    %271 = vector.broadcast %253 : vector<1x64xf32> to vector<11x64xf32>
    %272 = arith.mulf %270, %271 : vector<11x64xf32>
    %273 = arith.mulf %261, %272 : vector<11x64xf32>
    %274 = vector.broadcast %255 : vector<1x64xf32> to vector<11x64xf32>
    %275 = arith.addf %273, %274 : vector<11x64xf32>
    %c1_129 = arith.constant 1 : index
    %c0_130 = arith.constant 0 : index
    %c0_131 = arith.constant 0 : index
    %276 = vector.load %arg13[%c1_129, %c0_130, %c0_131] : memref<4x64x256xf32, #tpu.memory_space<vmem>>, vector<1x64x256xf32>
    %277 = vector.shape_cast %276 : vector<1x64x256xf32> to vector<64x256xf32>
    %cst_132 = arith.constant dense<0.000000e+00> : vector<11x256xf32>
    %278 = tpu.matmul %275, %277, %cst_132 {dimension_numbers = #tpu.dot_dimension_numbers<[1], [0], [0], [1], [0, 0, 1, 1], [], []>} : vector<11x64xf32>, vector<64x256xf32>, vector<11x256xf32> -> vector<11x256xf32>
    %c1_133 = arith.constant 1 : index
    %c0_134 = arith.constant 0 : index
    %c0_135 = arith.constant 0 : index
    %279 = vector.load %arg14[%c1_133, %c0_134, %c0_135] : memref<4x1x256xf32, #tpu.memory_space<vmem>>, vector<1x1x256xf32>
    %280 = vector.shape_cast %279 : vector<1x1x256xf32> to vector<1x256xf32>
    %281 = vector.broadcast %280 : vector<1x256xf32> to vector<11x256xf32>
    %282 = arith.addf %278, %281 : vector<11x256xf32>
    %cst_136 = arith.constant 0.000000e+00 : f32
    %283 = vector.broadcast %cst_136 : f32 to vector<11x256xf32>
    %284 = arith.subf %283, %282 : vector<11x256xf32>
    %285 = arith.negf %284 : vector<11x256xf32>
    %286 = math.exp %285 : vector<11x256xf32>
    %cst_137 = arith.constant 1.000000e+00 : f32
    %287 = vector.broadcast %cst_137 : f32 to vector<11x256xf32>
    %288 = arith.addf %287, %286 : vector<11x256xf32>
    %289 = arith.divf %287, %288 : vector<11x256xf32>
    %290 = arith.mulf %289, %289 : vector<11x256xf32>
    %cst_138 = arith.constant 1.000000e+00 : f32
    %291 = vector.broadcast %cst_138 : f32 to vector<11x256xf32>
    %292 = arith.subf %291, %290 : vector<11x256xf32>
    %293 = arith.mulf %282, %292 : vector<11x256xf32>
    %cst_139 = arith.constant 1.000000e+00 : f32
    %294 = vector.broadcast %cst_139 : f32 to vector<11x256xf32>
    %295 = arith.addf %294, %290 : vector<11x256xf32>
    %296 = arith.divf %293, %295 : vector<11x256xf32>
    %c1_140 = arith.constant 1 : index
    %c0_141 = arith.constant 0 : index
    %c0_142 = arith.constant 0 : index
    %297 = vector.load %arg15[%c1_140, %c0_141, %c0_142] : memref<4x256x64xf32, #tpu.memory_space<vmem>>, vector<1x256x64xf32>
    %298 = vector.shape_cast %297 : vector<1x256x64xf32> to vector<256x64xf32>
    %cst_143 = arith.constant dense<0.000000e+00> : vector<11x64xf32>
    %299 = tpu.matmul %296, %298, %cst_143 {dimension_numbers = #tpu.dot_dimension_numbers<[1], [0], [0], [1], [0, 0, 1, 1], [], []>} : vector<11x256xf32>, vector<256x64xf32>, vector<11x64xf32> -> vector<11x64xf32>
    %300 = arith.addf %251, %299 : vector<11x64xf32>
    %c1_144 = arith.constant 1 : index
    %c0_145 = arith.constant 0 : index
    %c0_146 = arith.constant 0 : index
    %301 = vector.load %arg16[%c1_144, %c0_145, %c0_146] : memref<4x1x64xf32, #tpu.memory_space<vmem>>, vector<1x1x64xf32>
    %302 = vector.shape_cast %301 : vector<1x1x64xf32> to vector<1x64xf32>
    %303 = vector.broadcast %302 : vector<1x64xf32> to vector<11x64xf32>
    %304 = arith.addf %300, %303 : vector<11x64xf32>
    %c2 = arith.constant 2 : index
    %c0_147 = arith.constant 0 : index
    %c0_148 = arith.constant 0 : index
    %305 = vector.load %arg5[%c2, %c0_147, %c0_148] : memref<4x1x64xf32, #tpu.memory_space<vmem>>, vector<1x1x64xf32>
    %306 = vector.shape_cast %305 : vector<1x1x64xf32> to vector<1x64xf32>
    %c2_149 = arith.constant 2 : index
    %c0_150 = arith.constant 0 : index
    %c0_151 = arith.constant 0 : index
    %307 = vector.load %arg6[%c2_149, %c0_150, %c0_151] : memref<4x1x64xf32, #tpu.memory_space<vmem>>, vector<1x1x64xf32>
    %308 = vector.shape_cast %307 : vector<1x1x64xf32> to vector<1x64xf32>
    %cst_152 = arith.constant dense<0.000000e+00> : vector<11xf32>
    %309 = vector.multi_reduction <add>, %304, %cst_152 [1] : vector<11x64xf32> to vector<11xf32>
    %310 = vector.shape_cast %309 : vector<11xf32> to vector<11x1xf32>
    %cst_153 = arith.constant 6.400000e+01 : f32
    %311 = vector.broadcast %cst_153 : f32 to vector<11x1xf32>
    %312 = arith.divf %310, %311 : vector<11x1xf32>
    %313 = vector.broadcast %312 : vector<11x1xf32> to vector<11x64xf32>
    %314 = arith.subf %304, %313 : vector<11x64xf32>
    %315 = arith.mulf %314, %314 : vector<11x64xf32>
    %cst_154 = arith.constant dense<0.000000e+00> : vector<11xf32>
    %316 = vector.multi_reduction <add>, %315, %cst_154 [1] : vector<11x64xf32> to vector<11xf32>
    %317 = vector.shape_cast %316 : vector<11xf32> to vector<11x1xf32>
    %cst_155 = arith.constant 6.400000e+01 : f32
    %318 = vector.broadcast %cst_155 : f32 to vector<11x1xf32>
    %319 = arith.divf %317, %318 : vector<11x1xf32>
    %cst_156 = arith.constant 9.99999974E-6 : f32
    %320 = vector.broadcast %cst_156 : f32 to vector<11x1xf32>
    %321 = arith.addf %319, %320 : vector<11x1xf32>
    %322 = math.rsqrt %321 : vector<11x1xf32>
    %323 = vector.broadcast %322 : vector<11x1xf32> to vector<11x64xf32>
    %324 = vector.broadcast %306 : vector<1x64xf32> to vector<11x64xf32>
    %325 = arith.mulf %323, %324 : vector<11x64xf32>
    %326 = arith.mulf %314, %325 : vector<11x64xf32>
    %327 = vector.broadcast %308 : vector<1x64xf32> to vector<11x64xf32>
    %328 = arith.addf %326, %327 : vector<11x64xf32>
    %c2_157 = arith.constant 2 : index
    %c0_158 = arith.constant 0 : index
    %c0_159 = arith.constant 0 : index
    %329 = vector.load %arg7[%c2_157, %c0_158, %c0_159] : memref<4x64x192xf32, #tpu.memory_space<vmem>>, vector<1x64x192xf32>
    %330 = vector.shape_cast %329 : vector<1x64x192xf32> to vector<64x192xf32>
    %cst_160 = arith.constant dense<0.000000e+00> : vector<11x192xf32>
    %331 = tpu.matmul %328, %330, %cst_160 {dimension_numbers = #tpu.dot_dimension_numbers<[1], [0], [0], [1], [0, 0, 1, 1], [], []>} : vector<11x64xf32>, vector<64x192xf32>, vector<11x192xf32> -> vector<11x192xf32>
    %c2_161 = arith.constant 2 : index
    %c0_162 = arith.constant 0 : index
    %c0_163 = arith.constant 0 : index
    %332 = vector.load %arg8[%c2_161, %c0_162, %c0_163] : memref<4x1x192xf32, #tpu.memory_space<vmem>>, vector<1x1x192xf32>
    %333 = vector.shape_cast %332 : vector<1x1x192xf32> to vector<1x192xf32>
    %334 = vector.broadcast %333 : vector<1x192xf32> to vector<11x192xf32>
    %335 = arith.addf %331, %334 : vector<11x192xf32>
    %c2_164 = arith.constant 2 : index
    %c0_165 = arith.constant 0 : index
    %c0_166 = arith.constant 0 : index
    %336 = vector.load %arg9[%c2_164, %c0_165, %c0_166] : memref<4x64x64xf32, #tpu.memory_space<vmem>>, vector<1x64x64xf32>
    %337 = vector.shape_cast %336 : vector<1x64x64xf32> to vector<64x64xf32>
    %cst_167 = arith.constant 0.000000e+00 : f32
    %338 = vector.broadcast %cst_167 : f32 to vector<11x64xf32>
    %339 = vector.extract_strided_slice %335 {offsets = [0, 0], sizes = [11, 32], strides = [1, 1]} : vector<11x192xf32> to vector<11x32xf32>
    %340 = vector.extract_strided_slice %335 {offsets = [0, 64], sizes = [11, 32], strides = [1, 1]} : vector<11x192xf32> to vector<11x32xf32>
    %341 = vector.extract_strided_slice %335 {offsets = [0, 128], sizes = [11, 32], strides = [1, 1]} : vector<11x192xf32> to vector<11x32xf32>
    %342 = tpu.transpose %340, [1, 0] : vector<11x32xf32> -> vector<32x11xf32>
    %cst_168 = arith.constant dense<0.000000e+00> : vector<11x11xf32>
    %343 = tpu.matmul %339, %342, %cst_168 {dimension_numbers = #tpu.dot_dimension_numbers<[1], [0], [0], [1], [0, 0, 1, 1], [], []>} : vector<11x32xf32>, vector<32x11xf32>, vector<11x11xf32> -> vector<11x11xf32>
    %cst_169 = arith.constant 0.176776692 : f32
    %344 = vector.broadcast %cst_169 : f32 to vector<11x11xf32>
    %345 = arith.mulf %343, %344 : vector<11x11xf32>
    %cst_170 = arith.constant -1.000000e+30 : f32
    %346 = vector.broadcast %cst_170 : f32 to vector<11x11xf32>
    %347 = arith.select %28, %345, %346 : vector<11x11xi1>, vector<11x11xf32>
    %cst_171 = arith.constant dense<0xFF800000> : vector<11xf32>
    %348 = vector.multi_reduction <maximumf>, %347, %cst_171 [1] : vector<11x11xf32> to vector<11xf32>
    %349 = vector.shape_cast %348 : vector<11xf32> to vector<11x1xf32>
    %350 = vector.broadcast %349 : vector<11x1xf32> to vector<11x11xf32>
    %351 = arith.subf %347, %350 : vector<11x11xf32>
    %352 = math.exp %351 : vector<11x11xf32>
    %cst_172 = arith.constant dense<0.000000e+00> : vector<11xf32>
    %353 = vector.multi_reduction <add>, %352, %cst_172 [1] : vector<11x11xf32> to vector<11xf32>
    %354 = vector.shape_cast %353 : vector<11xf32> to vector<11x1xf32>
    %cst_173 = arith.constant dense<0.000000e+00> : vector<11x32xf32>
    %355 = tpu.matmul %352, %341, %cst_173 {dimension_numbers = #tpu.dot_dimension_numbers<[1], [0], [0], [1], [0, 0, 1, 1], [], []>} : vector<11x11xf32>, vector<11x32xf32>, vector<11x32xf32> -> vector<11x32xf32>
    %356 = tpu.reciprocal %354 {approx = true} : vector<11x1xf32> -> vector<11x1xf32>
    %357 = vector.broadcast %356 : vector<11x1xf32> to vector<11x32xf32>
    %358 = arith.mulf %355, %357 : vector<11x32xf32>
    %359 = vector.extract_strided_slice %337 {offsets = [0, 0], sizes = [32, 64], strides = [1, 1]} : vector<64x64xf32> to vector<32x64xf32>
    %cst_174 = arith.constant dense<0.000000e+00> : vector<11x64xf32>
    %360 = tpu.matmul %358, %359, %cst_174 {dimension_numbers = #tpu.dot_dimension_numbers<[1], [0], [0], [1], [0, 0, 1, 1], [], []>} : vector<11x32xf32>, vector<32x64xf32>, vector<11x64xf32> -> vector<11x64xf32>
    %361 = arith.addf %338, %360 : vector<11x64xf32>
    %362 = vector.extract_strided_slice %335 {offsets = [0, 32], sizes = [11, 32], strides = [1, 1]} : vector<11x192xf32> to vector<11x32xf32>
    %363 = vector.extract_strided_slice %335 {offsets = [0, 96], sizes = [11, 32], strides = [1, 1]} : vector<11x192xf32> to vector<11x32xf32>
    %364 = vector.extract_strided_slice %335 {offsets = [0, 160], sizes = [11, 32], strides = [1, 1]} : vector<11x192xf32> to vector<11x32xf32>
    %365 = tpu.transpose %363, [1, 0] : vector<11x32xf32> -> vector<32x11xf32>
    %cst_175 = arith.constant dense<0.000000e+00> : vector<11x11xf32>
    %366 = tpu.matmul %362, %365, %cst_175 {dimension_numbers = #tpu.dot_dimension_numbers<[1], [0], [0], [1], [0, 0, 1, 1], [], []>} : vector<11x32xf32>, vector<32x11xf32>, vector<11x11xf32> -> vector<11x11xf32>
    %cst_176 = arith.constant 0.176776692 : f32
    %367 = vector.broadcast %cst_176 : f32 to vector<11x11xf32>
    %368 = arith.mulf %366, %367 : vector<11x11xf32>
    %cst_177 = arith.constant -1.000000e+30 : f32
    %369 = vector.broadcast %cst_177 : f32 to vector<11x11xf32>
    %370 = arith.select %28, %368, %369 : vector<11x11xi1>, vector<11x11xf32>
    %cst_178 = arith.constant dense<0xFF800000> : vector<11xf32>
    %371 = vector.multi_reduction <maximumf>, %370, %cst_178 [1] : vector<11x11xf32> to vector<11xf32>
    %372 = vector.shape_cast %371 : vector<11xf32> to vector<11x1xf32>
    %373 = vector.broadcast %372 : vector<11x1xf32> to vector<11x11xf32>
    %374 = arith.subf %370, %373 : vector<11x11xf32>
    %375 = math.exp %374 : vector<11x11xf32>
    %cst_179 = arith.constant dense<0.000000e+00> : vector<11xf32>
    %376 = vector.multi_reduction <add>, %375, %cst_179 [1] : vector<11x11xf32> to vector<11xf32>
    %377 = vector.shape_cast %376 : vector<11xf32> to vector<11x1xf32>
    %cst_180 = arith.constant dense<0.000000e+00> : vector<11x32xf32>
    %378 = tpu.matmul %375, %364, %cst_180 {dimension_numbers = #tpu.dot_dimension_numbers<[1], [0], [0], [1], [0, 0, 1, 1], [], []>} : vector<11x11xf32>, vector<11x32xf32>, vector<11x32xf32> -> vector<11x32xf32>
    %379 = tpu.reciprocal %377 {approx = true} : vector<11x1xf32> -> vector<11x1xf32>
    %380 = vector.broadcast %379 : vector<11x1xf32> to vector<11x32xf32>
    %381 = arith.mulf %378, %380 : vector<11x32xf32>
    %382 = vector.extract_strided_slice %337 {offsets = [32, 0], sizes = [32, 64], strides = [1, 1]} : vector<64x64xf32> to vector<32x64xf32>
    %cst_181 = arith.constant dense<0.000000e+00> : vector<11x64xf32>
    %383 = tpu.matmul %381, %382, %cst_181 {dimension_numbers = #tpu.dot_dimension_numbers<[1], [0], [0], [1], [0, 0, 1, 1], [], []>} : vector<11x32xf32>, vector<32x64xf32>, vector<11x64xf32> -> vector<11x64xf32>
    %384 = arith.addf %361, %383 : vector<11x64xf32>
    %385 = arith.addf %304, %384 : vector<11x64xf32>
    %c2_182 = arith.constant 2 : index
    %c0_183 = arith.constant 0 : index
    %c0_184 = arith.constant 0 : index
    %386 = vector.load %arg10[%c2_182, %c0_183, %c0_184] : memref<4x1x64xf32, #tpu.memory_space<vmem>>, vector<1x1x64xf32>
    %387 = vector.shape_cast %386 : vector<1x1x64xf32> to vector<1x64xf32>
    %388 = vector.broadcast %387 : vector<1x64xf32> to vector<11x64xf32>
    %389 = arith.addf %385, %388 : vector<11x64xf32>
    %c2_185 = arith.constant 2 : index
    %c0_186 = arith.constant 0 : index
    %c0_187 = arith.constant 0 : index
    %390 = vector.load %arg11[%c2_185, %c0_186, %c0_187] : memref<4x1x64xf32, #tpu.memory_space<vmem>>, vector<1x1x64xf32>
    %391 = vector.shape_cast %390 : vector<1x1x64xf32> to vector<1x64xf32>
    %c2_188 = arith.constant 2 : index
    %c0_189 = arith.constant 0 : index
    %c0_190 = arith.constant 0 : index
    %392 = vector.load %arg12[%c2_188, %c0_189, %c0_190] : memref<4x1x64xf32, #tpu.memory_space<vmem>>, vector<1x1x64xf32>
    %393 = vector.shape_cast %392 : vector<1x1x64xf32> to vector<1x64xf32>
    %cst_191 = arith.constant dense<0.000000e+00> : vector<11xf32>
    %394 = vector.multi_reduction <add>, %389, %cst_191 [1] : vector<11x64xf32> to vector<11xf32>
    %395 = vector.shape_cast %394 : vector<11xf32> to vector<11x1xf32>
    %cst_192 = arith.constant 6.400000e+01 : f32
    %396 = vector.broadcast %cst_192 : f32 to vector<11x1xf32>
    %397 = arith.divf %395, %396 : vector<11x1xf32>
    %398 = vector.broadcast %397 : vector<11x1xf32> to vector<11x64xf32>
    %399 = arith.subf %389, %398 : vector<11x64xf32>
    %400 = arith.mulf %399, %399 : vector<11x64xf32>
    %cst_193 = arith.constant dense<0.000000e+00> : vector<11xf32>
    %401 = vector.multi_reduction <add>, %400, %cst_193 [1] : vector<11x64xf32> to vector<11xf32>
    %402 = vector.shape_cast %401 : vector<11xf32> to vector<11x1xf32>
    %cst_194 = arith.constant 6.400000e+01 : f32
    %403 = vector.broadcast %cst_194 : f32 to vector<11x1xf32>
    %404 = arith.divf %402, %403 : vector<11x1xf32>
    %cst_195 = arith.constant 9.99999974E-6 : f32
    %405 = vector.broadcast %cst_195 : f32 to vector<11x1xf32>
    %406 = arith.addf %404, %405 : vector<11x1xf32>
    %407 = math.rsqrt %406 : vector<11x1xf32>
    %408 = vector.broadcast %407 : vector<11x1xf32> to vector<11x64xf32>
    %409 = vector.broadcast %391 : vector<1x64xf32> to vector<11x64xf32>
    %410 = arith.mulf %408, %409 : vector<11x64xf32>
    %411 = arith.mulf %399, %410 : vector<11x64xf32>
    %412 = vector.broadcast %393 : vector<1x64xf32> to vector<11x64xf32>
    %413 = arith.addf %411, %412 : vector<11x64xf32>
    %c2_196 = arith.constant 2 : index
    %c0_197 = arith.constant 0 : index
    %c0_198 = arith.constant 0 : index
    %414 = vector.load %arg13[%c2_196, %c0_197, %c0_198] : memref<4x64x256xf32, #tpu.memory_space<vmem>>, vector<1x64x256xf32>
    %415 = vector.shape_cast %414 : vector<1x64x256xf32> to vector<64x256xf32>
    %cst_199 = arith.constant dense<0.000000e+00> : vector<11x256xf32>
    %416 = tpu.matmul %413, %415, %cst_199 {dimension_numbers = #tpu.dot_dimension_numbers<[1], [0], [0], [1], [0, 0, 1, 1], [], []>} : vector<11x64xf32>, vector<64x256xf32>, vector<11x256xf32> -> vector<11x256xf32>
    %c2_200 = arith.constant 2 : index
    %c0_201 = arith.constant 0 : index
    %c0_202 = arith.constant 0 : index
    %417 = vector.load %arg14[%c2_200, %c0_201, %c0_202] : memref<4x1x256xf32, #tpu.memory_space<vmem>>, vector<1x1x256xf32>
    %418 = vector.shape_cast %417 : vector<1x1x256xf32> to vector<1x256xf32>
    %419 = vector.broadcast %418 : vector<1x256xf32> to vector<11x256xf32>
    %420 = arith.addf %416, %419 : vector<11x256xf32>
    %cst_203 = arith.constant 0.000000e+00 : f32
    %421 = vector.broadcast %cst_203 : f32 to vector<11x256xf32>
    %422 = arith.subf %421, %420 : vector<11x256xf32>
    %423 = arith.negf %422 : vector<11x256xf32>
    %424 = math.exp %423 : vector<11x256xf32>
    %cst_204 = arith.constant 1.000000e+00 : f32
    %425 = vector.broadcast %cst_204 : f32 to vector<11x256xf32>
    %426 = arith.addf %425, %424 : vector<11x256xf32>
    %427 = arith.divf %425, %426 : vector<11x256xf32>
    %428 = arith.mulf %427, %427 : vector<11x256xf32>
    %cst_205 = arith.constant 1.000000e+00 : f32
    %429 = vector.broadcast %cst_205 : f32 to vector<11x256xf32>
    %430 = arith.subf %429, %428 : vector<11x256xf32>
    %431 = arith.mulf %420, %430 : vector<11x256xf32>
    %cst_206 = arith.constant 1.000000e+00 : f32
    %432 = vector.broadcast %cst_206 : f32 to vector<11x256xf32>
    %433 = arith.addf %432, %428 : vector<11x256xf32>
    %434 = arith.divf %431, %433 : vector<11x256xf32>
    %c2_207 = arith.constant 2 : index
    %c0_208 = arith.constant 0 : index
    %c0_209 = arith.constant 0 : index
    %435 = vector.load %arg15[%c2_207, %c0_208, %c0_209] : memref<4x256x64xf32, #tpu.memory_space<vmem>>, vector<1x256x64xf32>
    %436 = vector.shape_cast %435 : vector<1x256x64xf32> to vector<256x64xf32>
    %cst_210 = arith.constant dense<0.000000e+00> : vector<11x64xf32>
    %437 = tpu.matmul %434, %436, %cst_210 {dimension_numbers = #tpu.dot_dimension_numbers<[1], [0], [0], [1], [0, 0, 1, 1], [], []>} : vector<11x256xf32>, vector<256x64xf32>, vector<11x64xf32> -> vector<11x64xf32>
    %438 = arith.addf %389, %437 : vector<11x64xf32>
    %c2_211 = arith.constant 2 : index
    %c0_212 = arith.constant 0 : index
    %c0_213 = arith.constant 0 : index
    %439 = vector.load %arg16[%c2_211, %c0_212, %c0_213] : memref<4x1x64xf32, #tpu.memory_space<vmem>>, vector<1x1x64xf32>
    %440 = vector.shape_cast %439 : vector<1x1x64xf32> to vector<1x64xf32>
    %441 = vector.broadcast %440 : vector<1x64xf32> to vector<11x64xf32>
    %442 = arith.addf %438, %441 : vector<11x64xf32>
    %c3 = arith.constant 3 : index
    %c0_214 = arith.constant 0 : index
    %c0_215 = arith.constant 0 : index
    %443 = vector.load %arg5[%c3, %c0_214, %c0_215] : memref<4x1x64xf32, #tpu.memory_space<vmem>>, vector<1x1x64xf32>
    %444 = vector.shape_cast %443 : vector<1x1x64xf32> to vector<1x64xf32>
    %c3_216 = arith.constant 3 : index
    %c0_217 = arith.constant 0 : index
    %c0_218 = arith.constant 0 : index
    %445 = vector.load %arg6[%c3_216, %c0_217, %c0_218] : memref<4x1x64xf32, #tpu.memory_space<vmem>>, vector<1x1x64xf32>
    %446 = vector.shape_cast %445 : vector<1x1x64xf32> to vector<1x64xf32>
    %cst_219 = arith.constant dense<0.000000e+00> : vector<11xf32>
    %447 = vector.multi_reduction <add>, %442, %cst_219 [1] : vector<11x64xf32> to vector<11xf32>
    %448 = vector.shape_cast %447 : vector<11xf32> to vector<11x1xf32>
    %cst_220 = arith.constant 6.400000e+01 : f32
    %449 = vector.broadcast %cst_220 : f32 to vector<11x1xf32>
    %450 = arith.divf %448, %449 : vector<11x1xf32>
    %451 = vector.broadcast %450 : vector<11x1xf32> to vector<11x64xf32>
    %452 = arith.subf %442, %451 : vector<11x64xf32>
    %453 = arith.mulf %452, %452 : vector<11x64xf32>
    %cst_221 = arith.constant dense<0.000000e+00> : vector<11xf32>
    %454 = vector.multi_reduction <add>, %453, %cst_221 [1] : vector<11x64xf32> to vector<11xf32>
    %455 = vector.shape_cast %454 : vector<11xf32> to vector<11x1xf32>
    %cst_222 = arith.constant 6.400000e+01 : f32
    %456 = vector.broadcast %cst_222 : f32 to vector<11x1xf32>
    %457 = arith.divf %455, %456 : vector<11x1xf32>
    %cst_223 = arith.constant 9.99999974E-6 : f32
    %458 = vector.broadcast %cst_223 : f32 to vector<11x1xf32>
    %459 = arith.addf %457, %458 : vector<11x1xf32>
    %460 = math.rsqrt %459 : vector<11x1xf32>
    %461 = vector.broadcast %460 : vector<11x1xf32> to vector<11x64xf32>
    %462 = vector.broadcast %444 : vector<1x64xf32> to vector<11x64xf32>
    %463 = arith.mulf %461, %462 : vector<11x64xf32>
    %464 = arith.mulf %452, %463 : vector<11x64xf32>
    %465 = vector.broadcast %446 : vector<1x64xf32> to vector<11x64xf32>
    %466 = arith.addf %464, %465 : vector<11x64xf32>
    %c3_224 = arith.constant 3 : index
    %c0_225 = arith.constant 0 : index
    %c0_226 = arith.constant 0 : index
    %467 = vector.load %arg7[%c3_224, %c0_225, %c0_226] : memref<4x64x192xf32, #tpu.memory_space<vmem>>, vector<1x64x192xf32>
    %468 = vector.shape_cast %467 : vector<1x64x192xf32> to vector<64x192xf32>
    %cst_227 = arith.constant dense<0.000000e+00> : vector<11x192xf32>
    %469 = tpu.matmul %466, %468, %cst_227 {dimension_numbers = #tpu.dot_dimension_numbers<[1], [0], [0], [1], [0, 0, 1, 1], [], []>} : vector<11x64xf32>, vector<64x192xf32>, vector<11x192xf32> -> vector<11x192xf32>
    %c3_228 = arith.constant 3 : index
    %c0_229 = arith.constant 0 : index
    %c0_230 = arith.constant 0 : index
    %470 = vector.load %arg8[%c3_228, %c0_229, %c0_230] : memref<4x1x192xf32, #tpu.memory_space<vmem>>, vector<1x1x192xf32>
    %471 = vector.shape_cast %470 : vector<1x1x192xf32> to vector<1x192xf32>
    %472 = vector.broadcast %471 : vector<1x192xf32> to vector<11x192xf32>
    %473 = arith.addf %469, %472 : vector<11x192xf32>
    %c3_231 = arith.constant 3 : index
    %c0_232 = arith.constant 0 : index
    %c0_233 = arith.constant 0 : index
    %474 = vector.load %arg9[%c3_231, %c0_232, %c0_233] : memref<4x64x64xf32, #tpu.memory_space<vmem>>, vector<1x64x64xf32>
    %475 = vector.shape_cast %474 : vector<1x64x64xf32> to vector<64x64xf32>
    %cst_234 = arith.constant 0.000000e+00 : f32
    %476 = vector.broadcast %cst_234 : f32 to vector<11x64xf32>
    %477 = vector.extract_strided_slice %473 {offsets = [0, 0], sizes = [11, 32], strides = [1, 1]} : vector<11x192xf32> to vector<11x32xf32>
    %478 = vector.extract_strided_slice %473 {offsets = [0, 64], sizes = [11, 32], strides = [1, 1]} : vector<11x192xf32> to vector<11x32xf32>
    %479 = vector.extract_strided_slice %473 {offsets = [0, 128], sizes = [11, 32], strides = [1, 1]} : vector<11x192xf32> to vector<11x32xf32>
    %480 = tpu.transpose %478, [1, 0] : vector<11x32xf32> -> vector<32x11xf32>
    %cst_235 = arith.constant dense<0.000000e+00> : vector<11x11xf32>
    %481 = tpu.matmul %477, %480, %cst_235 {dimension_numbers = #tpu.dot_dimension_numbers<[1], [0], [0], [1], [0, 0, 1, 1], [], []>} : vector<11x32xf32>, vector<32x11xf32>, vector<11x11xf32> -> vector<11x11xf32>
    %cst_236 = arith.constant 0.176776692 : f32
    %482 = vector.broadcast %cst_236 : f32 to vector<11x11xf32>
    %483 = arith.mulf %481, %482 : vector<11x11xf32>
    %cst_237 = arith.constant -1.000000e+30 : f32
    %484 = vector.broadcast %cst_237 : f32 to vector<11x11xf32>
    %485 = arith.select %28, %483, %484 : vector<11x11xi1>, vector<11x11xf32>
    %cst_238 = arith.constant dense<0xFF800000> : vector<11xf32>
    %486 = vector.multi_reduction <maximumf>, %485, %cst_238 [1] : vector<11x11xf32> to vector<11xf32>
    %487 = vector.shape_cast %486 : vector<11xf32> to vector<11x1xf32>
    %488 = vector.broadcast %487 : vector<11x1xf32> to vector<11x11xf32>
    %489 = arith.subf %485, %488 : vector<11x11xf32>
    %490 = math.exp %489 : vector<11x11xf32>
    %cst_239 = arith.constant dense<0.000000e+00> : vector<11xf32>
    %491 = vector.multi_reduction <add>, %490, %cst_239 [1] : vector<11x11xf32> to vector<11xf32>
    %492 = vector.shape_cast %491 : vector<11xf32> to vector<11x1xf32>
    %cst_240 = arith.constant dense<0.000000e+00> : vector<11x32xf32>
    %493 = tpu.matmul %490, %479, %cst_240 {dimension_numbers = #tpu.dot_dimension_numbers<[1], [0], [0], [1], [0, 0, 1, 1], [], []>} : vector<11x11xf32>, vector<11x32xf32>, vector<11x32xf32> -> vector<11x32xf32>
    %494 = tpu.reciprocal %492 {approx = true} : vector<11x1xf32> -> vector<11x1xf32>
    %495 = vector.broadcast %494 : vector<11x1xf32> to vector<11x32xf32>
    %496 = arith.mulf %493, %495 : vector<11x32xf32>
    %497 = vector.extract_strided_slice %475 {offsets = [0, 0], sizes = [32, 64], strides = [1, 1]} : vector<64x64xf32> to vector<32x64xf32>
    %cst_241 = arith.constant dense<0.000000e+00> : vector<11x64xf32>
    %498 = tpu.matmul %496, %497, %cst_241 {dimension_numbers = #tpu.dot_dimension_numbers<[1], [0], [0], [1], [0, 0, 1, 1], [], []>} : vector<11x32xf32>, vector<32x64xf32>, vector<11x64xf32> -> vector<11x64xf32>
    %499 = arith.addf %476, %498 : vector<11x64xf32>
    %500 = vector.extract_strided_slice %473 {offsets = [0, 32], sizes = [11, 32], strides = [1, 1]} : vector<11x192xf32> to vector<11x32xf32>
    %501 = vector.extract_strided_slice %473 {offsets = [0, 96], sizes = [11, 32], strides = [1, 1]} : vector<11x192xf32> to vector<11x32xf32>
    %502 = vector.extract_strided_slice %473 {offsets = [0, 160], sizes = [11, 32], strides = [1, 1]} : vector<11x192xf32> to vector<11x32xf32>
    %503 = tpu.transpose %501, [1, 0] : vector<11x32xf32> -> vector<32x11xf32>
    %cst_242 = arith.constant dense<0.000000e+00> : vector<11x11xf32>
    %504 = tpu.matmul %500, %503, %cst_242 {dimension_numbers = #tpu.dot_dimension_numbers<[1], [0], [0], [1], [0, 0, 1, 1], [], []>} : vector<11x32xf32>, vector<32x11xf32>, vector<11x11xf32> -> vector<11x11xf32>
    %cst_243 = arith.constant 0.176776692 : f32
    %505 = vector.broadcast %cst_243 : f32 to vector<11x11xf32>
    %506 = arith.mulf %504, %505 : vector<11x11xf32>
    %cst_244 = arith.constant -1.000000e+30 : f32
    %507 = vector.broadcast %cst_244 : f32 to vector<11x11xf32>
    %508 = arith.select %28, %506, %507 : vector<11x11xi1>, vector<11x11xf32>
    %cst_245 = arith.constant dense<0xFF800000> : vector<11xf32>
    %509 = vector.multi_reduction <maximumf>, %508, %cst_245 [1] : vector<11x11xf32> to vector<11xf32>
    %510 = vector.shape_cast %509 : vector<11xf32> to vector<11x1xf32>
    %511 = vector.broadcast %510 : vector<11x1xf32> to vector<11x11xf32>
    %512 = arith.subf %508, %511 : vector<11x11xf32>
    %513 = math.exp %512 : vector<11x11xf32>
    %cst_246 = arith.constant dense<0.000000e+00> : vector<11xf32>
    %514 = vector.multi_reduction <add>, %513, %cst_246 [1] : vector<11x11xf32> to vector<11xf32>
    %515 = vector.shape_cast %514 : vector<11xf32> to vector<11x1xf32>
    %cst_247 = arith.constant dense<0.000000e+00> : vector<11x32xf32>
    %516 = tpu.matmul %513, %502, %cst_247 {dimension_numbers = #tpu.dot_dimension_numbers<[1], [0], [0], [1], [0, 0, 1, 1], [], []>} : vector<11x11xf32>, vector<11x32xf32>, vector<11x32xf32> -> vector<11x32xf32>
    %517 = tpu.reciprocal %515 {approx = true} : vector<11x1xf32> -> vector<11x1xf32>
    %518 = vector.broadcast %517 : vector<11x1xf32> to vector<11x32xf32>
    %519 = arith.mulf %516, %518 : vector<11x32xf32>
    %520 = vector.extract_strided_slice %475 {offsets = [32, 0], sizes = [32, 64], strides = [1, 1]} : vector<64x64xf32> to vector<32x64xf32>
    %cst_248 = arith.constant dense<0.000000e+00> : vector<11x64xf32>
    %521 = tpu.matmul %519, %520, %cst_248 {dimension_numbers = #tpu.dot_dimension_numbers<[1], [0], [0], [1], [0, 0, 1, 1], [], []>} : vector<11x32xf32>, vector<32x64xf32>, vector<11x64xf32> -> vector<11x64xf32>
    %522 = arith.addf %499, %521 : vector<11x64xf32>
    %523 = arith.addf %442, %522 : vector<11x64xf32>
    %c3_249 = arith.constant 3 : index
    %c0_250 = arith.constant 0 : index
    %c0_251 = arith.constant 0 : index
    %524 = vector.load %arg10[%c3_249, %c0_250, %c0_251] : memref<4x1x64xf32, #tpu.memory_space<vmem>>, vector<1x1x64xf32>
    %525 = vector.shape_cast %524 : vector<1x1x64xf32> to vector<1x64xf32>
    %526 = vector.broadcast %525 : vector<1x64xf32> to vector<11x64xf32>
    %527 = arith.addf %523, %526 : vector<11x64xf32>
    %c3_252 = arith.constant 3 : index
    %c0_253 = arith.constant 0 : index
    %c0_254 = arith.constant 0 : index
    %528 = vector.load %arg11[%c3_252, %c0_253, %c0_254] : memref<4x1x64xf32, #tpu.memory_space<vmem>>, vector<1x1x64xf32>
    %529 = vector.shape_cast %528 : vector<1x1x64xf32> to vector<1x64xf32>
    %c3_255 = arith.constant 3 : index
    %c0_256 = arith.constant 0 : index
    %c0_257 = arith.constant 0 : index
    %530 = vector.load %arg12[%c3_255, %c0_256, %c0_257] : memref<4x1x64xf32, #tpu.memory_space<vmem>>, vector<1x1x64xf32>
    %531 = vector.shape_cast %530 : vector<1x1x64xf32> to vector<1x64xf32>
    %cst_258 = arith.constant dense<0.000000e+00> : vector<11xf32>
    %532 = vector.multi_reduction <add>, %527, %cst_258 [1] : vector<11x64xf32> to vector<11xf32>
    %533 = vector.shape_cast %532 : vector<11xf32> to vector<11x1xf32>
    %cst_259 = arith.constant 6.400000e+01 : f32
    %534 = vector.broadcast %cst_259 : f32 to vector<11x1xf32>
    %535 = arith.divf %533, %534 : vector<11x1xf32>
    %536 = vector.broadcast %535 : vector<11x1xf32> to vector<11x64xf32>
    %537 = arith.subf %527, %536 : vector<11x64xf32>
    %538 = arith.mulf %537, %537 : vector<11x64xf32>
    %cst_260 = arith.constant dense<0.000000e+00> : vector<11xf32>
    %539 = vector.multi_reduction <add>, %538, %cst_260 [1] : vector<11x64xf32> to vector<11xf32>
    %540 = vector.shape_cast %539 : vector<11xf32> to vector<11x1xf32>
    %cst_261 = arith.constant 6.400000e+01 : f32
    %541 = vector.broadcast %cst_261 : f32 to vector<11x1xf32>
    %542 = arith.divf %540, %541 : vector<11x1xf32>
    %cst_262 = arith.constant 9.99999974E-6 : f32
    %543 = vector.broadcast %cst_262 : f32 to vector<11x1xf32>
    %544 = arith.addf %542, %543 : vector<11x1xf32>
    %545 = math.rsqrt %544 : vector<11x1xf32>
    %546 = vector.broadcast %545 : vector<11x1xf32> to vector<11x64xf32>
    %547 = vector.broadcast %529 : vector<1x64xf32> to vector<11x64xf32>
    %548 = arith.mulf %546, %547 : vector<11x64xf32>
    %549 = arith.mulf %537, %548 : vector<11x64xf32>
    %550 = vector.broadcast %531 : vector<1x64xf32> to vector<11x64xf32>
    %551 = arith.addf %549, %550 : vector<11x64xf32>
    %c3_263 = arith.constant 3 : index
    %c0_264 = arith.constant 0 : index
    %c0_265 = arith.constant 0 : index
    %552 = vector.load %arg13[%c3_263, %c0_264, %c0_265] : memref<4x64x256xf32, #tpu.memory_space<vmem>>, vector<1x64x256xf32>
    %553 = vector.shape_cast %552 : vector<1x64x256xf32> to vector<64x256xf32>
    %cst_266 = arith.constant dense<0.000000e+00> : vector<11x256xf32>
    %554 = tpu.matmul %551, %553, %cst_266 {dimension_numbers = #tpu.dot_dimension_numbers<[1], [0], [0], [1], [0, 0, 1, 1], [], []>} : vector<11x64xf32>, vector<64x256xf32>, vector<11x256xf32> -> vector<11x256xf32>
    %c3_267 = arith.constant 3 : index
    %c0_268 = arith.constant 0 : index
    %c0_269 = arith.constant 0 : index
    %555 = vector.load %arg14[%c3_267, %c0_268, %c0_269] : memref<4x1x256xf32, #tpu.memory_space<vmem>>, vector<1x1x256xf32>
    %556 = vector.shape_cast %555 : vector<1x1x256xf32> to vector<1x256xf32>
    %557 = vector.broadcast %556 : vector<1x256xf32> to vector<11x256xf32>
    %558 = arith.addf %554, %557 : vector<11x256xf32>
    %cst_270 = arith.constant 0.000000e+00 : f32
    %559 = vector.broadcast %cst_270 : f32 to vector<11x256xf32>
    %560 = arith.subf %559, %558 : vector<11x256xf32>
    %561 = arith.negf %560 : vector<11x256xf32>
    %562 = math.exp %561 : vector<11x256xf32>
    %cst_271 = arith.constant 1.000000e+00 : f32
    %563 = vector.broadcast %cst_271 : f32 to vector<11x256xf32>
    %564 = arith.addf %563, %562 : vector<11x256xf32>
    %565 = arith.divf %563, %564 : vector<11x256xf32>
    %566 = arith.mulf %565, %565 : vector<11x256xf32>
    %cst_272 = arith.constant 1.000000e+00 : f32
    %567 = vector.broadcast %cst_272 : f32 to vector<11x256xf32>
    %568 = arith.subf %567, %566 : vector<11x256xf32>
    %569 = arith.mulf %558, %568 : vector<11x256xf32>
    %cst_273 = arith.constant 1.000000e+00 : f32
    %570 = vector.broadcast %cst_273 : f32 to vector<11x256xf32>
    %571 = arith.addf %570, %566 : vector<11x256xf32>
    %572 = arith.divf %569, %571 : vector<11x256xf32>
    %c3_274 = arith.constant 3 : index
    %c0_275 = arith.constant 0 : index
    %c0_276 = arith.constant 0 : index
    %573 = vector.load %arg15[%c3_274, %c0_275, %c0_276] : memref<4x256x64xf32, #tpu.memory_space<vmem>>, vector<1x256x64xf32>
    %574 = vector.shape_cast %573 : vector<1x256x64xf32> to vector<256x64xf32>
    %cst_277 = arith.constant dense<0.000000e+00> : vector<11x64xf32>
    %575 = tpu.matmul %572, %574, %cst_277 {dimension_numbers = #tpu.dot_dimension_numbers<[1], [0], [0], [1], [0, 0, 1, 1], [], []>} : vector<11x256xf32>, vector<256x64xf32>, vector<11x64xf32> -> vector<11x64xf32>
    %576 = arith.addf %527, %575 : vector<11x64xf32>
    %c3_278 = arith.constant 3 : index
    %c0_279 = arith.constant 0 : index
    %c0_280 = arith.constant 0 : index
    %577 = vector.load %arg16[%c3_278, %c0_279, %c0_280] : memref<4x1x64xf32, #tpu.memory_space<vmem>>, vector<1x1x64xf32>
    %578 = vector.shape_cast %577 : vector<1x1x64xf32> to vector<1x64xf32>
    %579 = vector.broadcast %578 : vector<1x64xf32> to vector<11x64xf32>
    %580 = arith.addf %576, %579 : vector<11x64xf32>
    %c0_281 = arith.constant 0 : index
    %c0_282 = arith.constant 0 : index
    %581 = vector.load %arg17[%c0_281, %c0_282] : memref<1x64xf32, #tpu.memory_space<vmem>>, vector<1x64xf32>
    %c0_283 = arith.constant 0 : index
    %c0_284 = arith.constant 0 : index
    %582 = vector.load %arg18[%c0_283, %c0_284] : memref<1x64xf32, #tpu.memory_space<vmem>>, vector<1x64xf32>
    %cst_285 = arith.constant dense<0.000000e+00> : vector<11xf32>
    %583 = vector.multi_reduction <add>, %580, %cst_285 [1] : vector<11x64xf32> to vector<11xf32>
    %584 = vector.shape_cast %583 : vector<11xf32> to vector<11x1xf32>
    %cst_286 = arith.constant 6.400000e+01 : f32
    %585 = vector.broadcast %cst_286 : f32 to vector<11x1xf32>
    %586 = arith.divf %584, %585 : vector<11x1xf32>
    %587 = vector.broadcast %586 : vector<11x1xf32> to vector<11x64xf32>
    %588 = arith.subf %580, %587 : vector<11x64xf32>
    %589 = arith.mulf %588, %588 : vector<11x64xf32>
    %cst_287 = arith.constant dense<0.000000e+00> : vector<11xf32>
    %590 = vector.multi_reduction <add>, %589, %cst_287 [1] : vector<11x64xf32> to vector<11xf32>
    %591 = vector.shape_cast %590 : vector<11xf32> to vector<11x1xf32>
    %cst_288 = arith.constant 6.400000e+01 : f32
    %592 = vector.broadcast %cst_288 : f32 to vector<11x1xf32>
    %593 = arith.divf %591, %592 : vector<11x1xf32>
    %cst_289 = arith.constant 9.99999974E-6 : f32
    %594 = vector.broadcast %cst_289 : f32 to vector<11x1xf32>
    %595 = arith.addf %593, %594 : vector<11x1xf32>
    %596 = math.rsqrt %595 : vector<11x1xf32>
    %597 = vector.broadcast %596 : vector<11x1xf32> to vector<11x64xf32>
    %598 = vector.broadcast %581 : vector<1x64xf32> to vector<11x64xf32>
    %599 = arith.mulf %597, %598 : vector<11x64xf32>
    %600 = arith.mulf %588, %599 : vector<11x64xf32>
    %601 = vector.broadcast %582 : vector<1x64xf32> to vector<11x64xf32>
    %602 = arith.addf %600, %601 : vector<11x64xf32>
    %603 = vector.extract_strided_slice %602 {offsets = [3, 0], sizes = [8, 64], strides = [1, 1]} : vector<11x64xf32> to vector<8x64xf32>
    %c0_290 = arith.constant 0 : index
    %c0_291 = arith.constant 0 : index
    %604 = vector.load %arg19[%c0_290, %c0_291] : memref<64x128xf32, #tpu.memory_space<vmem>>, vector<64x128xf32>
    %cst_292 = arith.constant dense<0.000000e+00> : vector<8x128xf32>
    %605 = tpu.matmul %603, %604, %cst_292 {dimension_numbers = #tpu.dot_dimension_numbers<[1], [0], [0], [1], [0, 0, 1, 1], [], []>} : vector<8x64xf32>, vector<64x128xf32>, vector<8x128xf32> -> vector<8x128xf32>
    %c0_293 = arith.constant 0 : index
    %c0_294 = arith.constant 0 : index
    %606 = vector.load %arg20[%c0_293, %c0_294] : memref<1x128xf32, #tpu.memory_space<vmem>>, vector<1x128xf32>
    %607 = vector.broadcast %606 : vector<1x128xf32> to vector<8x128xf32>
    %608 = arith.addf %605, %607 : vector<8x128xf32>
    %609 = vector.shape_cast %608 : vector<8x128xf32> to vector<1x8x128xf32>
    %c0_295 = arith.constant 0 : index
    %c0_296 = arith.constant 0 : index
    %c0_297 = arith.constant 0 : index
    %610 = vector.load %arg21[%c0_295, %c0_296, %c0_297] : memref<1x8x128xf32, #tpu.memory_space<vmem>>, vector<1x8x128xf32>
    tpu.vector_store %arg21[%c0_295, %c0_296, %c0_297], %609 {strides = array<i32>} : memref<1x8x128xf32, #tpu.memory_space<vmem>>, vector<1x8x128xf32>,
    return
  }
  func.func @transform_0(%arg0: i32) -> (i32, i32, i32) {
    %c0_i32 = arith.constant 0 : i32
    %c0_i32_0 = arith.constant 0 : i32
    %c0_i32_1 = arith.constant 0 : i32
    return %arg0, %c0_i32, %c0_i32_0 : i32, i32, i32
  }
  func.func @transform_1(%arg0: i32) -> (i32, i32) {
    %c0_i32 = arith.constant 0 : i32
    %c0_i32_0 = arith.constant 0 : i32
    %c0_i32_1 = arith.constant 0 : i32
    return %c0_i32, %c0_i32_0 : i32, i32
  }
  func.func @transform_2(%arg0: i32) -> (i32, i32) {
    %c0_i32 = arith.constant 0 : i32
    %c0_i32_0 = arith.constant 0 : i32
    %c0_i32_1 = arith.constant 0 : i32
    return %c0_i32, %c0_i32_0 : i32, i32
  }
  func.func @transform_3(%arg0: i32) -> (i32, i32) {
    %c0_i32 = arith.constant 0 : i32
    %c0_i32_0 = arith.constant 0 : i32
    %c0_i32_1 = arith.constant 0 : i32
    return %c0_i32, %c0_i32_0 : i32, i32
  }
  func.func @transform_4(%arg0: i32) -> (i32, i32, i32) {
    %c0_i32 = arith.constant 0 : i32
    %c0_i32_0 = arith.constant 0 : i32
    %c0_i32_1 = arith.constant 0 : i32
    %c0_i32_2 = arith.constant 0 : i32
    return %c0_i32, %c0_i32_0, %c0_i32_1 : i32, i32, i32
  }
  func.func @transform_5(%arg0: i32) -> (i32, i32, i32) {
    %c0_i32 = arith.constant 0 : i32
    %c0_i32_0 = arith.constant 0 : i32
    %c0_i32_1 = arith.constant 0 : i32
    %c0_i32_2 = arith.constant 0 : i32
    return %c0_i32, %c0_i32_0, %c0_i32_1 : i32, i32, i32
  }
  func.func @transform_6(%arg0: i32) -> (i32, i32, i32) {
    %c0_i32 = arith.constant 0 : i32
    %c0_i32_0 = arith.constant 0 : i32
    %c0_i32_1 = arith.constant 0 : i32
    %c0_i32_2 = arith.constant 0 : i32
    return %c0_i32, %c0_i32_0, %c0_i32_1 : i32, i32, i32
  }
  func.func @transform_7(%arg0: i32) -> (i32, i32, i32) {
    %c0_i32 = arith.constant 0 : i32
    %c0_i32_0 = arith.constant 0 : i32
    %c0_i32_1 = arith.constant 0 : i32
    %c0_i32_2 = arith.constant 0 : i32
    return %c0_i32, %c0_i32_0, %c0_i32_1 : i32, i32, i32
  }
  func.func @transform_8(%arg0: i32) -> (i32, i32, i32) {
    %c0_i32 = arith.constant 0 : i32
    %c0_i32_0 = arith.constant 0 : i32
    %c0_i32_1 = arith.constant 0 : i32
    %c0_i32_2 = arith.constant 0 : i32
    return %c0_i32, %c0_i32_0, %c0_i32_1 : i32, i32, i32
  }
  func.func @transform_9(%arg0: i32) -> (i32, i32, i32) {
    %c0_i32 = arith.constant 0 : i32
    %c0_i32_0 = arith.constant 0 : i32
    %c0_i32_1 = arith.constant 0 : i32
    %c0_i32_2 = arith.constant 0 : i32
    return %c0_i32, %c0_i32_0, %c0_i32_1 : i32, i32, i32
  }
  func.func @transform_10(%arg0: i32) -> (i32, i32, i32) {
    %c0_i32 = arith.constant 0 : i32
    %c0_i32_0 = arith.constant 0 : i32
    %c0_i32_1 = arith.constant 0 : i32
    %c0_i32_2 = arith.constant 0 : i32
    return %c0_i32, %c0_i32_0, %c0_i32_1 : i32, i32, i32
  }
  func.func @transform_11(%arg0: i32) -> (i32, i32, i32) {
    %c0_i32 = arith.constant 0 : i32
    %c0_i32_0 = arith.constant 0 : i32
    %c0_i32_1 = arith.constant 0 : i32
    %c0_i32_2 = arith.constant 0 : i32
    return %c0_i32, %c0_i32_0, %c0_i32_1 : i32, i32, i32
  }
  func.func @transform_12(%arg0: i32) -> (i32, i32, i32) {
    %c0_i32 = arith.constant 0 : i32
    %c0_i32_0 = arith.constant 0 : i32
    %c0_i32_1 = arith.constant 0 : i32
    %c0_i32_2 = arith.constant 0 : i32
    return %c0_i32, %c0_i32_0, %c0_i32_1 : i32, i32, i32
  }
  func.func @transform_13(%arg0: i32) -> (i32, i32, i32) {
    %c0_i32 = arith.constant 0 : i32
    %c0_i32_0 = arith.constant 0 : i32
    %c0_i32_1 = arith.constant 0 : i32
    %c0_i32_2 = arith.constant 0 : i32
    return %c0_i32, %c0_i32_0, %c0_i32_1 : i32, i32, i32
  }
  func.func @transform_14(%arg0: i32) -> (i32, i32, i32) {
    %c0_i32 = arith.constant 0 : i32
    %c0_i32_0 = arith.constant 0 : i32
    %c0_i32_1 = arith.constant 0 : i32
    %c0_i32_2 = arith.constant 0 : i32
    return %c0_i32, %c0_i32_0, %c0_i32_1 : i32, i32, i32
  }
  func.func @transform_15(%arg0: i32) -> (i32, i32, i32) {
    %c0_i32 = arith.constant 0 : i32
    %c0_i32_0 = arith.constant 0 : i32
    %c0_i32_1 = arith.constant 0 : i32
    %c0_i32_2 = arith.constant 0 : i32
    return %c0_i32, %c0_i32_0, %c0_i32_1 : i32, i32, i32
  }
  func.func @transform_16(%arg0: i32) -> (i32, i32) {
    %c0_i32 = arith.constant 0 : i32
    %c0_i32_0 = arith.constant 0 : i32
    %c0_i32_1 = arith.constant 0 : i32
    return %c0_i32, %c0_i32_0 : i32, i32
  }
  func.func @transform_17(%arg0: i32) -> (i32, i32) {
    %c0_i32 = arith.constant 0 : i32
    %c0_i32_0 = arith.constant 0 : i32
    %c0_i32_1 = arith.constant 0 : i32
    return %c0_i32, %c0_i32_0 : i32, i32
  }
  func.func @transform_18(%arg0: i32) -> (i32, i32) {
    %c0_i32 = arith.constant 0 : i32
    %c0_i32_0 = arith.constant 0 : i32
    %c0_i32_1 = arith.constant 0 : i32
    return %c0_i32, %c0_i32_0 : i32, i32
  }
  func.func @transform_19(%arg0: i32) -> (i32, i32) {
    %c0_i32 = arith.constant 0 : i32
    %c0_i32_0 = arith.constant 0 : i32
    %c0_i32_1 = arith.constant 0 : i32
    return %c0_i32, %c0_i32_0 : i32, i32
  }
  func.func @transform_20(%arg0: i32) -> (i32, i32, i32) {
    %c0_i32 = arith.constant 0 : i32
    %c0_i32_0 = arith.constant 0 : i32
    %c0_i32_1 = arith.constant 0 : i32
    return %arg0, %c0_i32, %c0_i32_0 : i32, i32, i32
  }
}

</mosaic_0001>

<llo_original>
// kernel: gpt2_backbone_forward.1
$region0: #{gpt2_backbone_forward.1}
  #allocation0 [shape = 'u32[]', space=smem, size = 0x4, offset = 0x4, fixed_abs, tag = 'smem constant byte address 0x4 - core index']
  #allocation1 [shape = 'u32[72,128]{1,0:T(1,128)}', space=vmem, size = 0x9000, scoped, tag = 'internal scratch']
  %s0 = inlined_call_operand.vmem [shape: f32[2,11,64], index: 0, kind: input, shape index: {}]
  %s1 = inlined_call_operand.vmem [shape: f32[11,64], index: 1, kind: input, shape index: {}]
  %s2 = inlined_call_operand.vmem [shape: f32[1,64], index: 2, kind: input, shape index: {}]
  %s3 = inlined_call_operand.vmem [shape: f32[1,64], index: 3, kind: input, shape index: {}]
  %s4 = inlined_call_operand.vmem [shape: f32[4,1,64], index: 4, kind: input, shape index: {}]
  %s5 = inlined_call_operand.vmem [shape: f32[4,1,64], index: 5, kind: input, shape index: {}]
  %s6 = inlined_call_operand.vmem [shape: f32[4,64,192], index: 6, kind: input, shape index: {}]
  %s7 = inlined_call_operand.vmem [shape: f32[4,1,192], index: 7, kind: input, shape index: {}]
  %s8 = inlined_call_operand.vmem [shape: f32[4,64,64], index: 8, kind: input, shape index: {}]
  %s9 = inlined_call_operand.vmem [shape: f32[4,1,64], index: 9, kind: input, shape index: {}]
  %s10 = inlined_call_operand.vmem [shape: f32[4,1,64], index: 10, kind: input, shape index: {}]
  %s11 = inlined_call_operand.vmem [shape: f32[4,1,64], index: 11, kind: input, shape index: {}]
  %s12 = inlined_call_operand.vmem [shape: f32[4,64,256], index: 12, kind: input, shape index: {}]
  %s13 = inlined_call_operand.vmem [shape: f32[4,1,256], index: 13, kind: input, shape index: {}]
  %s14 = inlined_call_operand.vmem [shape: f32[4,256,64], index: 14, kind: input, shape index: {}]
  %s15 = inlined_call_operand.vmem [shape: f32[4,1,64], index: 15, kind: input, shape index: {}]
  %s16 = inlined_call_operand.vmem [shape: f32[1,64], index: 16, kind: input, shape index: {}]
  %s17 = inlined_call_operand.vmem [shape: f32[1,64], index: 17, kind: input, shape index: {}]
  %s18 = inlined_call_operand.vmem [shape: f32[64,128], index: 18, kind: input, shape index: {}]
  %s19 = inlined_call_operand.vmem [shape: f32[1,128], index: 19, kind: input, shape index: {}]
  %s20 = inlined_call_operand.hbm [shape: f32[2,8,128], index: 20, kind: output, shape index: {}]
  %s21 = sld [smem:[#allocation0]]
  $region113: #{gpt2_backbone_forward.1} parent=0
    _
  %s23 = ssub.s32 1, %s21
  %s24 = scalar_select 0, %s23, %s21
  $region1: #{gpt2_backbone_forward.1} parent=0
    #allocation2 [shape = 'u8[8192]{0}', space=vmem, size = 0x2000, scoped, tag = 'output window, operand 0']
    #allocation3 [shape = 's32[2]{0}', space=sflag, size = 0x8, scoped, tag = 'scoped memory for gpt2_backbone_forward.1']
    %25 = vsyncpa [#allocation3], 0
    %s26 = scalar_lea.sflag [#allocation3], 1
    %27 = vsyncpa %s26, 0
    loop: start=0, step=1, limit=4
    $region2: #{gpt2_backbone_forward.1} parent=1 // loop_pre_header
      _
    $region3: #{gpt2_backbone_forward.1} parent=1 // loop_header
      %s29 = sphi 0, %s33
      %p30 = scmp.ge.s32.totalorder %s29, 4
      %s39 = sphi 0, %s41
      %s42 = sphi 0, %s39
      %s43 = sphi 0, %s42
      %s59 = sphi 0, %s43
      %s63 = sphi 0, %s63
      %s65 = sphi 0, %s63
      %s66 = sphi 0, %s65
      %s80 = sphi 0, %s66
      %s84 = sphi 0, %s84
      %s86 = sphi 0, %s84
      %s87 = sphi 0, %s86
      %s101 = sphi 0, %s87
      %s105 = sphi 0, %s105
      %s107 = sphi 0, %s105
      %s108 = sphi 0, %s107
      %s122 = sphi 0, %s108
      %s126 = sphi 0, %s126
      %s128 = sphi 0, %s126
      %s129 = sphi 0, %s128
      %s143 = sphi 0, %s129
      %s147 = sphi 0, %s147
      %s149 = sphi 0, %s147
      %s150 = sphi 0, %s149
      %s164 = sphi 0, %s150
      %s168 = sphi 0, %s168
      %s170 = sphi 0, %s168
      %s171 = sphi 0, %s170
      %s185 = sphi 0, %s171
      %s189 = sphi 0, %s189
      %s191 = sphi 0, %s189
      %s192 = sphi 0, %s191
      %s206 = sphi 0, %s192
      %s210 = sphi 0, %s210
      %s212 = sphi 0, %s210
      %s213 = sphi 0, %s212
      %s227 = sphi 0, %s213
      %s231 = sphi 0, %s231
      %s233 = sphi 0, %s231
      %s234 = sphi 0, %s233
      %s248 = sphi 0, %s234
      %s252 = sphi 0, %s252
      %s254 = sphi 0, %s252
      %s255 = sphi 0, %s254
      %s269 = sphi 0, %s255
      %s273 = sphi 0, %s273
      %s275 = sphi 0, %s273
      %s276 = sphi 0, %s275
      %s290 = sphi 0, %s276
      %s294 = sphi 0, %s294
      %s296 = sphi 0, %s294
      %s297 = sphi 0, %s296
      %s311 = sphi 0, %s297
      %s315 = sphi 0, %s315
      %s317 = sphi 0, %s315
      %s318 = sphi 0, %s317
      %s332 = sphi 0, %s318
      %s336 = sphi 0, %s336
      %s338 = sphi 0, %s336
      %s339 = sphi 0, %s338
      %s353 = sphi 0, %s339
      %s357 = sphi 0, %s357
      %s359 = sphi 0, %s357
      %s360 = sphi 0, %s359
      %s374 = sphi 0, %s360
      %s378 = sphi 0, %s378
      %s380 = sphi 0, %s378
      %s381 = sphi 0, %s380
      %s395 = sphi 0, %s381
      %s399 = sphi 0, %s399
      %s401 = sphi 0, %s399
      %s402 = sphi 0, %s401
      %s416 = sphi 0, %s402
      %s420 = sphi 0, %s420
      %s422 = sphi 0, %s420
      %s423 = sphi 0, %s422
      %s437 = sphi 0, %s423
      %s441 = sphi 0, %s441
      %s443 = sphi 0, %s441
      %s444 = sphi 0, %s443
      %s458 = sphi 0, %s444
      %s464 = sphi 0, %s466
      %s467 = sphi 0, %s464
      %s468 = sphi 0, %s467
      %s484 = sphi 0, %s468
    $region4: #{gpt2_backbone_forward.1} parent=1 // loop_header_branch
      %32 = sbr.rel (%p30) target = $region8
    $region5: #{gpt2_backbone_forward.1} parent=1 // loop_body
      %s34 = ssub.s32 %s29, 1
      %s35 = ssub.s32 %s29, 2
      %s36 = sadd.s32 %s29, 1
      %s37 = ssub.s32 %s29, %s36
      %p38 = scmp.eq.s32.totalorder %s37, 0
      %s40 = sadd.s32 %s39, 1
      %s41 = scalar_select %p38, %s39, %s40
      %p44 = pneg %p38
      %p45 = scmp.eq.s32.totalorder %s29, 1
      %p46 = por %p44, %p45
      %p47 = scmp.ne.s32.totalorder %s39, %s42
      %p48 = scmp.eq.s32.totalorder %s29, 0
      %p49 = por %p47, %p48
      %p50 = scmp.ne.s32.totalorder %s39, %s42
      %p51 = scmp.eq.s32.totalorder %s34, 1
      %p52 = por %p50, %p51
      %p53 = scmp.ne.s32.totalorder %s42, %s43
      %p54 = scmp.eq.s32.totalorder %s34, 0
      %p55 = por %p53, %p54
      %p56 = scmp.ne.s32.totalorder %s42, %s43
      %p57 = scmp.eq.s32.totalorder %s35, 1
      %p58 = por %p56, %p57
      %p60 = scmp.ne.s32.totalorder %s43, %s59
      %p61 = scmp.eq.s32.totalorder %s35, 0
      %p62 = por %p60, %p61
      %s64 = sadd.s32 %s63, 1
      %p67 = scmp.eq.s32.totalorder %s29, 1
      %p68 = scmp.ne.s32.totalorder %s63, %s65
      %p69 = scmp.eq.s32.totalorder %s29, 0
      %p70 = por %p68, %p69
      %p71 = scmp.ne.s32.totalorder %s63, %s65
      %p72 = scmp.eq.s32.totalorder %s34, 1
      %p73 = por %p71, %p72
      %p74 = scmp.ne.s32.totalorder %s65, %s66
      %p75 = scmp.eq.s32.totalorder %s34, 0
      %p76 = por %p74, %p75
      %p77 = scmp.ne.s32.totalorder %s65, %s66
      %p78 = scmp.eq.s32.totalorder %s35, 1
      %p79 = por %p77, %p78
      %p81 = scmp.ne.s32.totalorder %s66, %s80
      %p82 = scmp.eq.s32.totalorder %s35, 0
      %p83 = por %p81, %p82
      %s85 = sadd.s32 %s84, 1
      %p88 = scmp.eq.s32.totalorder %s29, 1
      %p89 = scmp.ne.s32.totalorder %s84, %s86
      %p90 = scmp.eq.s32.totalorder %s29, 0
      %p91 = por %p89, %p90
      %p92 = scmp.ne.s32.totalorder %s84, %s86
      %p93 = scmp.eq.s32.totalorder %s34, 1
      %p94 = por %p92, %p93
      %p95 = scmp.ne.s32.totalorder %s86, %s87
      %p96 = scmp.eq.s32.totalorder %s34, 0
      %p97 = por %p95, %p96
      %p98 = scmp.ne.s32.totalorder %s86, %s87
      %p99 = scmp.eq.s32.totalorder %s35, 1
      %p100 = por %p98, %p99
      %p102 = scmp.ne.s32.totalorder %s87, %s101
      %p103 = scmp.eq.s32.totalorder %s35, 0
      %p104 = por %p102, %p103
      %s106 = sadd.s32 %s105, 1
      %p109 = scmp.eq.s32.totalorder %s29, 1
      %p110 = scmp.ne.s32.totalorder %s105, %s107
      %p111 = scmp.eq.s32.totalorder %s29, 0
      %p112 = por %p110, %p111
      %p113 = scmp.ne.s32.totalorder %s105, %s107
      %p114 = scmp.eq.s32.totalorder %s34, 1
      %p115 = por %p113, %p114
      %p116 = scmp.ne.s32.totalorder %s107, %s108
      %p117 = scmp.eq.s32.totalorder %s34, 0
      %p118 = por %p116, %p117
      %p119 = scmp.ne.s32.totalorder %s107, %s108
      %p120 = scmp.eq.s32.totalorder %s35, 1
      %p121 = por %p119, %p120
      %p123 = scmp.ne.s32.totalorder %s108, %s122
      %p124 = scmp.eq.s32.totalorder %s35, 0
      %p125 = por %p123, %p124
      %s127 = sadd.s32 %s126, 1
      %p130 = scmp.eq.s32.totalorder %s29, 1
      %p131 = scmp.ne.s32.totalorder %s126, %s128
      %p132 = scmp.eq.s32.totalorder %s29, 0
      %p133 = por %p131, %p132
      %p134 = scmp.ne.s32.totalorder %s126, %s128
      %p135 = scmp.eq.s32.totalorder %s34, 1
      %p136 = por %p134, %p135
      %p137 = scmp.ne.s32.totalorder %s128, %s129
      %p138 = scmp.eq.s32.totalorder %s34, 0
      %p139 = por %p137, %p138
      %p140 = scmp.ne.s32.totalorder %s128, %s129
      %p141 = scmp.eq.s32.totalorder %s35, 1
      %p142 = por %p140, %p141
      %p144 = scmp.ne.s32.totalorder %s129, %s143
      %p145 = scmp.eq.s32.totalorder %s35, 0
      %p146 = por %p144, %p145
      %s148 = sadd.s32 %s147, 1
      %p151 = scmp.eq.s32.totalorder %s29, 1
      %p152 = scmp.ne.s32.totalorder %s147, %s149
      %p153 = scmp.eq.s32.totalorder %s29, 0
      %p154 = por %p152, %p153
      %p155 = scmp.ne.s32.totalorder %s147, %s149
      %p156 = scmp.eq.s32.totalorder %s34, 1
      %p157 = por %p155, %p156
      %p158 = scmp.ne.s32.totalorder %s149, %s150
      %p159 = scmp.eq.s32.totalorder %s34, 0
      %p160 = por %p158, %p159
      %p161 = scmp.ne.s32.totalorder %s149, %s150
      %p162 = scmp.eq.s32.totalorder %s35, 1
      %p163 = por %p161, %p162
      %p165 = scmp.ne.s32.totalorder %s150, %s164
      %p166 = scmp.eq.s32.totalorder %s35, 0
      %p167 = por %p165, %p166
      %s169 = sadd.s32 %s168, 1
      %p172 = scmp.eq.s32.totalorder %s29, 1
      %p173 = scmp.ne.s32.totalorder %s168, %s170
      %p174 = scmp.eq.s32.totalorder %s29, 0
      %p175 = por %p173, %p174
      %p176 = scmp.ne.s32.totalorder %s168, %s170
      %p177 = scmp.eq.s32.totalorder %s34, 1
      %p178 = por %p176, %p177
      %p179 = scmp.ne.s32.totalorder %s170, %s171
      %p180 = scmp.eq.s32.totalorder %s34, 0
      %p181 = por %p179, %p180
      %p182 = scmp.ne.s32.totalorder %s170, %s171
      %p183 = scmp.eq.s32.totalorder %s35, 1
      %p184 = por %p182, %p183
      %p186 = scmp.ne.s32.totalorder %s171, %s185
      %p187 = scmp.eq.s32.totalorder %s35, 0
      %p188 = por %p186, %p187
      %s190 = sadd.s32 %s189, 1
      %p193 = scmp.eq.s32.totalorder %s29, 1
      %p194 = scmp.ne.s32.totalorder %s189, %s191
      %p195 = scmp.eq.s32.totalorder %s29, 0
      %p196 = por %p194, %p195
      %p197 = scmp.ne.s32.totalorder %s189, %s191
      %p198 = scmp.eq.s32.totalorder %s34, 1
      %p199 = por %p197, %p198
      %p200 = scmp.ne.s32.totalorder %s191, %s192
      %p201 = scmp.eq.s32.totalorder %s34, 0
      %p202 = por %p200, %p201
      %p203 = scmp.ne.s32.totalorder %s191, %s192
      %p204 = scmp.eq.s32.totalorder %s35, 1
      %p205 = por %p203, %p204
      %p207 = scmp.ne.s32.totalorder %s192, %s206
      %p208 = scmp.eq.s32.totalorder %s35, 0
      %p209 = por %p207, %p208
      %s211 = sadd.s32 %s210, 1
      %p214 = scmp.eq.s32.totalorder %s29, 1
      %p215 = scmp.ne.s32.totalorder %s210, %s212
      %p216 = scmp.eq.s32.totalorder %s29, 0
      %p217 = por %p215, %p216
      %p218 = scmp.ne.s32.totalorder %s210, %s212
      %p219 = scmp.eq.s32.totalorder %s34, 1
      %p220 = por %p218, %p219
      %p221 = scmp.ne.s32.totalorder %s212, %s213
      %p222 = scmp.eq.s32.totalorder %s34, 0
      %p223 = por %p221, %p222
      %p224 = scmp.ne.s32.totalorder %s212, %s213
      %p225 = scmp.eq.s32.totalorder %s35, 1
      %p226 = por %p224, %p225
      %p228 = scmp.ne.s32.totalorder %s213, %s227
      %p229 = scmp.eq.s32.totalorder %s35, 0
      %p230 = por %p228, %p229
      %s232 = sadd.s32 %s231, 1
      %p235 = scmp.eq.s32.totalorder %s29, 1
      %p236 = scmp.ne.s32.totalorder %s231, %s233
      %p237 = scmp.eq.s32.totalorder %s29, 0
      %p238 = por %p236, %p237
      %p239 = scmp.ne.s32.totalorder %s231, %s233
      %p240 = scmp.eq.s32.totalorder %s34, 1
      %p241 = por %p239, %p240
      %p242 = scmp.ne.s32.totalorder %s233, %s234
      %p243 = scmp.eq.s32.totalorder %s34, 0
      %p244 = por %p242, %p243
      %p245 = scmp.ne.s32.totalorder %s233, %s234
      %p246 = scmp.eq.s32.totalorder %s35, 1
      %p247 = por %p245, %p246
      %p249 = scmp.ne.s32.totalorder %s234, %s248
      %p250 = scmp.eq.s32.totalorder %s35, 0
      %p251 = por %p249, %p250
      %s253 = sadd.s32 %s252, 1
      %p256 = scmp.eq.s32.totalorder %s29, 1
      %p257 = scmp.ne.s32.totalorder %s252, %s254
      %p258 = scmp.eq.s32.totalorder %s29, 0
      %p259 = por %p257, %p258
      %p260 = scmp.ne.s32.totalorder %s252, %s254
      %p261 = scmp.eq.s32.totalorder %s34, 1
      %p262 = por %p260, %p261
      %p263 = scmp.ne.s32.totalorder %s254, %s255
      %p264 = scmp.eq.s32.totalorder %s34, 0
      %p265 = por %p263, %p264
      %p266 = scmp.ne.s32.totalorder %s254, %s255
      %p267 = scmp.eq.s32.totalorder %s35, 1
      %p268 = por %p266, %p267
      %p270 = scmp.ne.s32.totalorder %s255, %s269
      %p271 = scmp.eq.s32.totalorder %s35, 0
      %p272 = por %p270, %p271
      %s274 = sadd.s32 %s273, 1
      %p277 = scmp.eq.s32.totalorder %s29, 1
      %p278 = scmp.ne.s32.totalorder %s273, %s275
      %p279 = scmp.eq.s32.totalorder %s29, 0
      %p280 = por %p278, %p279
      %p281 = scmp.ne.s32.totalorder %s273, %s275
      %p282 = scmp.eq.s32.totalorder %s34, 1
      %p283 = por %p281, %p282
      %p284 = scmp.ne.s32.totalorder %s275, %s276
      %p285 = scmp.eq.s32.totalorder %s34, 0
      %p286 = por %p284, %p285
      %p287 = scmp.ne.s32.totalorder %s275, %s276
      %p288 = scmp.eq.s32.totalorder %s35, 1
      %p289 = por %p287, %p288
      %p291 = scmp.ne.s32.totalorder %s276, %s290
      %p292 = scmp.eq.s32.totalorder %s35, 0
      %p293 = por %p291, %p292
      %s295 = sadd.s32 %s294, 1
      %p298 = scmp.eq.s32.totalorder %s29, 1
      %p299 = scmp.ne.s32.totalorder %s294, %s296
      %p300 = scmp.eq.s32.totalorder %s29, 0
      %p301 = por %p299, %p300
      %p302 = scmp.ne.s32.totalorder %s294, %s296
      %p303 = scmp.eq.s32.totalorder %s34, 1
      %p304 = por %p302, %p303
      %p305 = scmp.ne.s32.totalorder %s296, %s297
      %p306 = scmp.eq.s32.totalorder %s34, 0
      %p307 = por %p305, %p306
      %p308 = scmp.ne.s32.totalorder %s296, %s297
      %p309 = scmp.eq.s32.totalorder %s35, 1
      %p310 = por %p308, %p309
      %p312 = scmp.ne.s32.totalorder %s297, %s311
      %p313 = scmp.eq.s32.totalorder %s35, 0
      %p314 = por %p312, %p313
      %s316 = sadd.s32 %s315, 1
      %p319 = scmp.eq.s32.totalorder %s29, 1
      %p320 = scmp.ne.s32.totalorder %s315, %s317
      %p321 = scmp.eq.s32.totalorder %s29, 0
      %p322 = por %p320, %p321
      %p323 = scmp.ne.s32.totalorder %s315, %s317
      %p324 = scmp.eq.s32.totalorder %s34, 1
      %p325 = por %p323, %p324
      %p326 = scmp.ne.s32.totalorder %s317, %s318
      %p327 = scmp.eq.s32.totalorder %s34, 0
      %p328 = por %p326, %p327
      %p329 = scmp.ne.s32.totalorder %s317, %s318
      %p330 = scmp.eq.s32.totalorder %s35, 1
      %p331 = por %p329, %p330
      %p333 = scmp.ne.s32.totalorder %s318, %s332
      %p334 = scmp.eq.s32.totalorder %s35, 0
      %p335 = por %p333, %p334
      %s337 = sadd.s32 %s336, 1
      %p340 = scmp.eq.s32.totalorder %s29, 1
      %p341 = scmp.ne.s32.totalorder %s336, %s338
      %p342 = scmp.eq.s32.totalorder %s29, 0
      %p343 = por %p341, %p342
      %p344 = scmp.ne.s32.totalorder %s336, %s338
      %p345 = scmp.eq.s32.totalorder %s34, 1
      %p346 = por %p344, %p345
      %p347 = scmp.ne.s32.totalorder %s338, %s339
      %p348 = scmp.eq.s32.totalorder %s34, 0
      %p349 = por %p347, %p348
      %p350 = scmp.ne.s32.totalorder %s338, %s339
      %p351 = scmp.eq.s32.totalorder %s35, 1
      %p352 = por %p350, %p351
      %p354 = scmp.ne.s32.totalorder %s339, %s353
      %p355 = scmp.eq.s32.totalorder %s35, 0
      %p356 = por %p354, %p355
      %s358 = sadd.s32 %s357, 1
      %p361 = scmp.eq.s32.totalorder %s29, 1
      %p362 = scmp.ne.s32.totalorder %s357, %s359
      %p363 = scmp.eq.s32.totalorder %s29, 0
      %p364 = por %p362, %p363
      %p365 = scmp.ne.s32.totalorder %s357, %s359
      %p366 = scmp.eq.s32.totalorder %s34, 1
      %p367 = por %p365, %p366
      %p368 = scmp.ne.s32.totalorder %s359, %s360
      %p369 = scmp.eq.s32.totalorder %s34, 0
      %p370 = por %p368, %p369
      %p371 = scmp.ne.s32.totalorder %s359, %s360
      %p372 = scmp.eq.s32.totalorder %s35, 1
      %p373 = por %p371, %p372
      %p375 = scmp.ne.s32.totalorder %s360, %s374
      %p376 = scmp.eq.s32.totalorder %s35, 0
      %p377 = por %p375, %p376
      %s379 = sadd.s32 %s378, 1
      %p382 = scmp.eq.s32.totalorder %s29, 1
      %p383 = scmp.ne.s32.totalorder %s378, %s380
      %p384 = scmp.eq.s32.totalorder %s29, 0
      %p385 = por %p383, %p384
      %p386 = scmp.ne.s32.totalorder %s378, %s380
      %p387 = scmp.eq.s32.totalorder %s34, 1
      %p388 = por %p386, %p387
      %p389 = scmp.ne.s32.totalorder %s380, %s381
      %p390 = scmp.eq.s32.totalorder %s34, 0
      %p391 = por %p389, %p390
      %p392 = scmp.ne.s32.totalorder %s380, %s381
      %p393 = scmp.eq.s32.totalorder %s35, 1
      %p394 = por %p392, %p393
      %p396 = scmp.ne.s32.totalorder %s381, %s395
      %p397 = scmp.eq.s32.totalorder %s35, 0
      %p398 = por %p396, %p397
      %s400 = sadd.s32 %s399, 1
      %p403 = scmp.eq.s32.totalorder %s29, 1
      %p404 = scmp.ne.s32.totalorder %s399, %s401
      %p405 = scmp.eq.s32.totalorder %s29, 0
      %p406 = por %p404, %p405
      %p407 = scmp.ne.s32.totalorder %s399, %s401
      %p408 = scmp.eq.s32.totalorder %s34, 1
      %p409 = por %p407, %p408
      %p410 = scmp.ne.s32.totalorder %s401, %s402
      %p411 = scmp.eq.s32.totalorder %s34, 0
      %p412 = por %p410, %p411
      %p413 = scmp.ne.s32.totalorder %s401, %s402
      %p414 = scmp.eq.s32.totalorder %s35, 1
      %p415 = por %p413, %p414
      %p417 = scmp.ne.s32.totalorder %s402, %s416
      %p418 = scmp.eq.s32.totalorder %s35, 0
      %p419 = por %p417, %p418
      %s421 = sadd.s32 %s420, 1
      %p424 = scmp.eq.s32.totalorder %s29, 1
      %p425 = scmp.ne.s32.totalorder %s420, %s422
      %p426 = scmp.eq.s32.totalorder %s29, 0
      %p427 = por %p425, %p426
      %p428 = scmp.ne.s32.totalorder %s420, %s422
      %p429 = scmp.eq.s32.totalorder %s34, 1
      %p430 = por %p428, %p429
      %p431 = scmp.ne.s32.totalorder %s422, %s423
      %p432 = scmp.eq.s32.totalorder %s34, 0
      %p433 = por %p431, %p432
      %p434 = scmp.ne.s32.totalorder %s422, %s423
      %p435 = scmp.eq.s32.totalorder %s35, 1
      %p436 = por %p434, %p435
      %p438 = scmp.ne.s32.totalorder %s423, %s437
      %p439 = scmp.eq.s32.totalorder %s35, 0
      %p440 = por %p438, %p439
      %s442 = sadd.s32 %s441, 1
      %p445 = scmp.eq.s32.totalorder %s29, 1
      %p446 = scmp.ne.s32.totalorder %s441, %s443
      %p447 = scmp.eq.s32.totalorder %s29, 0
      %p448 = por %p446, %p447
      %p449 = scmp.ne.s32.totalorder %s441, %s443
      %p450 = scmp.eq.s32.totalorder %s34, 1
      %p451 = por %p449, %p450
      %p452 = scmp.ne.s32.totalorder %s443, %s444
      %p453 = scmp.eq.s32.totalorder %s34, 0
      %p454 = por %p452, %p453
      %p455 = scmp.ne.s32.totalorder %s443, %s444
      %p456 = scmp.eq.s32.totalorder %s35, 1
      %p457 = por %p455, %p456
      %p459 = scmp.ne.s32.totalorder %s444, %s458
      %p460 = scmp.eq.s32.totalorder %s35, 0
      %p461 = por %p459, %p460
      %s462 = ssub.s32 %s29, %s36
      %p463 = scmp.eq.s32.totalorder %s462, 0
      %s465 = sadd.s32 %s464, 1
      %s466 = scalar_select %p463, %s464, %s465
      %p469 = pneg %p463
      %p470 = scmp.eq.s32.totalorder %s29, 1
      %p471 = por %p469, %p470
      %p472 = scmp.ne.s32.totalorder %s464, %s467
      %p473 = scmp.eq.s32.totalorder %s29, 0
      %p474 = por %p472, %p473
      %p475 = scmp.ne.s32.totalorder %s464, %s467
      %p476 = scmp.eq.s32.totalorder %s34, 1
      %p477 = por %p475, %p476
      %p478 = scmp.ne.s32.totalorder %s467, %s468
      %p479 = scmp.eq.s32.totalorder %s34, 0
      %p480 = por %p478, %p479
      %p481 = scmp.ne.s32.totalorder %s467, %s468
      %p482 = scmp.eq.s32.totalorder %s35, 1
      %p483 = por %p481, %p482
      %p485 = scmp.ne.s32.totalorder %s468, %s484
      %p486 = scmp.eq.s32.totalorder %s35, 0
      %p487 = por %p485, %p486
      %p488 = scmp.le.s32.totalorder 1, %s29
      %p489 = scmp.lt.s32.totalorder %s29, 3
      %p490 = pnand %p488, %p489
      %p491 = pneg %p490
      // Predicated region
      $region9: #{gpt2_backbone_forward.1} parent=5 // pred_check
        _
      $region10: #{gpt2_backbone_forward.1} parent=5 // pred_check_branch
        %493 = sbr.rel (%p490) target = $region12
      $region11: #{gpt2_backbone_forward.1} parent=5 // pred_region
        %s494 = ssub.s32 %s29, 1
        // Predicated region
        $region13: #{gpt2_backbone_forward.1} parent=11 // pred_check
          %p495 = pneg %p76
        $region14: #{gpt2_backbone_forward.1} parent=11 // pred_check_branch
          %497 = sbr.rel (%p495) target = $region16
        $region15: #{gpt2_backbone_forward.1} parent=11 // pred_region
          _
        $region16: #{gpt2_backbone_forward.1} parent=11 // pred_fallthru
          _
        // Predicated region
        $region17: #{gpt2_backbone_forward.1} parent=11 // pred_check
          %p498 = pneg %p97
        $region18: #{gpt2_backbone_forward.1} parent=11 // pred_check_branch
          %500 = sbr.rel (%p498) target = $region20
        $region19: #{gpt2_backbone_forward.1} parent=11 // pred_region
          _
        $region20: #{gpt2_backbone_forward.1} parent=11 // pred_fallthru
          _
        // Predicated region
        $region21: #{gpt2_backbone_forward.1} parent=11 // pred_check
          %p501 = pneg %p118
        $region22: #{gpt2_backbone_forward.1} parent=11 // pred_check_branch
          %503 = sbr.rel (%p501) target = $region24
        $region23: #{gpt2_backbone_forward.1} parent=11 // pred_region
          _
        $region24: #{gpt2_backbone_forward.1} parent=11 // pred_fallthru
          _
        // Predicated region
        $region25: #{gpt2_backbone_forward.1} parent=11 // pred_check
          %p504 = pneg %p139
        $region26: #{gpt2_backbone_forward.1} parent=11 // pred_check_branch
          %506 = sbr.rel (%p504) target = $region28
        $region27: #{gpt2_backbone_forward.1} parent=11 // pred_region
          _
        $region28: #{gpt2_backbone_forward.1} parent=11 // pred_fallthru
          _
        // Predicated region
        $region29: #{gpt2_backbone_forward.1} parent=11 // pred_check
          %p507 = pneg %p160
        $region30: #{gpt2_backbone_forward.1} parent=11 // pred_check_branch
          %509 = sbr.rel (%p507) target = $region32
        $region31: #{gpt2_backbone_forward.1} parent=11 // pred_region
          _
        $region32: #{gpt2_backbone_forward.1} parent=11 // pred_fallthru
          _
        // Predicated region
        $region33: #{gpt2_backbone_forward.1} parent=11 // pred_check
          %p510 = pneg %p181
        $region34: #{gpt2_backbone_forward.1} parent=11 // pred_check_branch
          %512 = sbr.rel (%p510) target = $region36
        $region35: #{gpt2_backbone_forward.1} parent=11 // pred_region
          _
        $region36: #{gpt2_backbone_forward.1} parent=11 // pred_fallthru
          _
        // Predicated region
        $region37: #{gpt2_backbone_forward.1} parent=11 // pred_check
          %p513 = pneg %p202
        $region38: #{gpt2_backbone_forward.1} parent=11 // pred_check_branch
          %515 = sbr.rel (%p513) target = $region40
        $region39: #{gpt2_backbone_forward.1} parent=11 // pred_region
          _
        $region40: #{gpt2_backbone_forward.1} parent=11 // pred_fallthru
          _
        // Predicated region
        $region41: #{gpt2_backbone_forward.1} parent=11 // pred_check
          %p516 = pneg %p223
        $region42: #{gpt2_backbone_forward.1} parent=11 // pred_check_branch
          %518 = sbr.rel (%p516) target = $region44
        $region43: #{gpt2_backbone_forward.1} parent=11 // pred_region
          _
        $region44: #{gpt2_backbone_forward.1} parent=11 // pred_fallthru
          _
        // Predicated region
        $region45: #{gpt2_backbone_forward.1} parent=11 // pred_check
          %p519 = pneg %p244
        $region46: #{gpt2_backbone_forward.1} parent=11 // pred_check_branch
          %521 = sbr.rel (%p519) target = $region48
        $region47: #{gpt2_backbone_forward.1} parent=11 // pred_region
          _
        $region48: #{gpt2_backbone_forward.1} parent=11 // pred_fallthru
          _
        // Predicated region
        $region49: #{gpt2_backbone_forward.1} parent=11 // pred_check
          %p522 = pneg %p265
        $region50: #{gpt2_backbone_forward.1} parent=11 // pred_check_branch
          %524 = sbr.rel (%p522) target = $region52
        $region51: #{gpt2_backbone_forward.1} parent=11 // pred_region
          _
        $region52: #{gpt2_backbone_forward.1} parent=11 // pred_fallthru
          _
        // Predicated region
        $region53: #{gpt2_backbone_forward.1} parent=11 // pred_check
          %p525 = pneg %p286
        $region54: #{gpt2_backbone_forward.1} parent=11 // pred_check_branch
          %527 = sbr.rel (%p525) target = $region56
        $region55: #{gpt2_backbone_forward.1} parent=11 // pred_region
          _
        $region56: #{gpt2_backbone_forward.1} parent=11 // pred_fallthru
          _
        // Predicated region
        $region57: #{gpt2_backbone_forward.1} parent=11 // pred_check
          %p528 = pneg %p307
        $region58: #{gpt2_backbone_forward.1} parent=11 // pred_check_branch
          %530 = sbr.rel (%p528) target = $region60
        $region59: #{gpt2_backbone_forward.1} parent=11 // pred_region
          _
        $region60: #{gpt2_backbone_forward.1} parent=11 // pred_fallthru
          _
        // Predicated region
        $region61: #{gpt2_backbone_forward.1} parent=11 // pred_check
          %p531 = pneg %p328
        $region62: #{gpt2_backbone_forward.1} parent=11 // pred_check_branch
          %533 = sbr.rel (%p531) target = $region64
        $region63: #{gpt2_backbone_forward.1} parent=11 // pred_region
          _
        $region64: #{gpt2_backbone_forward.1} parent=11 // pred_fallthru
          _
        // Predicated region
        $region65: #{gpt2_backbone_forward.1} parent=11 // pred_check
          %p534 = pneg %p349
        $region66: #{gpt2_backbone_forward.1} parent=11 // pred_check_branch
          %536 = sbr.rel (%p534) target = $region68
        $region67: #{gpt2_backbone_forward.1} parent=11 // pred_region
          _
        $region68: #{gpt2_backbone_forward.1} parent=11 // pred_fallthru
          _
        // Predicated region
        $region69: #{gpt2_backbone_forward.1} parent=11 // pred_check
          %p537 = pneg %p370
        $region70: #{gpt2_backbone_forward.1} parent=11 // pred_check_branch
          %539 = sbr.rel (%p537) target = $region72
        $region71: #{gpt2_backbone_forward.1} parent=11 // pred_region
          _
        $region72: #{gpt2_backbone_forward.1} parent=11 // pred_fallthru
          _
        // Predicated region
        $region73: #{gpt2_backbone_forward.1} parent=11 // pred_check
          %p540 = pneg %p391
        $region74: #{gpt2_backbone_forward.1} parent=11 // pred_check_branch
          %542 = sbr.rel (%p540) target = $region76
        $region75: #{gpt2_backbone_forward.1} parent=11 // pred_region
          _
        $region76: #{gpt2_backbone_forward.1} parent=11 // pred_fallthru
          _
        // Predicated region
        $region77: #{gpt2_backbone_forward.1} parent=11 // pred_check
          %p543 = pneg %p412
        $region78: #{gpt2_backbone_forward.1} parent=11 // pred_check_branch
          %545 = sbr.rel (%p543) target = $region80
        $region79: #{gpt2_backbone_forward.1} parent=11 // pred_region
          _
        $region80: #{gpt2_backbone_forward.1} parent=11 // pred_fallthru
          _
        // Predicated region
        $region81: #{gpt2_backbone_forward.1} parent=11 // pred_check
          %p546 = pneg %p433
        $region82: #{gpt2_backbone_forward.1} parent=11 // pred_check_branch
          %548 = sbr.rel (%p546) target = $region84
        $region83: #{gpt2_backbone_forward.1} parent=11 // pred_region
          _
        $region84: #{gpt2_backbone_forward.1} parent=11 // pred_fallthru
          _
        // Predicated region
        $region85: #{gpt2_backbone_forward.1} parent=11 // pred_check
          %p549 = pneg %p454
        $region86: #{gpt2_backbone_forward.1} parent=11 // pred_check_branch
          %551 = sbr.rel (%p549) target = $region88
        $region87: #{gpt2_backbone_forward.1} parent=11 // pred_region
          _
        $region88: #{gpt2_backbone_forward.1} parent=11 // pred_fallthru
          _
      $region12: #{gpt2_backbone_forward.1} parent=5 // pred_fallthru
        _
      %p552 = scmp.lt.s32.totalorder %s29, 2
      // Predicated region
      $region89: #{gpt2_backbone_forward.1} parent=5 // pred_check
        %p553 = pneg %p552
      $region90: #{gpt2_backbone_forward.1} parent=5 // pred_check_branch
        %555 = sbr.rel (%p553) target = $region92
      $region91: #{gpt2_backbone_forward.1} parent=5 // pred_region
        // Predicated region
        $region93: #{gpt2_backbone_forward.1} parent=91 // pred_check
          %p556 = pneg %p49
        $region94: #{gpt2_backbone_forward.1} parent=91 // pred_check_branch
          %558 = sbr.rel (%p556) target = $region96
        $region95: #{gpt2_backbone_forward.1} parent=91 // pred_region
          %p559 = scmp.lt.s32.totalorder %s29, 1
          %s560 = scalar_select %p559, %s29, 1
          %s561 = smul.addr %s560, 2
          %s562 = smul.addr %s561, 8
          %s563 = scalar_lea.vmem %s0, %s562
        $region96: #{gpt2_backbone_forward.1} parent=91 // pred_fallthru
          _
      $region92: #{gpt2_backbone_forward.1} parent=5 // pred_fallthru
        _
      %p564 = scmp.le.s32.totalorder 1, %s29
      %p565 = scmp.lt.s32.totalorder %s29, 3
      %p566 = pnand %p564, %p565
      %p567 = pneg %p566
      // Predicated region
      $region97: #{gpt2_backbone_forward.1} parent=5 // pred_check
        _
      $region98: #{gpt2_backbone_forward.1} parent=5 // pred_check_branch
        %569 = sbr.rel (%p566) target = $region100
      $region99: #{gpt2_backbone_forward.1} parent=5 // pred_region
        %s570 = ssub.s32 %s29, 1
        %p571 = scmp.lt.s32.totalorder %s34, 1
        %s572 = scalar_select %p571, %s34, 1
        %s573 = smul.addr %s572, 2
        %s574 = smul.addr %s573, 8
        %s575 = scalar_lea.vmem %s0, %s574
        %p576 = pneg %p55
        %p577 = pneg %p52
        %p578 = pneg %p76
        %p579 = pneg %p73
        %p580 = pneg %p97
        %p581 = pneg %p94
        %p582 = pneg %p118
        %p583 = pneg %p115
        %p584 = pneg %p139
        %p585 = pneg %p136
        %p586 = pneg %p160
        %p587 = pneg %p157
        %p588 = pneg %p181
        %p589 = pneg %p178
        %p590 = pneg %p202
        %p591 = pneg %p199
        %p592 = pneg %p223
        %p593 = pneg %p220
        %p594 = pneg %p244
        %p595 = pneg %p241
        %p596 = pneg %p265
        %p597 = pneg %p262
        %p598 = pneg %p286
        %p599 = pneg %p283
        %p600 = pneg %p307
        %p601 = pneg %p304
        %p602 = pneg %p328
        %p603 = pneg %p325
        %p604 = pneg %p349
        %p605 = pneg %p346
        %p606 = pneg %p370
        %p607 = pneg %p367
        %p608 = pneg %p391
        %p609 = pneg %p388
        %p610 = pneg %p412
        %p611 = pneg %p409
        %p612 = pneg %p433
        %p613 = pneg %p430
        %p614 = pneg %p454
        %p615 = pneg %p451
        %p616 = pneg %p480
        %p617 = pneg %p477
        %s618 = sand.u32 %s467, 1
        %s619 = scalar_lea.sflag [#allocation3], %s618
        %s620 = sand.u32 %s467, 1
        %s621 = smul.addr %s620, 8
        %s622 = scalar_lea.vmem [#allocation2], %s621
        %p623 = scmp.lt.s32.totalorder %s34, 1
        %s624 = scalar_select %p623, %s34, 1
        %s625 = smul.addr %s624, 2
        %s626 = smul.addr %s625, 8
        %s627 = scalar_lea.vmem %s0, %s626
        %v628 = vld [vmem:[%s627] sm:$0xff]
        %v629 = vld [vmem:[%s627 + $0x8] sm:$0x7]
        %v630 = vld [vmem:[%s2] sm:$0x1]
        %v631 = vld [vmem:[%s3] sm:$0x1]
        %vm632 = vcmask 523264
        %v633 = vsel %vm632, %v628, 0.0
        %634 = vadd.xlane.f32.xlu0 %v633
        %v635 = vpop.xlane.xlu0 %634
        %vm636 = vcmask 518144
        %v637 = vsel %vm636, %v629, 0.0
        %638 = vadd.xlane.f32.xlu0 %v637
        %v639 = vpop.xlane.xlu0 %638
        %v640 = vrcp.pop 64.0
        %v641 = vmul.f32 64.0, %v640
        %v642 = vsub.f32 1.0, %v641
        %v643 = vmul.f32 %v640, %v642
        %v644 = vadd.f32 %v640, %v643
        %vm645 = vweird.f32 %v640
        %v646 = vsel %vm645, %v640, %v644
        %v647 = vmul.f32 %v635, %v646
        %v648 = vmul.f32 %v639, %v646
        %v649 = vsub.f32 %v628, %v647
        %v650 = vsub.f32 %v629, %v648
        %v651 = vmul.f32 %v649, %v649
        %v652 = vmul.f32 %v650, %v650
        %v653 = vsel %vm632, %v651, 0.0
        %654 = vadd.xlane.f32.xlu0 %v653
        %v655 = vpop.xlane.xlu0 %654
        %v656 = vsel %vm636, %v652, 0.0
        %657 = vadd.xlane.f32.xlu0 %v656
        %v658 = vpop.xlane.xlu0 %657
        %v659 = vmul.f32 %v655, %v646
        %v660 = vmul.f32 %v658, %v646
        %v661 = vadd.f32 %v659, 1e-05
        %v662 = vadd.f32 %v660, 1e-05
        %v663 = vrsqrt.pop %v661
        %v664 = vmul.f32 %v663, %v661
        %v665 = vmul.f32 %v664, %v663
        %v666 = vmul.f32 0.5, %v665
        %v667 = vsub.f32 1.5, %v666
        %v668 = vmul.f32 %v663, %v667
        %vm669 = vweird.f32 %v661
        %vm670 = vweird.f32 %v663
        %vm671 = vmor %vm669, %vm670
        %v672 = vsel %vm671, %v663, %v668
        %v673 = vrsqrt.pop %v662
        %v674 = vmul.f32 %v673, %v662
        %v675 = vmul.f32 %v674, %v673
        %v676 = vmul.f32 0.5, %v675
        %v677 = vsub.f32 1.5, %v676
        %v678 = vmul.f32 %v673, %v677
        %vm679 = vweird.f32 %v662
        %vm680 = vweird.f32 %v673
        %vm681 = vmor %vm679, %vm680
        %v682 = vsel %vm681, %v673, %v678
        %v684 = vperm.slane %v630, 0
        %v686 = vmul.f32 %v672, %v684
        %v687 = vmul.f32 %v682, %v684
        %v688 = vmul.f32 %v649, %v686
        %v689 = vmul.f32 %v650, %v687
        %v691 = vperm.slane %v631, 0
        %v693 = vadd.f32 %v688, %v691
        %v694 = vadd.f32 %v689, %v691
        %v695 = vld [vmem:[%s1] sm:$0xff]
        %v696 = vld [vmem:[%s1 + $0x8] sm:$0x7]
        %v697 = vadd.f32 %v693, %v695
        %v698 = vadd.f32 %v694, %v696
        %v699 = vlaneseq
        %v700 = vshrl.u32 %v699, 7
        %v701 = vadd.s32 %v700, 8
        %v702 = vlaneseq
        %v703 = vand.u32 %v702, 127
        %vm704 = vcmp.le.s32.totalorder %v703, %v700
        %vm705 = vcmp.le.s32.totalorder %v703, %v701
        %v706 = vld [vmem:[%s4] sm:$0x1]
        %v707 = vld [vmem:[%s5] sm:$0x1]
        %v708 = vsel %vm632, %v697, 0.0
        %709 = vadd.xlane.f32.xlu0 %v708
        %v710 = vpop.xlane.xlu0 %709
        %v711 = vsel %vm636, %v698, 0.0
        %712 = vadd.xlane.f32.xlu0 %v711
        %v713 = vpop.xlane.xlu0 %712
        %v714 = vmul.f32 %v710, %v646
        %v715 = vmul.f32 %v713, %v646
        %v716 = vsub.f32 %v697, %v714
        %v717 = vsub.f32 %v698, %v715
        %v718 = vmul.f32 %v716, %v716
        %v719 = vmul.f32 %v717, %v717
        %v720 = vsel %vm632, %v718, 0.0
        %721 = vadd.xlane.f32.xlu0 %v720
        %v722 = vpop.xlane.xlu0 %721
        %v723 = vsel %vm636, %v719, 0.0
        %724 = vadd.xlane.f32.xlu0 %v723
        %v725 = vpop.xlane.xlu0 %724
        %v726 = vmul.f32 %v722, %v646
        %v727 = vmul.f32 %v725, %v646
        %v728 = vadd.f32 %v726, 1e-05
        %v729 = vadd.f32 %v727, 1e-05
        %v730 = vrsqrt.pop %v728
        %v731 = vmul.f32 %v730, %v728
        %v732 = vmul.f32 %v731, %v730
        %v733 = vmul.f32 0.5, %v732
        %v734 = vsub.f32 1.5, %v733
        %v735 = vmul.f32 %v730, %v734
        %vm736 = vweird.f32 %v728
        %vm737 = vweird.f32 %v730
        %vm738 = vmor %vm736, %vm737
        %v739 = vsel %vm738, %v730, %v735
        %v740 = vrsqrt.pop %v729
        %v741 = vmul.f32 %v740, %v729
        %v742 = vmul.f32 %v741, %v740
        %v743 = vmul.f32 0.5, %v742
        %v744 = vsub.f32 1.5, %v743
        %v745 = vmul.f32 %v740, %v744
        %vm746 = vweird.f32 %v729
        %vm747 = vweird.f32 %v740
        %vm748 = vmor %vm746, %vm747
        %v749 = vsel %vm748, %v740, %v745
        %v751 = vperm.slane %v706, 0
        %v753 = vmul.f32 %v739, %v751
        %v754 = vmul.f32 %v749, %v751
        %v755 = vmul.f32 %v716, %v753
        %v756 = vmul.f32 %v717, %v754
        %v758 = vperm.slane %v707, 0
        %v760 = vadd.f32 %v755, %v758
        %v761 = vadd.f32 %v756, %v758
        %v762 = vld [vmem:[%s6] sm:$0xff]
        %v763 = vld [vmem:[%s6 + $0x8] sm:$0xff]
        %v764 = vld [vmem:[%s6 + $0x10] sm:$0xff]
        %v765 = vld [vmem:[%s6 + $0x18] sm:$0xff]
        %v766 = vld [vmem:[%s6 + $0x20] sm:$0xff]
        %v767 = vld [vmem:[%s6 + $0x28] sm:$0xff]
        %v768 = vld [vmem:[%s6 + $0x30] sm:$0xff]
        %v769 = vld [vmem:[%s6 + $0x38] sm:$0xff]
        %v770 = vld [vmem:[%s6 + $0x40] sm:$0xff]
        %v771 = vld [vmem:[%s6 + $0x48] sm:$0xff]
        %v772 = vld [vmem:[%s6 + $0x50] sm:$0xff]
        %v773 = vld [vmem:[%s6 + $0x58] sm:$0xff]
        %v774 = vld [vmem:[%s6 + $0x60] sm:$0xff]
        %v775 = vld [vmem:[%s6 + $0x68] sm:$0xff]
        %v776 = vld [vmem:[%s6 + $0x70] sm:$0xff]
        %v777 = vld [vmem:[%s6 + $0x78] sm:$0xff]
        %v778 = vld [vmem:[%s7] sm:$0x3]
        %v780 = vperm.slane %v778, 0
        %v781 = vperm.slane %v778, 1
        %v785 = vsel %vm632, %v760, 0
        %v788 = vsel %vm632, %v761, 0
        %790 = vmatpush.msra.mxu0 0.0
        %791 = vmatpush.msra.mxu0 0.0
        %792 = vmatpush.msra.mxu0 0.0
        %793 = vmatpush.msra.mxu0 0.0
        %794 = vmatpush.msra.mxu0 0.0
        %795 = vmatpush.msra.mxu0 0.0
        %796 = vmatpush.msra.mxu0 0.0
        %797 = vmatpush.msra.mxu0 0.0
        %798 = vmatpush.msra.mxu0 %v776
        %799 = vmatpush.msra.mxu0 %v774
        %800 = vmatpush.msra.mxu0 %v772
        %801 = vmatpush.msra.mxu0 %v770
        %802 = vmatpush.msra.mxu0 %v768
        %803 = vmatpush.msra.mxu0 %v766
        %804 = vmatpush.msra.mxu0 %v764
        %805 = vmatpush.msra.mxu0 %v762
        %806 = vmatmul.f32.gmra.mxu0 %v785
        %v807 = vpop.f32.mrf.mxu0
        %v808 = vadd.f32 %v780, %v807
        %809 = vmatmul.f32.gmra.mxu0 %v788
        %v810 = vpop.f32.mrf.mxu0
        %v811 = vadd.f32 %v780, %v810
        %812 = vdwg.mxu0
        %813 = vmatpush.msra.mxu0 0.0
        %814 = vmatpush.msra.mxu0 0.0
        %815 = vmatpush.msra.mxu0 0.0
        %816 = vmatpush.msra.mxu0 0.0
        %817 = vmatpush.msra.mxu0 0.0
        %818 = vmatpush.msra.mxu0 0.0
        %819 = vmatpush.msra.mxu0 0.0
        %820 = vmatpush.msra.mxu0 0.0
        %821 = vmatpush.msra.mxu0 %v777
        %822 = vmatpush.msra.mxu0 %v775
        %823 = vmatpush.msra.mxu0 %v773
        %824 = vmatpush.msra.mxu0 %v771
        %825 = vmatpush.msra.mxu0 %v769
        %826 = vmatpush.msra.mxu0 %v767
        %827 = vmatpush.msra.mxu0 %v765
        %828 = vmatpush.msra.mxu0 %v763
        %829 = vmatmul.f32.gmra.mxu0 %v785
        %v830 = vpop.f32.mrf.mxu0
        %v831 = vadd.f32 %v781, %v830
        %832 = vmatmul.f32.gmra.mxu0 %v788
        %v833 = vpop.f32.mrf.mxu0
        %v834 = vadd.f32 %v781, %v833
        %835 = vdwg.mxu0
        %v836 = vld [vmem:[%s8] sm:$0xff]
        %v837 = vld [vmem:[%s8 + $0x8] sm:$0xff]
        %v838 = vld [vmem:[%s8 + $0x10] sm:$0xff]
        %v839 = vld [vmem:[%s8 + $0x18] sm:$0xff]
        %v840 = vld [vmem:[%s8 + $0x20] sm:$0xff]
        %v841 = vld [vmem:[%s8 + $0x28] sm:$0xff]
        %v842 = vld [vmem:[%s8 + $0x30] sm:$0xff]
        %v843 = vld [vmem:[%s8 + $0x38] sm:$0xff]
        %846 = vrot.lane.b32.xlu0 %v808, 64
        %v847 = vpop.permute.xlu0 %846
        %848 = vrot.lane.b32.xlu0 %v811, 64
        %v849 = vpop.permute.xlu0 %848
        %vm850 = vcmask 261120
        %v851 = vsel %vm850, %v808, 0
        %v853 = vsel %vm850, %v811, 0
        %v855 = vsel %vm850, %v847, 0
        %v857 = vsel %vm850, %v849, 0
        %859 = vmatpush.xpose.msra.mxu0 0.0
        %860 = vmatpush.xpose.msra.mxu0 0.0
        %861 = vmatpush.xpose.msra.mxu0 0.0
        %862 = vmatpush.xpose.msra.mxu0 0.0
        %863 = vmatpush.xpose.msra.mxu0 0.0
        %864 = vmatpush.xpose.msra.mxu0 0.0
        %865 = vmatpush.xpose.msra.mxu0 0.0
        %866 = vmatpush.xpose.msra.mxu0 0.0
        %867 = vmatpush.xpose.msra.mxu0 0.0
        %868 = vmatpush.xpose.msra.mxu0 0.0
        %869 = vmatpush.xpose.msra.mxu0 0.0
        %870 = vmatpush.xpose.msra.mxu0 0.0
        %871 = vmatpush.xpose.msra.mxu0 0.0
        %872 = vmatpush.xpose.msra.mxu0 0.0
        %873 = vmatpush.xpose.msra.mxu0 %v857
        %874 = vmatpush.xpose.msra.mxu0 %v855
        %875 = vmatmul.f32.gmra.mxu0 %v851
        %v876 = vpop.f32.mrf.mxu0
        %v877 = vadd.f32 0.0, %v876
        %878 = vmatmul.f32.gmra.mxu0 %v853
        %v879 = vpop.f32.mrf.mxu0
        %v880 = vadd.f32 0.0, %v879
        %881 = vdwg.mxu0
        %v882 = vmul.f32 %v877, 0.17677669
        %v883 = vmul.f32 %v880, 0.17677669
        %v884 = vsel %vm704, %v882, -1e+30
        %v885 = vsel %vm705, %v883, -1e+30
        %vm886 = vcmask 89088
        %v887 = vsel %vm886, %v884, -inf
        %888 = vmax.xlane.f32.xlu0 %v887
        %v889 = vpop.xlane.xlu0 %888
        %vm890 = vcmask 83968
        %v891 = vsel %vm890, %v885, -inf
        %892 = vmax.xlane.f32.xlu0 %v891
        %v893 = vpop.xlane.xlu0 %892
        %v894 = vsub.f32 %v884, %v889
        %v895 = vsub.f32 %v885, %v893
        %v896 = vmul.f32 %v894, 1.442695
        %v897 = vpow.pop %v896
        %v898 = vmul.f32 %v895, 1.442695
        %v899 = vpow.pop %v898
        %v900 = vsel %vm886, %v897, 0.0
        %901 = vadd.xlane.f32.xlu0 %v900
        %v902 = vpop.xlane.xlu0 %901
        %v903 = vsel %vm890, %v899, 0.0
        %904 = vadd.xlane.f32.xlu0 %v903
        %v905 = vpop.xlane.xlu0 %904
        %v907 = vsel %vm886, %v897, 0
        %v910 = vsel %vm886, %v899, 0
        %vm912 = vcmask 1042432
        %v914 = vsel %vm912, %v834, 0
        %916 = vmatpush.msra.mxu0 0.0
        %917 = vmatpush.msra.mxu0 0.0
        %918 = vmatpush.msra.mxu0 0.0
        %919 = vmatpush.msra.mxu0 0.0
        %920 = vmatpush.msra.mxu0 0.0
        %921 = vmatpush.msra.mxu0 0.0
        %922 = vmatpush.msra.mxu0 0.0
        %923 = vmatpush.msra.mxu0 0.0
        %924 = vmatpush.msra.mxu0 0.0
        %925 = vmatpush.msra.mxu0 0.0
        %926 = vmatpush.msra.mxu0 0.0
        %927 = vmatpush.msra.mxu0 0.0
        %928 = vmatpush.msra.mxu0 0.0
        %929 = vmatpush.msra.mxu0 0.0
        %930 = vmatpush.msra.mxu0 %v914
        %931 = vmatpush.msra.mxu0 %v831
        %932 = vmatmul.f32.gmra.mxu0 %v907
        %v933 = vpop.f32.mrf.mxu0
        %v934 = vadd.f32 0.0, %v933
        %935 = vmatmul.f32.gmra.mxu0 %v910
        %v936 = vpop.f32.mrf.mxu0
        %v937 = vadd.f32 0.0, %v936
        %938 = vdwg.mxu0
        %v939 = vrcp.pop %v902
        %v940 = vrcp.pop %v905
        %v941 = vmul.f32 %v934, %v939
        %v942 = vmul.f32 %v937, %v940
        %943 = vrot.lane.b32.xlu0 %v808, 96
        %v944 = vpop.permute.xlu0 %943
        %945 = vrot.lane.b32.xlu0 %v811, 96
        %v946 = vpop.permute.xlu0 %945
        %947 = vrot.lane.b32.xlu0 %v808, 32
        %v948 = vpop.permute.xlu0 %947
        %949 = vrot.lane.b32.xlu0 %v811, 32
        %v950 = vpop.permute.xlu0 %949
        %v951 = vsel %vm850, %v944, 0
        %v953 = vsel %vm850, %v946, 0
        %v955 = vsel %vm850, %v948, 0
        %v957 = vsel %vm850, %v950, 0
        %959 = vmatpush.xpose.msra.mxu0 0.0
        %960 = vmatpush.xpose.msra.mxu0 0.0
        %961 = vmatpush.xpose.msra.mxu0 0.0
        %962 = vmatpush.xpose.msra.mxu0 0.0
        %963 = vmatpush.xpose.msra.mxu0 0.0
        %964 = vmatpush.xpose.msra.mxu0 0.0
        %965 = vmatpush.xpose.msra.mxu0 0.0
        %966 = vmatpush.xpose.msra.mxu0 0.0
        %967 = vmatpush.xpose.msra.mxu0 0.0
        %968 = vmatpush.xpose.msra.mxu0 0.0
        %969 = vmatpush.xpose.msra.mxu0 0.0
        %970 = vmatpush.xpose.msra.mxu0 0.0
        %971 = vmatpush.xpose.msra.mxu0 0.0
        %972 = vmatpush.xpose.msra.mxu0 0.0
        %973 = vmatpush.xpose.msra.mxu0 %v957
        %974 = vmatpush.xpose.msra.mxu0 %v955
        %975 = vmatmul.f32.gmra.mxu0 %v951
        %v976 = vpop.f32.mrf.mxu0
        %v977 = vadd.f32 0.0, %v976
        %978 = vmatmul.f32.gmra.mxu0 %v953
        %v979 = vpop.f32.mrf.mxu0
        %v980 = vadd.f32 0.0, %v979
        %981 = vdwg.mxu0
        %v982 = vmul.f32 %v977, 0.17677669
        %v983 = vmul.f32 %v980, 0.17677669
        %v984 = vsel %vm704, %v982, -1e+30
        %v985 = vsel %vm705, %v983, -1e+30
        %v986 = vsel %vm886, %v984, -inf
        %987 = vmax.xlane.f32.xlu0 %v986
        %v988 = vpop.xlane.xlu0 %987
        %v989 = vsel %vm890, %v985, -inf
        %990 = vmax.xlane.f32.xlu0 %v989
        %v991 = vpop.xlane.xlu0 %990
        %v992 = vsub.f32 %v984, %v988
        %v993 = vsub.f32 %v985, %v991
        %v994 = vmul.f32 %v992, 1.442695
        %v995 = vpow.pop %v994
        %v996 = vmul.f32 %v993, 1.442695
        %v997 = vpow.pop %v996
        %v998 = vsel %vm886, %v995, 0.0
        %999 = vadd.xlane.f32.xlu0 %v998
        %v1000 = vpop.xlane.xlu0 %999
        %v1001 = vsel %vm890, %v997, 0.0
        %1002 = vadd.xlane.f32.xlu0 %v1001
        %v1003 = vpop.xlane.xlu0 %1002
        %1005 = vrot.lane.b32.xlu0 %v831, 96
        %v1006 = vpop.permute.xlu0 %1005
        %1007 = vrot.lane.b32.xlu0 %v834, 96
        %v1008 = vpop.permute.xlu0 %1007
        %v1011 = vsel %vm886, %v995, 0
        %v1014 = vsel %vm886, %v997, 0
        %v1016 = vsel %vm912, %v1008, 0
        %1018 = vmatpush.msra.mxu0 0.0
        %1019 = vmatpush.msra.mxu0 0.0
        %1020 = vmatpush.msra.mxu0 0.0
        %1021 = vmatpush.msra.mxu0 0.0
        %1022 = vmatpush.msra.mxu0 0.0
        %1023 = vmatpush.msra.mxu0 0.0
        %1024 = vmatpush.msra.mxu0 0.0
        %1025 = vmatpush.msra.mxu0 0.0
        %1026 = vmatpush.msra.mxu0 0.0
        %1027 = vmatpush.msra.mxu0 0.0
        %1028 = vmatpush.msra.mxu0 0.0
        %1029 = vmatpush.msra.mxu0 0.0
        %1030 = vmatpush.msra.mxu0 0.0
        %1031 = vmatpush.msra.mxu0 0.0
        %1032 = vmatpush.msra.mxu0 %v1016
        %1033 = vmatpush.msra.mxu0 %v1006
        %1034 = vmatmul.f32.gmra.mxu0 %v1011
        %v1035 = vpop.f32.mrf.mxu0
        %v1036 = vadd.f32 0.0, %v1035
        %1037 = vmatmul.f32.gmra.mxu0 %v1014
        %v1038 = vpop.f32.mrf.mxu0
        %v1039 = vadd.f32 0.0, %v1038
        %1040 = vdwg.mxu0
        %v1041 = vrcp.pop %v1000
        %v1042 = vrcp.pop %v1003
        %v1043 = vmul.f32 %v1036, %v1041
        %v1044 = vmul.f32 %v1039, %v1042
        %v1046 = vsel %vm850, %v1043, 0
        %v1049 = vsel %vm850, %v1044, 0
        %1051 = vmatpush.msra.mxu0 0.0
        %1052 = vmatpush.msra.mxu0 0.0
        %1053 = vmatpush.msra.mxu0 0.0
        %1054 = vmatpush.msra.mxu0 0.0
        %1055 = vmatpush.msra.mxu0 0.0
        %1056 = vmatpush.msra.mxu0 0.0
        %1057 = vmatpush.msra.mxu0 0.0
        %1058 = vmatpush.msra.mxu0 0.0
        %1059 = vmatpush.msra.mxu0 0.0
        %1060 = vmatpush.msra.mxu0 0.0
        %1061 = vmatpush.msra.mxu0 0.0
        %1062 = vmatpush.msra.mxu0 0.0
        %1063 = vmatpush.msra.mxu0 %v843
        %1064 = vmatpush.msra.mxu0 %v842
        %1065 = vmatpush.msra.mxu0 %v841
        %1066 = vmatpush.msra.mxu0 %v840
        %1067 = vmatmul.f32.gmra.mxu0 %v1046
        %v1068 = vpop.f32.mrf.mxu0
        %v1069 = vadd.f32 0.0, %v1068
        %1070 = vmatmul.f32.gmra.mxu0 %v1049
        %v1071 = vpop.f32.mrf.mxu0
        %v1072 = vadd.f32 0.0, %v1071
        %1073 = vdwg.mxu0
        %v1075 = vsel %vm850, %v941, 0
        %v1078 = vsel %vm850, %v942, 0
        %1080 = vmatpush.msra.mxu0 0.0
        %1081 = vmatpush.msra.mxu0 0.0
        %1082 = vmatpush.msra.mxu0 0.0
        %1083 = vmatpush.msra.mxu0 0.0
        %1084 = vmatpush.msra.mxu0 0.0
        %1085 = vmatpush.msra.mxu0 0.0
        %1086 = vmatpush.msra.mxu0 0.0
        %1087 = vmatpush.msra.mxu0 0.0
        %1088 = vmatpush.msra.mxu0 0.0
        %1089 = vmatpush.msra.mxu0 0.0
        %1090 = vmatpush.msra.mxu0 0.0
        %1091 = vmatpush.msra.mxu0 0.0
        %1092 = vmatpush.msra.mxu0 %v839
        %1093 = vmatpush.msra.mxu0 %v838
        %1094 = vmatpush.msra.mxu0 %v837
        %1095 = vmatpush.msra.mxu0 %v836
        %1096 = vmatmul.f32.gmra.mxu0 %v1075
        %v1097 = vpop.f32.mrf.mxu0
        %v1098 = vadd.f32 %v1069, %v1097
        %1099 = vmatmul.f32.gmra.mxu0 %v1078
        %v1100 = vpop.f32.mrf.mxu0
        %v1101 = vadd.f32 %v1072, %v1100
        %1102 = vdwg.mxu0
        %v1103 = vadd.f32 %v697, %v1098
        %v1104 = vadd.f32 %v698, %v1101
        %v1105 = vld [vmem:[%s9] sm:$0x1]
        %v1107 = vperm.slane %v1105, 0
        %v1109 = vadd.f32 %v1103, %v1107
        %v1110 = vadd.f32 %v1104, %v1107
        %v1111 = vld [vmem:[%s10] sm:$0x1]
        %v1112 = vld [vmem:[%s11] sm:$0x1]
        %v1113 = vsel %vm632, %v1109, 0.0
        %1114 = vadd.xlane.f32.xlu0 %v1113
        %v1115 = vpop.xlane.xlu0 %1114
        %v1116 = vsel %vm636, %v1110, 0.0
        %1117 = vadd.xlane.f32.xlu0 %v1116
        %v1118 = vpop.xlane.xlu0 %1117
        %v1119 = vmul.f32 %v1115, %v646
        %v1120 = vmul.f32 %v1118, %v646
        %v1121 = vsub.f32 %v1109, %v1119
        %v1122 = vsub.f32 %v1110, %v1120
        %v1123 = vmul.f32 %v1121, %v1121
        %v1124 = vmul.f32 %v1122, %v1122
        %v1125 = vsel %vm632, %v1123, 0.0
        %1126 = vadd.xlane.f32.xlu0 %v1125
        %v1127 = vpop.xlane.xlu0 %1126
        %v1128 = vsel %vm636, %v1124, 0.0
        %1129 = vadd.xlane.f32.xlu0 %v1128
        %v1130 = vpop.xlane.xlu0 %1129
        %v1131 = vmul.f32 %v1127, %v646
        %v1132 = vmul.f32 %v1130, %v646
        %v1133 = vadd.f32 %v1131, 1e-05
        %v1134 = vadd.f32 %v1132, 1e-05
        %v1135 = vrsqrt.pop %v1133
        %v1136 = vmul.f32 %v1135, %v1133
        %v1137 = vmul.f32 %v1136, %v1135
        %v1138 = vmul.f32 0.5, %v1137
        %v1139 = vsub.f32 1.5, %v1138
        %v1140 = vmul.f32 %v1135, %v1139
        %vm1141 = vweird.f32 %v1133
        %vm1142 = vweird.f32 %v1135
        %vm1143 = vmor %vm1141, %vm1142
        %v1144 = vsel %vm1143, %v1135, %v1140
        %v1145 = vrsqrt.pop %v1134
        %v1146 = vmul.f32 %v1145, %v1134
        %v1147 = vmul.f32 %v1146, %v1145
        %v1148 = vmul.f32 0.5, %v1147
        %v1149 = vsub.f32 1.5, %v1148
        %v1150 = vmul.f32 %v1145, %v1149
        %vm1151 = vweird.f32 %v1134
        %vm1152 = vweird.f32 %v1145
        %vm1153 = vmor %vm1151, %vm1152
        %v1154 = vsel %vm1153, %v1145, %v1150
        %v1156 = vperm.slane %v1111, 0
        %v1158 = vmul.f32 %v1144, %v1156
        %v1159 = vmul.f32 %v1154, %v1156
        %v1160 = vmul.f32 %v1121, %v1158
        %v1161 = vmul.f32 %v1122, %v1159
        %v1163 = vperm.slane %v1112, 0
        %v1165 = vadd.f32 %v1160, %v1163
        %v1166 = vadd.f32 %v1161, %v1163
        %v1167 = vld [vmem:[%s12] sm:$0xff]
        %v1168 = vld [vmem:[%s12 + $0x8] sm:$0xff]
        %v1169 = vld [vmem:[%s12 + $0x10] sm:$0xff]
        %v1170 = vld [vmem:[%s12 + $0x18] sm:$0xff]
        %v1171 = vld [vmem:[%s12 + $0x20] sm:$0xff]
        %v1172 = vld [vmem:[%s12 + $0x28] sm:$0xff]
        %v1173 = vld [vmem:[%s12 + $0x30] sm:$0xff]
        %v1174 = vld [vmem:[%s12 + $0x38] sm:$0xff]
        %v1175 = vld [vmem:[%s12 + $0x40] sm:$0xff]
        %v1176 = vld [vmem:[%s12 + $0x48] sm:$0xff]
        %v1177 = vld [vmem:[%s12 + $0x50] sm:$0xff]
        %v1178 = vld [vmem:[%s12 + $0x58] sm:$0xff]
        %v1179 = vld [vmem:[%s12 + $0x60] sm:$0xff]
        %v1180 = vld [vmem:[%s12 + $0x68] sm:$0xff]
        %v1181 = vld [vmem:[%s12 + $0x70] sm:$0xff]
        %v1182 = vld [vmem:[%s12 + $0x78] sm:$0xff]
        %v1183 = vld [vmem:[%s13] sm:$0x3]
        %v1185 = vperm.slane %v1183, 0
        %v1186 = vperm.slane %v1183, 1
        %v1190 = vsel %vm632, %v1165, 0
        %v1193 = vsel %vm632, %v1166, 0
        %1195 = vmatpush.msra.mxu0 0.0
        %1196 = vmatpush.msra.mxu0 0.0
        %1197 = vmatpush.msra.mxu0 0.0
        %1198 = vmatpush.msra.mxu0 0.0
        %1199 = vmatpush.msra.mxu0 0.0
        %1200 = vmatpush.msra.mxu0 0.0
        %1201 = vmatpush.msra.mxu0 0.0
        %1202 = vmatpush.msra.mxu0 0.0
        %1203 = vmatpush.msra.mxu0 %v1181
        %1204 = vmatpush.msra.mxu0 %v1179
        %1205 = vmatpush.msra.mxu0 %v1177
        %1206 = vmatpush.msra.mxu0 %v1175
        %1207 = vmatpush.msra.mxu0 %v1173
        %1208 = vmatpush.msra.mxu0 %v1171
        %1209 = vmatpush.msra.mxu0 %v1169
        %1210 = vmatpush.msra.mxu0 %v1167
        %1211 = vmatmul.f32.gmra.mxu0 %v1190
        %v1212 = vpop.f32.mrf.mxu0
        %v1213 = vadd.f32 %v1185, %v1212
        %1214 = vmatmul.f32.gmra.mxu0 %v1193
        %v1215 = vpop.f32.mrf.mxu0
        %v1216 = vadd.f32 %v1185, %v1215
        %1217 = vdwg.mxu0
        %1218 = vmatpush.msra.mxu0 0.0
        %1219 = vmatpush.msra.mxu0 0.0
        %1220 = vmatpush.msra.mxu0 0.0
        %1221 = vmatpush.msra.mxu0 0.0
        %1222 = vmatpush.msra.mxu0 0.0
        %1223 = vmatpush.msra.mxu0 0.0
        %1224 = vmatpush.msra.mxu0 0.0
        %1225 = vmatpush.msra.mxu0 0.0
        %1226 = vmatpush.msra.mxu0 %v1182
        %1227 = vmatpush.msra.mxu0 %v1180
        %1228 = vmatpush.msra.mxu0 %v1178
        %1229 = vmatpush.msra.mxu0 %v1176
        %1230 = vmatpush.msra.mxu0 %v1174
        %1231 = vmatpush.msra.mxu0 %v1172
        %1232 = vmatpush.msra.mxu0 %v1170
        %1233 = vmatpush.msra.mxu0 %v1168
        %1234 = vmatmul.f32.gmra.mxu0 %v1190
        %v1235 = vpop.f32.mrf.mxu0
        %v1236 = vadd.f32 %v1186, %v1235
        %1237 = vmatmul.f32.gmra.mxu0 %v1193
        %v1238 = vpop.f32.mrf.mxu0
        %v1239 = vadd.f32 %v1186, %v1238
        %1240 = vdwg.mxu0
        %v1241 = vsub.f32 0.0, %v1213
        %v1242 = vsub.f32 0.0, %v1236
        %v1243 = vsub.f32 0.0, %v1216
        %v1244 = vsub.f32 0.0, %v1239
        %v1245 = vxor.u32 %v1241, 2147483648
        %v1246 = vxor.u32 %v1242, 2147483648
        %v1247 = vxor.u32 %v1243, 2147483648
        %v1248 = vxor.u32 %v1244, 2147483648
        %v1249 = vmul.f32 %v1245, 1.442695
        %v1250 = vpow.pop %v1249
        %v1251 = vmul.f32 %v1246, 1.442695
        %v1252 = vpow.pop %v1251
        %v1253 = vmul.f32 %v1247, 1.442695
        %v1254 = vpow.pop %v1253
        %v1255 = vmul.f32 %v1248, 1.442695
        %v1256 = vpow.pop %v1255
        %v1257 = vadd.f32 %v1250, 1.0
        %v1258 = vadd.f32 %v1252, 1.0
        %v1259 = vadd.f32 %v1254, 1.0
        %v1260 = vadd.f32 %v1256, 1.0
        %v1261 = vrcp.pop %v1257
        %v1262 = vmul.f32 %v1257, %v1261
        %v1263 = vsub.f32 1.0, %v1262
        %v1264 = vmul.f32 %v1261, %v1263
        %v1265 = vadd.f32 %v1261, %v1264
        %vm1266 = vweird.f32 %v1257
        %vm1267 = vweird.f32 %v1261
        %vm1268 = vmor %vm1266, %vm1267
        %v1269 = vsel %vm1268, %v1261, %v1265
        %v1270 = vand.u32 2147483647, %v1257
        %vm1271 = vcmp.eq.f32.partialorder %v1270, 8.507059e+37
        %v1272 = vand.u32 %v1257, 2147483648
        %v1273 = vor.u32 1.1754944e-38, %v1272
        %v1274 = vsel %vm1271, %v1273, %v1269
        %v1275 = vmul.f32 1.0, %v1274
        %v1276 = vrcp.pop %v1258
        %v1277 = vmul.f32 %v1258, %v1276
        %v1278 = vsub.f32 1.0, %v1277
        %v1279 = vmul.f32 %v1276, %v1278
        %v1280 = vadd.f32 %v1276, %v1279
        %vm1281 = vweird.f32 %v1258
        %vm1282 = vweird.f32 %v1276
        %vm1283 = vmor %vm1281, %vm1282
        %v1284 = vsel %vm1283, %v1276, %v1280
        %v1285 = vand.u32 2147483647, %v1258
        %vm1286 = vcmp.eq.f32.partialorder %v1285, 8.507059e+37
        %v1287 = vand.u32 %v1258, 2147483648
        %v1288 = vor.u32 1.1754944e-38, %v1287
        %v1289 = vsel %vm1286, %v1288, %v1284
        %v1290 = vmul.f32 1.0, %v1289
        %v1291 = vrcp.pop %v1259
        %v1292 = vmul.f32 %v1259, %v1291
        %v1293 = vsub.f32 1.0, %v1292
        %v1294 = vmul.f32 %v1291, %v1293
        %v1295 = vadd.f32 %v1291, %v1294
        %vm1296 = vweird.f32 %v1259
        %vm1297 = vweird.f32 %v1291
        %vm1298 = vmor %vm1296, %vm1297
        %v1299 = vsel %vm1298, %v1291, %v1295
        %v1300 = vand.u32 2147483647, %v1259
        %vm1301 = vcmp.eq.f32.partialorder %v1300, 8.507059e+37
        %v1302 = vand.u32 %v1259, 2147483648
        %v1303 = vor.u32 1.1754944e-38, %v1302
        %v1304 = vsel %vm1301, %v1303, %v1299
        %v1305 = vmul.f32 1.0, %v1304
        %v1306 = vrcp.pop %v1260
        %v1307 = vmul.f32 %v1260, %v1306
        %v1308 = vsub.f32 1.0, %v1307
        %v1309 = vmul.f32 %v1306, %v1308
        %v1310 = vadd.f32 %v1306, %v1309
        %vm1311 = vweird.f32 %v1260
        %vm1312 = vweird.f32 %v1306
        %vm1313 = vmor %vm1311, %vm1312
        %v1314 = vsel %vm1313, %v1306, %v1310
        %v1315 = vand.u32 2147483647, %v1260
        %vm1316 = vcmp.eq.f32.partialorder %v1315, 8.507059e+37
        %v1317 = vand.u32 %v1260, 2147483648
        %v1318 = vor.u32 1.1754944e-38, %v1317
        %v1319 = vsel %vm1316, %v1318, %v1314
        %v1320 = vmul.f32 1.0, %v1319
        %v1321 = vmul.f32 %v1275, %v1275
        %v1322 = vmul.f32 %v1290, %v1290
        %v1323 = vmul.f32 %v1305, %v1305
        %v1324 = vmul.f32 %v1320, %v1320
        %v1325 = vsub.f32 1.0, %v1321
        %v1326 = vsub.f32 1.0, %v1322
        %v1327 = vsub.f32 1.0, %v1323
        %v1328 = vsub.f32 1.0, %v1324
        %v1329 = vmul.f32 %v1213, %v1325
        %v1330 = vmul.f32 %v1236, %v1326
        %v1331 = vmul.f32 %v1216, %v1327
        %v1332 = vmul.f32 %v1239, %v1328
        %v1333 = vadd.f32 %v1321, 1.0
        %v1334 = vadd.f32 %v1322, 1.0
        %v1335 = vadd.f32 %v1323, 1.0
        %v1336 = vadd.f32 %v1324, 1.0
        %v1337 = vrcp.pop %v1333
        %v1338 = vmul.f32 %v1333, %v1337
        %v1339 = vsub.f32 1.0, %v1338
        %v1340 = vmul.f32 %v1337, %v1339
        %v1341 = vadd.f32 %v1337, %v1340
        %vm1342 = vweird.f32 %v1333
        %vm1343 = vweird.f32 %v1337
        %vm1344 = vmor %vm1342, %vm1343
        %v1345 = vsel %vm1344, %v1337, %v1341
        %v1346 = vand.u32 2147483647, %v1333
        %vm1347 = vcmp.eq.f32.partialorder %v1346, 8.507059e+37
        %v1348 = vand.u32 %v1333, 2147483648
        %v1349 = vor.u32 1.1754944e-38, %v1348
        %v1350 = vsel %vm1347, %v1349, %v1345
        %v1351 = vmul.f32 %v1329, %v1350
        %v1352 = vrcp.pop %v1334
        %v1353 = vmul.f32 %v1334, %v1352
        %v1354 = vsub.f32 1.0, %v1353
        %v1355 = vmul.f32 %v1352, %v1354
        %v1356 = vadd.f32 %v1352, %v1355
        %vm1357 = vweird.f32 %v1334
        %vm1358 = vweird.f32 %v1352
        %vm1359 = vmor %vm1357, %vm1358
        %v1360 = vsel %vm1359, %v1352, %v1356
        %v1361 = vand.u32 2147483647, %v1334
        %vm1362 = vcmp.eq.f32.partialorder %v1361, 8.507059e+37
        %v1363 = vand.u32 %v1334, 2147483648
        %v1364 = vor.u32 1.1754944e-38, %v1363
        %v1365 = vsel %vm1362, %v1364, %v1360
        %v1366 = vmul.f32 %v1330, %v1365
        %v1367 = vrcp.pop %v1335
        %v1368 = vmul.f32 %v1335, %v1367
        %v1369 = vsub.f32 1.0, %v1368
        %v1370 = vmul.f32 %v1367, %v1369
        %v1371 = vadd.f32 %v1367, %v1370
        %vm1372 = vweird.f32 %v1335
        %vm1373 = vweird.f32 %v1367
        %vm1374 = vmor %vm1372, %vm1373
        %v1375 = vsel %vm1374, %v1367, %v1371
        %v1376 = vand.u32 2147483647, %v1335
        %vm1377 = vcmp.eq.f32.partialorder %v1376, 8.507059e+37
        %v1378 = vand.u32 %v1335, 2147483648
        %v1379 = vor.u32 1.1754944e-38, %v1378
        %v1380 = vsel %vm1377, %v1379, %v1375
        %v1381 = vmul.f32 %v1331, %v1380
        %v1382 = vrcp.pop %v1336
        %v1383 = vmul.f32 %v1336, %v1382
        %v1384 = vsub.f32 1.0, %v1383
        %v1385 = vmul.f32 %v1382, %v1384
        %v1386 = vadd.f32 %v1382, %v1385
        %vm1387 = vweird.f32 %v1336
        %vm1388 = vweird.f32 %v1382
        %vm1389 = vmor %vm1387, %vm1388
        %v1390 = vsel %vm1389, %v1382, %v1386
        %v1391 = vand.u32 2147483647, %v1336
        %vm1392 = vcmp.eq.f32.partialorder %v1391, 8.507059e+37
        %v1393 = vand.u32 %v1336, 2147483648
        %v1394 = vor.u32 1.1754944e-38, %v1393
        %v1395 = vsel %vm1392, %v1394, %v1390
        %v1396 = vmul.f32 %v1332, %v1395
        %v1397 = vld [vmem:[%s14] sm:$0xff]
        %v1398 = vld [vmem:[%s14 + $0x8] sm:$0xff]
        %v1399 = vld [vmem:[%s14 + $0x10] sm:$0xff]
        %v1400 = vld [vmem:[%s14 + $0x18] sm:$0xff]
        %v1401 = vld [vmem:[%s14 + $0x20] sm:$0xff]
        %v1402 = vld [vmem:[%s14 + $0x28] sm:$0xff]
        %v1403 = vld [vmem:[%s14 + $0x30] sm:$0xff]
        %v1404 = vld [vmem:[%s14 + $0x38] sm:$0xff]
        %v1405 = vld [vmem:[%s14 + $0x40] sm:$0xff]
        %v1406 = vld [vmem:[%s14 + $0x48] sm:$0xff]
        %v1407 = vld [vmem:[%s14 + $0x50] sm:$0xff]
        %v1408 = vld [vmem:[%s14 + $0x58] sm:$0xff]
        %v1409 = vld [vmem:[%s14 + $0x60] sm:$0xff]
        %v1410 = vld [vmem:[%s14 + $0x68] sm:$0xff]
        %v1411 = vld [vmem:[%s14 + $0x70] sm:$0xff]
        %v1412 = vld [vmem:[%s14 + $0x78] sm:$0xff]
        %v1413 = vld [vmem:[%s14 + $0x80] sm:$0xff]
        %v1414 = vld [vmem:[%s14 + $0x88] sm:$0xff]
        %v1415 = vld [vmem:[%s14 + $0x90] sm:$0xff]
        %v1416 = vld [vmem:[%s14 + $0x98] sm:$0xff]
        %v1417 = vld [vmem:[%s14 + $0xa0] sm:$0xff]
        %v1418 = vld [vmem:[%s14 + $0xa8] sm:$0xff]
        %v1419 = vld [vmem:[%s14 + $0xb0] sm:$0xff]
        %v1420 = vld [vmem:[%s14 + $0xb8] sm:$0xff]
        %v1421 = vld [vmem:[%s14 + $0xc0] sm:$0xff]
        %v1422 = vld [vmem:[%s14 + $0xc8] sm:$0xff]
        %v1423 = vld [vmem:[%s14 + $0xd0] sm:$0xff]
        %v1424 = vld [vmem:[%s14 + $0xd8] sm:$0xff]
        %v1425 = vld [vmem:[%s14 + $0xe0] sm:$0xff]
        %v1426 = vld [vmem:[%s14 + $0xe8] sm:$0xff]
        %v1427 = vld [vmem:[%s14 + $0xf0] sm:$0xff]
        %v1428 = vld [vmem:[%s14 + $0xf8] sm:$0xff]
        %1429 = vmatpush.msra.mxu0 %v1412
        %1430 = vmatpush.msra.mxu0 %v1411
        %1431 = vmatpush.msra.mxu0 %v1410
        %1432 = vmatpush.msra.mxu0 %v1409
        %1433 = vmatpush.msra.mxu0 %v1408
        %1434 = vmatpush.msra.mxu0 %v1407
        %1435 = vmatpush.msra.mxu0 %v1406
        %1436 = vmatpush.msra.mxu0 %v1405
        %1437 = vmatpush.msra.mxu0 %v1404
        %1438 = vmatpush.msra.mxu0 %v1403
        %1439 = vmatpush.msra.mxu0 %v1402
        %1440 = vmatpush.msra.mxu0 %v1401
        %1441 = vmatpush.msra.mxu0 %v1400
        %1442 = vmatpush.msra.mxu0 %v1399
        %1443 = vmatpush.msra.mxu0 %v1398
        %1444 = vmatpush.msra.mxu0 %v1397
        %1445 = vmatmul.f32.gmra.mxu0 %v1351
        %v1446 = vpop.f32.mrf.mxu0
        %v1447 = vadd.f32 0.0, %v1446
        %1448 = vmatmul.f32.gmra.mxu0 %v1381
        %v1449 = vpop.f32.mrf.mxu0
        %v1450 = vadd.f32 0.0, %v1449
        %1451 = vdwg.mxu0
        %1452 = vmatpush.msra.mxu0 %v1428
        %1453 = vmatpush.msra.mxu0 %v1427
        %1454 = vmatpush.msra.mxu0 %v1426
        %1455 = vmatpush.msra.mxu0 %v1425
        %1456 = vmatpush.msra.mxu0 %v1424
        %1457 = vmatpush.msra.mxu0 %v1423
        %1458 = vmatpush.msra.mxu0 %v1422
        %1459 = vmatpush.msra.mxu0 %v1421
        %1460 = vmatpush.msra.mxu0 %v1420
        %1461 = vmatpush.msra.mxu0 %v1419
        %1462 = vmatpush.msra.mxu0 %v1418
        %1463 = vmatpush.msra.mxu0 %v1417
        %1464 = vmatpush.msra.mxu0 %v1416
        %1465 = vmatpush.msra.mxu0 %v1415
        %1466 = vmatpush.msra.mxu0 %v1414
        %1467 = vmatpush.msra.mxu0 %v1413
        %1468 = vmatmul.f32.gmra.mxu0 %v1366
        %v1469 = vpop.f32.mrf.mxu0
        %v1470 = vadd.f32 %v1447, %v1469
        %1471 = vmatmul.f32.gmra.mxu0 %v1396
        %v1472 = vpop.f32.mrf.mxu0
        %v1473 = vadd.f32 %v1450, %v1472
        %1474 = vdwg.mxu0
        %v1475 = vadd.f32 %v1109, %v1470
        %v1476 = vadd.f32 %v1110, %v1473
        %v1477 = vld [vmem:[%s15] sm:$0x1]
        %v1479 = vperm.slane %v1477, 0
        %v1481 = vadd.f32 %v1475, %v1479
        %v1482 = vadd.f32 %v1476, %v1479
        %s1483 = scalar_lea.vmem %s4, 1
        %v1484 = vld [vmem:[%s1483] sm:$0x1]
        %s1485 = scalar_lea.vmem %s5, 1
        %v1486 = vld [vmem:[%s1485] sm:$0x1]
        %v1487 = vsel %vm632, %v1481, 0.0
        %1488 = vadd.xlane.f32.xlu0 %v1487
        %v1489 = vpop.xlane.xlu0 %1488
        %v1490 = vsel %vm636, %v1482, 0.0
        %1491 = vadd.xlane.f32.xlu0 %v1490
        %v1492 = vpop.xlane.xlu0 %1491
        %v1493 = vmul.f32 %v1489, %v646
        %v1494 = vmul.f32 %v1492, %v646
        %v1495 = vsub.f32 %v1481, %v1493
        %v1496 = vsub.f32 %v1482, %v1494
        %v1497 = vmul.f32 %v1495, %v1495
        %v1498 = vmul.f32 %v1496, %v1496
        %v1499 = vsel %vm632, %v1497, 0.0
        %1500 = vadd.xlane.f32.xlu0 %v1499
        %v1501 = vpop.xlane.xlu0 %1500
        %v1502 = vsel %vm636, %v1498, 0.0
        %1503 = vadd.xlane.f32.xlu0 %v1502
        %v1504 = vpop.xlane.xlu0 %1503
        %v1505 = vmul.f32 %v1501, %v646
        %v1506 = vmul.f32 %v1504, %v646
        %v1507 = vadd.f32 %v1505, 1e-05
        %v1508 = vadd.f32 %v1506, 1e-05
        %v1509 = vrsqrt.pop %v1507
        %v1510 = vmul.f32 %v1509, %v1507
        %v1511 = vmul.f32 %v1510, %v1509
        %v1512 = vmul.f32 0.5, %v1511
        %v1513 = vsub.f32 1.5, %v1512
        %v1514 = vmul.f32 %v1509, %v1513
        %vm1515 = vweird.f32 %v1507
        %vm1516 = vweird.f32 %v1509
        %vm1517 = vmor %vm1515, %vm1516
        %v1518 = vsel %vm1517, %v1509, %v1514
        %v1519 = vrsqrt.pop %v1508
        %v1520 = vmul.f32 %v1519, %v1508
        %v1521 = vmul.f32 %v1520, %v1519
        %v1522 = vmul.f32 0.5, %v1521
        %v1523 = vsub.f32 1.5, %v1522
        %v1524 = vmul.f32 %v1519, %v1523
        %vm1525 = vweird.f32 %v1508
        %vm1526 = vweird.f32 %v1519
        %vm1527 = vmor %vm1525, %vm1526
        %v1528 = vsel %vm1527, %v1519, %v1524
        %v1530 = vperm.slane %v1484, 0
        %v1532 = vmul.f32 %v1518, %v1530
        %v1533 = vmul.f32 %v1528, %v1530
        %v1534 = vmul.f32 %v1495, %v1532
        %v1535 = vmul.f32 %v1496, %v1533
        %v1537 = vperm.slane %v1486, 0
        %v1539 = vadd.f32 %v1534, %v1537
        %v1540 = vadd.f32 %v1535, %v1537
        %s1541 = scalar_lea.vmem %s6, 128
        %v1542 = vld [vmem:[%s1541] sm:$0xff]
        %v1543 = vld [vmem:[%s1541 + $0x8] sm:$0xff]
        %v1544 = vld [vmem:[%s1541 + $0x10] sm:$0xff]
        %v1545 = vld [vmem:[%s1541 + $0x18] sm:$0xff]
        %v1546 = vld [vmem:[%s1541 + $0x20] sm:$0xff]
        %v1547 = vld [vmem:[%s1541 + $0x28] sm:$0xff]
        %v1548 = vld [vmem:[%s1541 + $0x30] sm:$0xff]
        %v1549 = vld [vmem:[%s1541 + $0x38] sm:$0xff]
        %v1550 = vld [vmem:[%s1541 + $0x40] sm:$0xff]
        %v1551 = vld [vmem:[%s1541 + $0x48] sm:$0xff]
        %v1552 = vld [vmem:[%s1541 + $0x50] sm:$0xff]
        %v1553 = vld [vmem:[%s1541 + $0x58] sm:$0xff]
        %v1554 = vld [vmem:[%s1541 + $0x60] sm:$0xff]
        %v1555 = vld [vmem:[%s1541 + $0x68] sm:$0xff]
        %v1556 = vld [vmem:[%s1541 + $0x70] sm:$0xff]
        %v1557 = vld [vmem:[%s1541 + $0x78] sm:$0xff]
        %s1558 = scalar_lea.vmem %s7, 2
        %v1559 = vld [vmem:[%s1558] sm:$0x3]
        %v1561 = vperm.slane %v1559, 0
        %v1562 = vperm.slane %v1559, 1
        %v1566 = vsel %vm632, %v1539, 0
        %v1569 = vsel %vm632, %v1540, 0
        %1571 = vmatpush.msra.mxu0 0.0
        %1572 = vmatpush.msra.mxu0 0.0
        %1573 = vmatpush.msra.mxu0 0.0
        %1574 = vmatpush.msra.mxu0 0.0
        %1575 = vmatpush.msra.mxu0 0.0
        %1576 = vmatpush.msra.mxu0 0.0
        %1577 = vmatpush.msra.mxu0 0.0
        %1578 = vmatpush.msra.mxu0 0.0
        %1579 = vmatpush.msra.mxu0 %v1556
        %1580 = vmatpush.msra.mxu0 %v1554
        %1581 = vmatpush.msra.mxu0 %v1552
        %1582 = vmatpush.msra.mxu0 %v1550
        %1583 = vmatpush.msra.mxu0 %v1548
        %1584 = vmatpush.msra.mxu0 %v1546
        %1585 = vmatpush.msra.mxu0 %v1544
        %1586 = vmatpush.msra.mxu0 %v1542
        %1587 = vmatmul.f32.gmra.mxu0 %v1566
        %v1588 = vpop.f32.mrf.mxu0
        %v1589 = vadd.f32 %v1561, %v1588
        %1590 = vmatmul.f32.gmra.mxu0 %v1569
        %v1591 = vpop.f32.mrf.mxu0
        %v1592 = vadd.f32 %v1561, %v1591
        %1593 = vdwg.mxu0
        %1594 = vmatpush.msra.mxu0 0.0
        %1595 = vmatpush.msra.mxu0 0.0
        %1596 = vmatpush.msra.mxu0 0.0
        %1597 = vmatpush.msra.mxu0 0.0
        %1598 = vmatpush.msra.mxu0 0.0
        %1599 = vmatpush.msra.mxu0 0.0
        %1600 = vmatpush.msra.mxu0 0.0
        %1601 = vmatpush.msra.mxu0 0.0
        %1602 = vmatpush.msra.mxu0 %v1557
        %1603 = vmatpush.msra.mxu0 %v1555
        %1604 = vmatpush.msra.mxu0 %v1553
        %1605 = vmatpush.msra.mxu0 %v1551
        %1606 = vmatpush.msra.mxu0 %v1549
        %1607 = vmatpush.msra.mxu0 %v1547
        %1608 = vmatpush.msra.mxu0 %v1545
        %1609 = vmatpush.msra.mxu0 %v1543
        %1610 = vmatmul.f32.gmra.mxu0 %v1566
        %v1611 = vpop.f32.mrf.mxu0
        %v1612 = vadd.f32 %v1562, %v1611
        %1613 = vmatmul.f32.gmra.mxu0 %v1569
        %v1614 = vpop.f32.mrf.mxu0
        %v1615 = vadd.f32 %v1562, %v1614
        %1616 = vdwg.mxu0
        %s1617 = scalar_lea.vmem %s8, 64
        %v1618 = vld [vmem:[%s1617] sm:$0xff]
        %v1619 = vld [vmem:[%s1617 + $0x8] sm:$0xff]
        %v1620 = vld [vmem:[%s1617 + $0x10] sm:$0xff]
        %v1621 = vld [vmem:[%s1617 + $0x18] sm:$0xff]
        %v1622 = vld [vmem:[%s1617 + $0x20] sm:$0xff]
        %v1623 = vld [vmem:[%s1617 + $0x28] sm:$0xff]
        %v1624 = vld [vmem:[%s1617 + $0x30] sm:$0xff]
        %v1625 = vld [vmem:[%s1617 + $0x38] sm:$0xff]
        %1628 = vrot.lane.b32.xlu0 %v1589, 64
        %v1629 = vpop.permute.xlu0 %1628
        %1630 = vrot.lane.b32.xlu0 %v1592, 64
        %v1631 = vpop.permute.xlu0 %1630
        %v1632 = vsel %vm850, %v1589, 0
        %v1634 = vsel %vm850, %v1592, 0
        %v1636 = vsel %vm850, %v1629, 0
        %v1638 = vsel %vm850, %v1631, 0
        %1640 = vmatpush.xpose.msra.mxu0 0.0
        %1641 = vmatpush.xpose.msra.mxu0 0.0
        %1642 = vmatpush.xpose.msra.mxu0 0.0
        %1643 = vmatpush.xpose.msra.mxu0 0.0
        %1644 = vmatpush.xpose.msra.mxu0 0.0
        %1645 = vmatpush.xpose.msra.mxu0 0.0
        %1646 = vmatpush.xpose.msra.mxu0 0.0
        %1647 = vmatpush.xpose.msra.mxu0 0.0
        %1648 = vmatpush.xpose.msra.mxu0 0.0
        %1649 = vmatpush.xpose.msra.mxu0 0.0
        %1650 = vmatpush.xpose.msra.mxu0 0.0
        %1651 = vmatpush.xpose.msra.mxu0 0.0
        %1652 = vmatpush.xpose.msra.mxu0 0.0
        %1653 = vmatpush.xpose.msra.mxu0 0.0
        %1654 = vmatpush.xpose.msra.mxu0 %v1638
        %1655 = vmatpush.xpose.msra.mxu0 %v1636
        %1656 = vmatmul.f32.gmra.mxu0 %v1632
        %v1657 = vpop.f32.mrf.mxu0
        %v1658 = vadd.f32 0.0, %v1657
        %1659 = vmatmul.f32.gmra.mxu0 %v1634
        %v1660 = vpop.f32.mrf.mxu0
        %v1661 = vadd.f32 0.0, %v1660
        %1662 = vdwg.mxu0
        %v1663 = vmul.f32 %v1658, 0.17677669
        %v1664 = vmul.f32 %v1661, 0.17677669
        %v1665 = vsel %vm704, %v1663, -1e+30
        %v1666 = vsel %vm705, %v1664, -1e+30
        %v1667 = vsel %vm886, %v1665, -inf
        %1668 = vmax.xlane.f32.xlu0 %v1667
        %v1669 = vpop.xlane.xlu0 %1668
        %v1670 = vsel %vm890, %v1666, -inf
        %1671 = vmax.xlane.f32.xlu0 %v1670
        %v1672 = vpop.xlane.xlu0 %1671
        %v1673 = vsub.f32 %v1665, %v1669
        %v1674 = vsub.f32 %v1666, %v1672
        %v1675 = vmul.f32 %v1673, 1.442695
        %v1676 = vpow.pop %v1675
        %v1677 = vmul.f32 %v1674, 1.442695
        %v1678 = vpow.pop %v1677
        %v1679 = vsel %vm886, %v1676, 0.0
        %1680 = vadd.xlane.f32.xlu0 %v1679
        %v1681 = vpop.xlane.xlu0 %1680
        %v1682 = vsel %vm890, %v1678, 0.0
        %1683 = vadd.xlane.f32.xlu0 %v1682
        %v1684 = vpop.xlane.xlu0 %1683
        %v1686 = vsel %vm886, %v1676, 0
        %v1689 = vsel %vm886, %v1678, 0
        %v1692 = vsel %vm912, %v1615, 0
        %1694 = vmatpush.msra.mxu0 0.0
        %1695 = vmatpush.msra.mxu0 0.0
        %1696 = vmatpush.msra.mxu0 0.0
        %1697 = vmatpush.msra.mxu0 0.0
        %1698 = vmatpush.msra.mxu0 0.0
        %1699 = vmatpush.msra.mxu0 0.0
        %1700 = vmatpush.msra.mxu0 0.0
        %1701 = vmatpush.msra.mxu0 0.0
        %1702 = vmatpush.msra.mxu0 0.0
        %1703 = vmatpush.msra.mxu0 0.0
        %1704 = vmatpush.msra.mxu0 0.0
        %1705 = vmatpush.msra.mxu0 0.0
        %1706 = vmatpush.msra.mxu0 0.0
        %1707 = vmatpush.msra.mxu0 0.0
        %1708 = vmatpush.msra.mxu0 %v1692
        %1709 = vmatpush.msra.mxu0 %v1612
        %1710 = vmatmul.f32.gmra.mxu0 %v1686
        %v1711 = vpop.f32.mrf.mxu0
        %v1712 = vadd.f32 0.0, %v1711
        %1713 = vmatmul.f32.gmra.mxu0 %v1689
        %v1714 = vpop.f32.mrf.mxu0
        %v1715 = vadd.f32 0.0, %v1714
        %1716 = vdwg.mxu0
        %v1717 = vrcp.pop %v1681
        %v1718 = vrcp.pop %v1684
        %v1719 = vmul.f32 %v1712, %v1717
        %v1720 = vmul.f32 %v1715, %v1718
        %1721 = vrot.lane.b32.xlu0 %v1589, 96
        %v1722 = vpop.permute.xlu0 %1721
        %1723 = vrot.lane.b32.xlu0 %v1592, 96
        %v1724 = vpop.permute.xlu0 %1723
        %1725 = vrot.lane.b32.xlu0 %v1589, 32
        %v1726 = vpop.permute.xlu0 %1725
        %1727 = vrot.lane.b32.xlu0 %v1592, 32
        %v1728 = vpop.permute.xlu0 %1727
        %v1729 = vsel %vm850, %v1722, 0
        %v1731 = vsel %vm850, %v1724, 0
        %v1733 = vsel %vm850, %v1726, 0
        %v1735 = vsel %vm850, %v1728, 0
        %1737 = vmatpush.xpose.msra.mxu0 0.0
        %1738 = vmatpush.xpose.msra.mxu0 0.0
        %1739 = vmatpush.xpose.msra.mxu0 0.0
        %1740 = vmatpush.xpose.msra.mxu0 0.0
        %1741 = vmatpush.xpose.msra.mxu0 0.0
        %1742 = vmatpush.xpose.msra.mxu0 0.0
        %1743 = vmatpush.xpose.msra.mxu0 0.0
        %1744 = vmatpush.xpose.msra.mxu0 0.0
        %1745 = vmatpush.xpose.msra.mxu0 0.0
        %1746 = vmatpush.xpose.msra.mxu0 0.0
        %1747 = vmatpush.xpose.msra.mxu0 0.0
        %1748 = vmatpush.xpose.msra.mxu0 0.0
        %1749 = vmatpush.xpose.msra.mxu0 0.0
        %1750 = vmatpush.xpose.msra.mxu0 0.0
        %1751 = vmatpush.xpose.msra.mxu0 %v1735
        %1752 = vmatpush.xpose.msra.mxu0 %v1733
        %1753 = vmatmul.f32.gmra.mxu0 %v1729
        %v1754 = vpop.f32.mrf.mxu0
        %v1755 = vadd.f32 0.0, %v1754
        %1756 = vmatmul.f32.gmra.mxu0 %v1731
        %v1757 = vpop.f32.mrf.mxu0
        %v1758 = vadd.f32 0.0, %v1757
        %1759 = vdwg.mxu0
        %v1760 = vmul.f32 %v1755, 0.17677669
        %v1761 = vmul.f32 %v1758, 0.17677669
        %v1762 = vsel %vm704, %v1760, -1e+30
        %v1763 = vsel %vm705, %v1761, -1e+30
        %v1764 = vsel %vm886, %v1762, -inf
        %1765 = vmax.xlane.f32.xlu0 %v1764
        %v1766 = vpop.xlane.xlu0 %1765
        %v1767 = vsel %vm890, %v1763, -inf
        %1768 = vmax.xlane.f32.xlu0 %v1767
        %v1769 = vpop.xlane.xlu0 %1768
        %v1770 = vsub.f32 %v1762, %v1766
        %v1771 = vsub.f32 %v1763, %v1769
        %v1772 = vmul.f32 %v1770, 1.442695
        %v1773 = vpow.pop %v1772
        %v1774 = vmul.f32 %v1771, 1.442695
        %v1775 = vpow.pop %v1774
        %v1776 = vsel %vm886, %v1773, 0.0
        %1777 = vadd.xlane.f32.xlu0 %v1776
        %v1778 = vpop.xlane.xlu0 %1777
        %v1779 = vsel %vm890, %v1775, 0.0
        %1780 = vadd.xlane.f32.xlu0 %v1779
        %v1781 = vpop.xlane.xlu0 %1780
        %1783 = vrot.lane.b32.xlu0 %v1612, 96
        %v1784 = vpop.permute.xlu0 %1783
        %1785 = vrot.lane.b32.xlu0 %v1615, 96
        %v1786 = vpop.permute.xlu0 %1785
        %v1789 = vsel %vm886, %v1773, 0
        %v1792 = vsel %vm886, %v1775, 0
        %v1794 = vsel %vm912, %v1786, 0
        %1796 = vmatpush.msra.mxu0 0.0
        %1797 = vmatpush.msra.mxu0 0.0
        %1798 = vmatpush.msra.mxu0 0.0
        %1799 = vmatpush.msra.mxu0 0.0
        %1800 = vmatpush.msra.mxu0 0.0
        %1801 = vmatpush.msra.mxu0 0.0
        %1802 = vmatpush.msra.mxu0 0.0
        %1803 = vmatpush.msra.mxu0 0.0
        %1804 = vmatpush.msra.mxu0 0.0
        %1805 = vmatpush.msra.mxu0 0.0
        %1806 = vmatpush.msra.mxu0 0.0
        %1807 = vmatpush.msra.mxu0 0.0
        %1808 = vmatpush.msra.mxu0 0.0
        %1809 = vmatpush.msra.mxu0 0.0
        %1810 = vmatpush.msra.mxu0 %v1794
        %1811 = vmatpush.msra.mxu0 %v1784
        %1812 = vmatmul.f32.gmra.mxu0 %v1789
        %v1813 = vpop.f32.mrf.mxu0
        %v1814 = vadd.f32 0.0, %v1813
        %1815 = vmatmul.f32.gmra.mxu0 %v1792
        %v1816 = vpop.f32.mrf.mxu0
        %v1817 = vadd.f32 0.0, %v1816
        %1818 = vdwg.mxu0
        %v1819 = vrcp.pop %v1778
        %v1820 = vrcp.pop %v1781
        %v1821 = vmul.f32 %v1814, %v1819
        %v1822 = vmul.f32 %v1817, %v1820
        %v1824 = vsel %vm850, %v1821, 0
        %v1827 = vsel %vm850, %v1822, 0
        %1829 = vmatpush.msra.mxu0 0.0
        %1830 = vmatpush.msra.mxu0 0.0
        %1831 = vmatpush.msra.mxu0 0.0
        %1832 = vmatpush.msra.mxu0 0.0
        %1833 = vmatpush.msra.mxu0 0.0
        %1834 = vmatpush.msra.mxu0 0.0
        %1835 = vmatpush.msra.mxu0 0.0
        %1836 = vmatpush.msra.mxu0 0.0
        %1837 = vmatpush.msra.mxu0 0.0
        %1838 = vmatpush.msra.mxu0 0.0
        %1839 = vmatpush.msra.mxu0 0.0
        %1840 = vmatpush.msra.mxu0 0.0
        %1841 = vmatpush.msra.mxu0 %v1625
        %1842 = vmatpush.msra.mxu0 %v1624
        %1843 = vmatpush.msra.mxu0 %v1623
        %1844 = vmatpush.msra.mxu0 %v1622
        %1845 = vmatmul.f32.gmra.mxu0 %v1824
        %v1846 = vpop.f32.mrf.mxu0
        %v1847 = vadd.f32 0.0, %v1846
        %1848 = vmatmul.f32.gmra.mxu0 %v1827
        %v1849 = vpop.f32.mrf.mxu0
        %v1850 = vadd.f32 0.0, %v1849
        %1851 = vdwg.mxu0
        %v1853 = vsel %vm850, %v1719, 0
        %v1856 = vsel %vm850, %v1720, 0
        %1858 = vmatpush.msra.mxu0 0.0
        %1859 = vmatpush.msra.mxu0 0.0
        %1860 = vmatpush.msra.mxu0 0.0
        %1861 = vmatpush.msra.mxu0 0.0
        %1862 = vmatpush.msra.mxu0 0.0
        %1863 = vmatpush.msra.mxu0 0.0
        %1864 = vmatpush.msra.mxu0 0.0
        %1865 = vmatpush.msra.mxu0 0.0
        %1866 = vmatpush.msra.mxu0 0.0
        %1867 = vmatpush.msra.mxu0 0.0
        %1868 = vmatpush.msra.mxu0 0.0
        %1869 = vmatpush.msra.mxu0 0.0
        %1870 = vmatpush.msra.mxu0 %v1621
        %1871 = vmatpush.msra.mxu0 %v1620
        %1872 = vmatpush.msra.mxu0 %v1619
        %1873 = vmatpush.msra.mxu0 %v1618
        %1874 = vmatmul.f32.gmra.mxu0 %v1853
        %v1875 = vpop.f32.mrf.mxu0
        %v1876 = vadd.f32 %v1847, %v1875
        %1877 = vmatmul.f32.gmra.mxu0 %v1856
        %v1878 = vpop.f32.mrf.mxu0
        %v1879 = vadd.f32 %v1850, %v1878
        %1880 = vdwg.mxu0
        %v1881 = vadd.f32 %v1481, %v1876
        %v1882 = vadd.f32 %v1482, %v1879
        %s1883 = scalar_lea.vmem %s9, 1
        %v1884 = vld [vmem:[%s1883] sm:$0x1]
        %v1886 = vperm.slane %v1884, 0
        %v1888 = vadd.f32 %v1881, %v1886
        %v1889 = vadd.f32 %v1882, %v1886
        %s1890 = scalar_lea.vmem %s10, 1
        %v1891 = vld [vmem:[%s1890] sm:$0x1]
        %s1892 = scalar_lea.vmem %s11, 1
        %v1893 = vld [vmem:[%s1892] sm:$0x1]
        %v1894 = vsel %vm632, %v1888, 0.0
        %1895 = vadd.xlane.f32.xlu0 %v1894
        %v1896 = vpop.xlane.xlu0 %1895
        %v1897 = vsel %vm636, %v1889, 0.0
        %1898 = vadd.xlane.f32.xlu0 %v1897
        %v1899 = vpop.xlane.xlu0 %1898
        %v1900 = vmul.f32 %v1896, %v646
        %v1901 = vmul.f32 %v1899, %v646
        %v1902 = vsub.f32 %v1888, %v1900
        %v1903 = vsub.f32 %v1889, %v1901
        %v1904 = vmul.f32 %v1902, %v1902
        %v1905 = vmul.f32 %v1903, %v1903
        %v1906 = vsel %vm632, %v1904, 0.0
        %1907 = vadd.xlane.f32.xlu0 %v1906
        %v1908 = vpop.xlane.xlu0 %1907
        %v1909 = vsel %vm636, %v1905, 0.0
        %1910 = vadd.xlane.f32.xlu0 %v1909
        %v1911 = vpop.xlane.xlu0 %1910
        %v1912 = vmul.f32 %v1908, %v646
        %v1913 = vmul.f32 %v1911, %v646
        %v1914 = vadd.f32 %v1912, 1e-05
        %v1915 = vadd.f32 %v1913, 1e-05
        %v1916 = vrsqrt.pop %v1914
        %v1917 = vmul.f32 %v1916, %v1914
        %v1918 = vmul.f32 %v1917, %v1916
        %v1919 = vmul.f32 0.5, %v1918
        %v1920 = vsub.f32 1.5, %v1919
        %v1921 = vmul.f32 %v1916, %v1920
        %vm1922 = vweird.f32 %v1914
        %vm1923 = vweird.f32 %v1916
        %vm1924 = vmor %vm1922, %vm1923
        %v1925 = vsel %vm1924, %v1916, %v1921
        %v1926 = vrsqrt.pop %v1915
        %v1927 = vmul.f32 %v1926, %v1915
        %v1928 = vmul.f32 %v1927, %v1926
        %v1929 = vmul.f32 0.5, %v1928
        %v1930 = vsub.f32 1.5, %v1929
        %v1931 = vmul.f32 %v1926, %v1930
        %vm1932 = vweird.f32 %v1915
        %vm1933 = vweird.f32 %v1926
        %vm1934 = vmor %vm1932, %vm1933
        %v1935 = vsel %vm1934, %v1926, %v1931
        %v1937 = vperm.slane %v1891, 0
        %v1939 = vmul.f32 %v1925, %v1937
        %v1940 = vmul.f32 %v1935, %v1937
        %v1941 = vmul.f32 %v1902, %v1939
        %v1942 = vmul.f32 %v1903, %v1940
        %v1944 = vperm.slane %v1893, 0
        %v1946 = vadd.f32 %v1941, %v1944
        %v1947 = vadd.f32 %v1942, %v1944
        %s1948 = scalar_lea.vmem %s12, 128
        %v1949 = vld [vmem:[%s1948] sm:$0xff]
        %v1950 = vld [vmem:[%s1948 + $0x8] sm:$0xff]
        %v1951 = vld [vmem:[%s1948 + $0x10] sm:$0xff]
        %v1952 = vld [vmem:[%s1948 + $0x18] sm:$0xff]
        %v1953 = vld [vmem:[%s1948 + $0x20] sm:$0xff]
        %v1954 = vld [vmem:[%s1948 + $0x28] sm:$0xff]
        %v1955 = vld [vmem:[%s1948 + $0x30] sm:$0xff]
        %v1956 = vld [vmem:[%s1948 + $0x38] sm:$0xff]
        %v1957 = vld [vmem:[%s1948 + $0x40] sm:$0xff]
        %v1958 = vld [vmem:[%s1948 + $0x48] sm:$0xff]
        %v1959 = vld [vmem:[%s1948 + $0x50] sm:$0xff]
        %v1960 = vld [vmem:[%s1948 + $0x58] sm:$0xff]
        %v1961 = vld [vmem:[%s1948 + $0x60] sm:$0xff]
        %v1962 = vld [vmem:[%s1948 + $0x68] sm:$0xff]
        %v1963 = vld [vmem:[%s1948 + $0x70] sm:$0xff]
        %v1964 = vld [vmem:[%s1948 + $0x78] sm:$0xff]
        %s1965 = scalar_lea.vmem %s13, 2
        %v1966 = vld [vmem:[%s1965] sm:$0x3]
        %v1968 = vperm.slane %v1966, 0
        %v1969 = vperm.slane %v1966, 1
        %v1973 = vsel %vm632, %v1946, 0
        %v1976 = vsel %vm632, %v1947, 0
        %1978 = vmatpush.msra.mxu0 0.0
        %1979 = vmatpush.msra.mxu0 0.0
        %1980 = vmatpush.msra.mxu0 0.0
        %1981 = vmatpush.msra.mxu0 0.0
        %1982 = vmatpush.msra.mxu0 0.0
        %1983 = vmatpush.msra.mxu0 0.0
        %1984 = vmatpush.msra.mxu0 0.0
        %1985 = vmatpush.msra.mxu0 0.0
        %1986 = vmatpush.msra.mxu0 %v1963
        %1987 = vmatpush.msra.mxu0 %v1961
        %1988 = vmatpush.msra.mxu0 %v1959
        %1989 = vmatpush.msra.mxu0 %v1957
        %1990 = vmatpush.msra.mxu0 %v1955
        %1991 = vmatpush.msra.mxu0 %v1953
        %1992 = vmatpush.msra.mxu0 %v1951
        %1993 = vmatpush.msra.mxu0 %v1949
        %1994 = vmatmul.f32.gmra.mxu0 %v1973
        %v1995 = vpop.f32.mrf.mxu0
        %v1996 = vadd.f32 %v1968, %v1995
        %1997 = vmatmul.f32.gmra.mxu0 %v1976
        %v1998 = vpop.f32.mrf.mxu0
        %v1999 = vadd.f32 %v1968, %v1998
        %2000 = vdwg.mxu0
        %2001 = vmatpush.msra.mxu0 0.0
        %2002 = vmatpush.msra.mxu0 0.0
        %2003 = vmatpush.msra.mxu0 0.0
        %2004 = vmatpush.msra.mxu0 0.0
        %2005 = vmatpush.msra.mxu0 0.0
        %2006 = vmatpush.msra.mxu0 0.0
        %2007 = vmatpush.msra.mxu0 0.0
        %2008 = vmatpush.msra.mxu0 0.0
        %2009 = vmatpush.msra.mxu0 %v1964
        %2010 = vmatpush.msra.mxu0 %v1962
        %2011 = vmatpush.msra.mxu0 %v1960
        %2012 = vmatpush.msra.mxu0 %v1958
        %2013 = vmatpush.msra.mxu0 %v1956
        %2014 = vmatpush.msra.mxu0 %v1954
        %2015 = vmatpush.msra.mxu0 %v1952
        %2016 = vmatpush.msra.mxu0 %v1950
        %2017 = vmatmul.f32.gmra.mxu0 %v1973
        %v2018 = vpop.f32.mrf.mxu0
        %v2019 = vadd.f32 %v1969, %v2018
        %2020 = vmatmul.f32.gmra.mxu0 %v1976
        %v2021 = vpop.f32.mrf.mxu0
        %v2022 = vadd.f32 %v1969, %v2021
        %2023 = vdwg.mxu0
        %v2024 = vsub.f32 0.0, %v1996
        %v2025 = vsub.f32 0.0, %v2019
        %v2026 = vsub.f32 0.0, %v1999
        %v2027 = vsub.f32 0.0, %v2022
        %v2028 = vxor.u32 %v2024, 2147483648
        %v2029 = vxor.u32 %v2025, 2147483648
        %v2030 = vxor.u32 %v2026, 2147483648
        %v2031 = vxor.u32 %v2027, 2147483648
        %v2032 = vmul.f32 %v2028, 1.442695
        %v2033 = vpow.pop %v2032
        %v2034 = vmul.f32 %v2029, 1.442695
        %v2035 = vpow.pop %v2034
        %v2036 = vmul.f32 %v2030, 1.442695
        %v2037 = vpow.pop %v2036
        %v2038 = vmul.f32 %v2031, 1.442695
        %v2039 = vpow.pop %v2038
        %v2040 = vadd.f32 %v2033, 1.0
        %v2041 = vadd.f32 %v2035, 1.0
        %v2042 = vadd.f32 %v2037, 1.0
        %v2043 = vadd.f32 %v2039, 1.0
        %v2044 = vrcp.pop %v2040
        %v2045 = vmul.f32 %v2040, %v2044
        %v2046 = vsub.f32 1.0, %v2045
        %v2047 = vmul.f32 %v2044, %v2046
        %v2048 = vadd.f32 %v2044, %v2047
        %vm2049 = vweird.f32 %v2040
        %vm2050 = vweird.f32 %v2044
        %vm2051 = vmor %vm2049, %vm2050
        %v2052 = vsel %vm2051, %v2044, %v2048
        %v2053 = vand.u32 2147483647, %v2040
        %vm2054 = vcmp.eq.f32.partialorder %v2053, 8.507059e+37
        %v2055 = vand.u32 %v2040, 2147483648
        %v2056 = vor.u32 1.1754944e-38, %v2055
        %v2057 = vsel %vm2054, %v2056, %v2052
        %v2058 = vmul.f32 1.0, %v2057
        %v2059 = vrcp.pop %v2041
        %v2060 = vmul.f32 %v2041, %v2059
        %v2061 = vsub.f32 1.0, %v2060
        %v2062 = vmul.f32 %v2059, %v2061
        %v2063 = vadd.f32 %v2059, %v2062
        %vm2064 = vweird.f32 %v2041
        %vm2065 = vweird.f32 %v2059
        %vm2066 = vmor %vm2064, %vm2065
        %v2067 = vsel %vm2066, %v2059, %v2063
        %v2068 = vand.u32 2147483647, %v2041
        %vm2069 = vcmp.eq.f32.partialorder %v2068, 8.507059e+37
        %v2070 = vand.u32 %v2041, 2147483648
        %v2071 = vor.u32 1.1754944e-38, %v2070
        %v2072 = vsel %vm2069, %v2071, %v2067
        %v2073 = vmul.f32 1.0, %v2072
        %v2074 = vrcp.pop %v2042
        %v2075 = vmul.f32 %v2042, %v2074
        %v2076 = vsub.f32 1.0, %v2075
        %v2077 = vmul.f32 %v2074, %v2076
        %v2078 = vadd.f32 %v2074, %v2077
        %vm2079 = vweird.f32 %v2042
        %vm2080 = vweird.f32 %v2074
        %vm2081 = vmor %vm2079, %vm2080
        %v2082 = vsel %vm2081, %v2074, %v2078
        %v2083 = vand.u32 2147483647, %v2042
        %vm2084 = vcmp.eq.f32.partialorder %v2083, 8.507059e+37
        %v2085 = vand.u32 %v2042, 2147483648
        %v2086 = vor.u32 1.1754944e-38, %v2085
        %v2087 = vsel %vm2084, %v2086, %v2082
        %v2088 = vmul.f32 1.0, %v2087
        %v2089 = vrcp.pop %v2043
        %v2090 = vmul.f32 %v2043, %v2089
        %v2091 = vsub.f32 1.0, %v2090
        %v2092 = vmul.f32 %v2089, %v2091
        %v2093 = vadd.f32 %v2089, %v2092
        %vm2094 = vweird.f32 %v2043
        %vm2095 = vweird.f32 %v2089
        %vm2096 = vmor %vm2094, %vm2095
        %v2097 = vsel %vm2096, %v2089, %v2093
        %v2098 = vand.u32 2147483647, %v2043
        %vm2099 = vcmp.eq.f32.partialorder %v2098, 8.507059e+37
        %v2100 = vand.u32 %v2043, 2147483648
        %v2101 = vor.u32 1.1754944e-38, %v2100
        %v2102 = vsel %vm2099, %v2101, %v2097
        %v2103 = vmul.f32 1.0, %v2102
        %v2104 = vmul.f32 %v2058, %v2058
        %v2105 = vmul.f32 %v2073, %v2073
        %v2106 = vmul.f32 %v2088, %v2088
        %v2107 = vmul.f32 %v2103, %v2103
        %v2108 = vsub.f32 1.0, %v2104
        %v2109 = vsub.f32 1.0, %v2105
        %v2110 = vsub.f32 1.0, %v2106
        %v2111 = vsub.f32 1.0, %v2107
        %v2112 = vmul.f32 %v1996, %v2108
        %v2113 = vmul.f32 %v2019, %v2109
        %v2114 = vmul.f32 %v1999, %v2110
        %v2115 = vmul.f32 %v2022, %v2111
        %v2116 = vadd.f32 %v2104, 1.0
        %v2117 = vadd.f32 %v2105, 1.0
        %v2118 = vadd.f32 %v2106, 1.0
        %v2119 = vadd.f32 %v2107, 1.0
        %v2120 = vrcp.pop %v2116
        %v2121 = vmul.f32 %v2116, %v2120
        %v2122 = vsub.f32 1.0, %v2121
        %v2123 = vmul.f32 %v2120, %v2122
        %v2124 = vadd.f32 %v2120, %v2123
        %vm2125 = vweird.f32 %v2116
        %vm2126 = vweird.f32 %v2120
        %vm2127 = vmor %vm2125, %vm2126
        %v2128 = vsel %vm2127, %v2120, %v2124
        %v2129 = vand.u32 2147483647, %v2116
        %vm2130 = vcmp.eq.f32.partialorder %v2129, 8.507059e+37
        %v2131 = vand.u32 %v2116, 2147483648
        %v2132 = vor.u32 1.1754944e-38, %v2131
        %v2133 = vsel %vm2130, %v2132, %v2128
        %v2134 = vmul.f32 %v2112, %v2133
        %v2135 = vrcp.pop %v2117
        %v2136 = vmul.f32 %v2117, %v2135
        %v2137 = vsub.f32 1.0, %v2136
        %v2138 = vmul.f32 %v2135, %v2137
        %v2139 = vadd.f32 %v2135, %v2138
        %vm2140 = vweird.f32 %v2117
        %vm2141 = vweird.f32 %v2135
        %vm2142 = vmor %vm2140, %vm2141
        %v2143 = vsel %vm2142, %v2135, %v2139
        %v2144 = vand.u32 2147483647, %v2117
        %vm2145 = vcmp.eq.f32.partialorder %v2144, 8.507059e+37
        %v2146 = vand.u32 %v2117, 2147483648
        %v2147 = vor.u32 1.1754944e-38, %v2146
        %v2148 = vsel %vm2145, %v2147, %v2143
        %v2149 = vmul.f32 %v2113, %v2148
        %v2150 = vrcp.pop %v2118
        %v2151 = vmul.f32 %v2118, %v2150
        %v2152 = vsub.f32 1.0, %v2151
        %v2153 = vmul.f32 %v2150, %v2152
        %v2154 = vadd.f32 %v2150, %v2153
        %vm2155 = vweird.f32 %v2118
        %vm2156 = vweird.f32 %v2150
        %vm2157 = vmor %vm2155, %vm2156
        %v2158 = vsel %vm2157, %v2150, %v2154
        %v2159 = vand.u32 2147483647, %v2118
        %vm2160 = vcmp.eq.f32.partialorder %v2159, 8.507059e+37
        %v2161 = vand.u32 %v2118, 2147483648
        %v2162 = vor.u32 1.1754944e-38, %v2161
        %v2163 = vsel %vm2160, %v2162, %v2158
        %v2164 = vmul.f32 %v2114, %v2163
        %v2165 = vrcp.pop %v2119
        %v2166 = vmul.f32 %v2119, %v2165
        %v2167 = vsub.f32 1.0, %v2166
        %v2168 = vmul.f32 %v2165, %v2167
        %v2169 = vadd.f32 %v2165, %v2168
        %vm2170 = vweird.f32 %v2119
        %vm2171 = vweird.f32 %v2165
        %vm2172 = vmor %vm2170, %vm2171
        %v2173 = vsel %vm2172, %v2165, %v2169
        %v2174 = vand.u32 2147483647, %v2119
        %vm2175 = vcmp.eq.f32.partialorder %v2174, 8.507059e+37
        %v2176 = vand.u32 %v2119, 2147483648
        %v2177 = vor.u32 1.1754944e-38, %v2176
        %v2178 = vsel %vm2175, %v2177, %v2173
        %v2179 = vmul.f32 %v2115, %v2178
        %s2180 = scalar_lea.vmem %s14, 256
        %v2181 = vld [vmem:[%s2180] sm:$0xff]
        %v2182 = vld [vmem:[%s2180 + $0x8] sm:$0xff]
        %v2183 = vld [vmem:[%s2180 + $0x10] sm:$0xff]
        %v2184 = vld [vmem:[%s2180 + $0x18] sm:$0xff]
        %v2185 = vld [vmem:[%s2180 + $0x20] sm:$0xff]
        %v2186 = vld [vmem:[%s2180 + $0x28] sm:$0xff]
        %v2187 = vld [vmem:[%s2180 + $0x30] sm:$0xff]
        %v2188 = vld [vmem:[%s2180 + $0x38] sm:$0xff]
        %v2189 = vld [vmem:[%s2180 + $0x40] sm:$0xff]
        %v2190 = vld [vmem:[%s2180 + $0x48] sm:$0xff]
        %v2191 = vld [vmem:[%s2180 + $0x50] sm:$0xff]
        %v2192 = vld [vmem:[%s2180 + $0x58] sm:$0xff]
        %v2193 = vld [vmem:[%s2180 + $0x60] sm:$0xff]
        %v2194 = vld [vmem:[%s2180 + $0x68] sm:$0xff]
        %v2195 = vld [vmem:[%s2180 + $0x70] sm:$0xff]
        %v2196 = vld [vmem:[%s2180 + $0x78] sm:$0xff]
        %v2197 = vld [vmem:[%s2180 + $0x80] sm:$0xff]
        %v2198 = vld [vmem:[%s2180 + $0x88] sm:$0xff]
        %v2199 = vld [vmem:[%s2180 + $0x90] sm:$0xff]
        %v2200 = vld [vmem:[%s2180 + $0x98] sm:$0xff]
        %v2201 = vld [vmem:[%s2180 + $0xa0] sm:$0xff]
        %v2202 = vld [vmem:[%s2180 + $0xa8] sm:$0xff]
        %v2203 = vld [vmem:[%s2180 + $0xb0] sm:$0xff]
        %v2204 = vld [vmem:[%s2180 + $0xb8] sm:$0xff]
        %v2205 = vld [vmem:[%s2180 + $0xc0] sm:$0xff]
        %v2206 = vld [vmem:[%s2180 + $0xc8] sm:$0xff]
        %v2207 = vld [vmem:[%s2180 + $0xd0] sm:$0xff]
        %v2208 = vld [vmem:[%s2180 + $0xd8] sm:$0xff]
        %v2209 = vld [vmem:[%s2180 + $0xe0] sm:$0xff]
        %v2210 = vld [vmem:[%s2180 + $0xe8] sm:$0xff]
        %v2211 = vld [vmem:[%s2180 + $0xf0] sm:$0xff]
        %v2212 = vld [vmem:[%s2180 + $0xf8] sm:$0xff]
        %2213 = vmatpush.msra.mxu0 %v2196
        %2214 = vmatpush.msra.mxu0 %v2195
        %2215 = vmatpush.msra.mxu0 %v2194
        %2216 = vmatpush.msra.mxu0 %v2193
        %2217 = vmatpush.msra.mxu0 %v2192
        %2218 = vmatpush.msra.mxu0 %v2191
        %2219 = vmatpush.msra.mxu0 %v2190
        %2220 = vmatpush.msra.mxu0 %v2189
        %2221 = vmatpush.msra.mxu0 %v2188
        %2222 = vmatpush.msra.mxu0 %v2187
        %2223 = vmatpush.msra.mxu0 %v2186
        %2224 = vmatpush.msra.mxu0 %v2185
        %2225 = vmatpush.msra.mxu0 %v2184
        %2226 = vmatpush.msra.mxu0 %v2183
        %2227 = vmatpush.msra.mxu0 %v2182
        %2228 = vmatpush.msra.mxu0 %v2181
        %2229 = vmatmul.f32.gmra.mxu0 %v2134
        %v2230 = vpop.f32.mrf.mxu0
        %v2231 = vadd.f32 0.0, %v2230
        %2232 = vmatmul.f32.gmra.mxu0 %v2164
        %v2233 = vpop.f32.mrf.mxu0
        %v2234 = vadd.f32 0.0, %v2233
        %2235 = vdwg.mxu0
        %2236 = vmatpush.msra.mxu0 %v2212
        %2237 = vmatpush.msra.mxu0 %v2211
        %2238 = vmatpush.msra.mxu0 %v2210
        %2239 = vmatpush.msra.mxu0 %v2209
        %2240 = vmatpush.msra.mxu0 %v2208
        %2241 = vmatpush.msra.mxu0 %v2207
        %2242 = vmatpush.msra.mxu0 %v2206
        %2243 = vmatpush.msra.mxu0 %v2205
        %2244 = vmatpush.msra.mxu0 %v2204
        %2245 = vmatpush.msra.mxu0 %v2203
        %2246 = vmatpush.msra.mxu0 %v2202
        %2247 = vmatpush.msra.mxu0 %v2201
        %2248 = vmatpush.msra.mxu0 %v2200
        %2249 = vmatpush.msra.mxu0 %v2199
        %2250 = vmatpush.msra.mxu0 %v2198
        %2251 = vmatpush.msra.mxu0 %v2197
        %2252 = vmatmul.f32.gmra.mxu0 %v2149
        %v2253 = vpop.f32.mrf.mxu0
        %v2254 = vadd.f32 %v2231, %v2253
        %2255 = vmatmul.f32.gmra.mxu0 %v2179
        %v2256 = vpop.f32.mrf.mxu0
        %v2257 = vadd.f32 %v2234, %v2256
        %2258 = vdwg.mxu0
        %v2259 = vadd.f32 %v1888, %v2254
        %v2260 = vadd.f32 %v1889, %v2257
        %s2261 = scalar_lea.vmem %s15, 1
        %v2262 = vld [vmem:[%s2261] sm:$0x1]
        %v2264 = vperm.slane %v2262, 0
        %v2266 = vadd.f32 %v2259, %v2264
        %v2267 = vadd.f32 %v2260, %v2264
        %s2268 = scalar_lea.vmem %s4, 2
        %v2269 = vld [vmem:[%s2268] sm:$0x1]
        %s2270 = scalar_lea.vmem %s5, 2
        %v2271 = vld [vmem:[%s2270] sm:$0x1]
        %v2272 = vsel %vm632, %v2266, 0.0
        %2273 = vadd.xlane.f32.xlu0 %v2272
        %v2274 = vpop.xlane.xlu0 %2273
        %v2275 = vsel %vm636, %v2267, 0.0
        %2276 = vadd.xlane.f32.xlu0 %v2275
        %v2277 = vpop.xlane.xlu0 %2276
        %v2278 = vmul.f32 %v2274, %v646
        %v2279 = vmul.f32 %v2277, %v646
        %v2280 = vsub.f32 %v2266, %v2278
        %v2281 = vsub.f32 %v2267, %v2279
        %v2282 = vmul.f32 %v2280, %v2280
        %v2283 = vmul.f32 %v2281, %v2281
        %v2284 = vsel %vm632, %v2282, 0.0
        %2285 = vadd.xlane.f32.xlu0 %v2284
        %v2286 = vpop.xlane.xlu0 %2285
        %v2287 = vsel %vm636, %v2283, 0.0
        %2288 = vadd.xlane.f32.xlu0 %v2287
        %v2289 = vpop.xlane.xlu0 %2288
        %v2290 = vmul.f32 %v2286, %v646
        %v2291 = vmul.f32 %v2289, %v646
        %v2292 = vadd.f32 %v2290, 1e-05
        %v2293 = vadd.f32 %v2291, 1e-05
        %v2294 = vrsqrt.pop %v2292
        %v2295 = vmul.f32 %v2294, %v2292
        %v2296 = vmul.f32 %v2295, %v2294
        %v2297 = vmul.f32 0.5, %v2296
        %v2298 = vsub.f32 1.5, %v2297
        %v2299 = vmul.f32 %v2294, %v2298
        %vm2300 = vweird.f32 %v2292
        %vm2301 = vweird.f32 %v2294
        %vm2302 = vmor %vm2300, %vm2301
        %v2303 = vsel %vm2302, %v2294, %v2299
        %v2304 = vrsqrt.pop %v2293
        %v2305 = vmul.f32 %v2304, %v2293
        %v2306 = vmul.f32 %v2305, %v2304
        %v2307 = vmul.f32 0.5, %v2306
        %v2308 = vsub.f32 1.5, %v2307
        %v2309 = vmul.f32 %v2304, %v2308
        %vm2310 = vweird.f32 %v2293
        %vm2311 = vweird.f32 %v2304
        %vm2312 = vmor %vm2310, %vm2311
        %v2313 = vsel %vm2312, %v2304, %v2309
        %v2315 = vperm.slane %v2269, 0
        %v2317 = vmul.f32 %v2303, %v2315
        %v2318 = vmul.f32 %v2313, %v2315
        %v2319 = vmul.f32 %v2280, %v2317
        %v2320 = vmul.f32 %v2281, %v2318
        %v2322 = vperm.slane %v2271, 0
        %v2324 = vadd.f32 %v2319, %v2322
        %v2325 = vadd.f32 %v2320, %v2322
        %s2326 = scalar_lea.vmem %s6, 256
        %v2327 = vld [vmem:[%s2326] sm:$0xff]
        %v2328 = vld [vmem:[%s2326 + $0x8] sm:$0xff]
        %v2329 = vld [vmem:[%s2326 + $0x10] sm:$0xff]
        %v2330 = vld [vmem:[%s2326 + $0x18] sm:$0xff]
        %v2331 = vld [vmem:[%s2326 + $0x20] sm:$0xff]
        %v2332 = vld [vmem:[%s2326 + $0x28] sm:$0xff]
        %v2333 = vld [vmem:[%s2326 + $0x30] sm:$0xff]
        %v2334 = vld [vmem:[%s2326 + $0x38] sm:$0xff]
        %v2335 = vld [vmem:[%s2326 + $0x40] sm:$0xff]
        %v2336 = vld [vmem:[%s2326 + $0x48] sm:$0xff]
        %v2337 = vld [vmem:[%s2326 + $0x50] sm:$0xff]
        %v2338 = vld [vmem:[%s2326 + $0x58] sm:$0xff]
        %v2339 = vld [vmem:[%s2326 + $0x60] sm:$0xff]
        %v2340 = vld [vmem:[%s2326 + $0x68] sm:$0xff]
        %v2341 = vld [vmem:[%s2326 + $0x70] sm:$0xff]
        %v2342 = vld [vmem:[%s2326 + $0x78] sm:$0xff]
        %s2343 = scalar_lea.vmem %s7, 4
        %v2344 = vld [vmem:[%s2343] sm:$0x3]
        %v2346 = vperm.slane %v2344, 0
        %v2347 = vperm.slane %v2344, 1
        %v2351 = vsel %vm632, %v2324, 0
        %v2354 = vsel %vm632, %v2325, 0
        %2356 = vmatpush.msra.mxu0 0.0
        %2357 = vmatpush.msra.mxu0 0.0
        %2358 = vmatpush.msra.mxu0 0.0
        %2359 = vmatpush.msra.mxu0 0.0
        %2360 = vmatpush.msra.mxu0 0.0
        %2361 = vmatpush.msra.mxu0 0.0
        %2362 = vmatpush.msra.mxu0 0.0
        %2363 = vmatpush.msra.mxu0 0.0
        %2364 = vmatpush.msra.mxu0 %v2341
        %2365 = vmatpush.msra.mxu0 %v2339
        %2366 = vmatpush.msra.mxu0 %v2337
        %2367 = vmatpush.msra.mxu0 %v2335
        %2368 = vmatpush.msra.mxu0 %v2333
        %2369 = vmatpush.msra.mxu0 %v2331
        %2370 = vmatpush.msra.mxu0 %v2329
        %2371 = vmatpush.msra.mxu0 %v2327
        %2372 = vmatmul.f32.gmra.mxu0 %v2351
        %v2373 = vpop.f32.mrf.mxu0
        %v2374 = vadd.f32 %v2346, %v2373
        %2375 = vmatmul.f32.gmra.mxu0 %v2354
        %v2376 = vpop.f32.mrf.mxu0
        %v2377 = vadd.f32 %v2346, %v2376
        %2378 = vdwg.mxu0
        %2379 = vmatpush.msra.mxu0 0.0
        %2380 = vmatpush.msra.mxu0 0.0
        %2381 = vmatpush.msra.mxu0 0.0
        %2382 = vmatpush.msra.mxu0 0.0
        %2383 = vmatpush.msra.mxu0 0.0
        %2384 = vmatpush.msra.mxu0 0.0
        %2385 = vmatpush.msra.mxu0 0.0
        %2386 = vmatpush.msra.mxu0 0.0
        %2387 = vmatpush.msra.mxu0 %v2342
        %2388 = vmatpush.msra.mxu0 %v2340
        %2389 = vmatpush.msra.mxu0 %v2338
        %2390 = vmatpush.msra.mxu0 %v2336
        %2391 = vmatpush.msra.mxu0 %v2334
        %2392 = vmatpush.msra.mxu0 %v2332
        %2393 = vmatpush.msra.mxu0 %v2330
        %2394 = vmatpush.msra.mxu0 %v2328
        %2395 = vmatmul.f32.gmra.mxu0 %v2351
        %v2396 = vpop.f32.mrf.mxu0
        %v2397 = vadd.f32 %v2347, %v2396
        %2398 = vmatmul.f32.gmra.mxu0 %v2354
        %v2399 = vpop.f32.mrf.mxu0
        %v2400 = vadd.f32 %v2347, %v2399
        %2401 = vdwg.mxu0
        %s2402 = scalar_lea.vmem %s8, 128
        %v2403 = vld [vmem:[%s2402] sm:$0xff]
        %v2404 = vld [vmem:[%s2402 + $0x8] sm:$0xff]
        %v2405 = vld [vmem:[%s2402 + $0x10] sm:$0xff]
        %v2406 = vld [vmem:[%s2402 + $0x18] sm:$0xff]
        %v2407 = vld [vmem:[%s2402 + $0x20] sm:$0xff]
        %v2408 = vld [vmem:[%s2402 + $0x28] sm:$0xff]
        %v2409 = vld [vmem:[%s2402 + $0x30] sm:$0xff]
        %v2410 = vld [vmem:[%s2402 + $0x38] sm:$0xff]
        %2413 = vrot.lane.b32.xlu0 %v2374, 64
        %v2414 = vpop.permute.xlu0 %2413
        %2415 = vrot.lane.b32.xlu0 %v2377, 64
        %v2416 = vpop.permute.xlu0 %2415
        %v2417 = vsel %vm850, %v2374, 0
        %v2419 = vsel %vm850, %v2377, 0
        %v2421 = vsel %vm850, %v2414, 0
        %v2423 = vsel %vm850, %v2416, 0
        %2425 = vmatpush.xpose.msra.mxu0 0.0
        %2426 = vmatpush.xpose.msra.mxu0 0.0
        %2427 = vmatpush.xpose.msra.mxu0 0.0
        %2428 = vmatpush.xpose.msra.mxu0 0.0
        %2429 = vmatpush.xpose.msra.mxu0 0.0
        %2430 = vmatpush.xpose.msra.mxu0 0.0
        %2431 = vmatpush.xpose.msra.mxu0 0.0
        %2432 = vmatpush.xpose.msra.mxu0 0.0
        %2433 = vmatpush.xpose.msra.mxu0 0.0
        %2434 = vmatpush.xpose.msra.mxu0 0.0
        %2435 = vmatpush.xpose.msra.mxu0 0.0
        %2436 = vmatpush.xpose.msra.mxu0 0.0
        %2437 = vmatpush.xpose.msra.mxu0 0.0
        %2438 = vmatpush.xpose.msra.mxu0 0.0
        %2439 = vmatpush.xpose.msra.mxu0 %v2423
        %2440 = vmatpush.xpose.msra.mxu0 %v2421
        %2441 = vmatmul.f32.gmra.mxu0 %v2417
        %v2442 = vpop.f32.mrf.mxu0
        %v2443 = vadd.f32 0.0, %v2442
        %2444 = vmatmul.f32.gmra.mxu0 %v2419
        %v2445 = vpop.f32.mrf.mxu0
        %v2446 = vadd.f32 0.0, %v2445
        %2447 = vdwg.mxu0
        %v2448 = vmul.f32 %v2443, 0.17677669
        %v2449 = vmul.f32 %v2446, 0.17677669
        %v2450 = vsel %vm704, %v2448, -1e+30
        %v2451 = vsel %vm705, %v2449, -1e+30
        %v2452 = vsel %vm886, %v2450, -inf
        %2453 = vmax.xlane.f32.xlu0 %v2452
        %v2454 = vpop.xlane.xlu0 %2453
        %v2455 = vsel %vm890, %v2451, -inf
        %2456 = vmax.xlane.f32.xlu0 %v2455
        %v2457 = vpop.xlane.xlu0 %2456
        %v2458 = vsub.f32 %v2450, %v2454
        %v2459 = vsub.f32 %v2451, %v2457
        %v2460 = vmul.f32 %v2458, 1.442695
        %v2461 = vpow.pop %v2460
        %v2462 = vmul.f32 %v2459, 1.442695
        %v2463 = vpow.pop %v2462
        %v2464 = vsel %vm886, %v2461, 0.0
        %2465 = vadd.xlane.f32.xlu0 %v2464
        %v2466 = vpop.xlane.xlu0 %2465
        %v2467 = vsel %vm890, %v2463, 0.0
        %2468 = vadd.xlane.f32.xlu0 %v2467
        %v2469 = vpop.xlane.xlu0 %2468
        %v2471 = vsel %vm886, %v2461, 0
        %v2474 = vsel %vm886, %v2463, 0
        %v2477 = vsel %vm912, %v2400, 0
        %2479 = vmatpush.msra.mxu0 0.0
        %2480 = vmatpush.msra.mxu0 0.0
        %2481 = vmatpush.msra.mxu0 0.0
        %2482 = vmatpush.msra.mxu0 0.0
        %2483 = vmatpush.msra.mxu0 0.0
        %2484 = vmatpush.msra.mxu0 0.0
        %2485 = vmatpush.msra.mxu0 0.0
        %2486 = vmatpush.msra.mxu0 0.0
        %2487 = vmatpush.msra.mxu0 0.0
        %2488 = vmatpush.msra.mxu0 0.0
        %2489 = vmatpush.msra.mxu0 0.0
        %2490 = vmatpush.msra.mxu0 0.0
        %2491 = vmatpush.msra.mxu0 0.0
        %2492 = vmatpush.msra.mxu0 0.0
        %2493 = vmatpush.msra.mxu0 %v2477
        %2494 = vmatpush.msra.mxu0 %v2397
        %2495 = vmatmul.f32.gmra.mxu0 %v2471
        %v2496 = vpop.f32.mrf.mxu0
        %v2497 = vadd.f32 0.0, %v2496
        %2498 = vmatmul.f32.gmra.mxu0 %v2474
        %v2499 = vpop.f32.mrf.mxu0
        %v2500 = vadd.f32 0.0, %v2499
        %2501 = vdwg.mxu0
        %v2502 = vrcp.pop %v2466
        %v2503 = vrcp.pop %v2469
        %v2504 = vmul.f32 %v2497, %v2502
        %v2505 = vmul.f32 %v2500, %v2503
        %2506 = vrot.lane.b32.xlu0 %v2374, 96
        %v2507 = vpop.permute.xlu0 %2506
        %2508 = vrot.lane.b32.xlu0 %v2377, 96
        %v2509 = vpop.permute.xlu0 %2508
        %2510 = vrot.lane.b32.xlu0 %v2374, 32
        %v2511 = vpop.permute.xlu0 %2510
        %2512 = vrot.lane.b32.xlu0 %v2377, 32
        %v2513 = vpop.permute.xlu0 %2512
        %v2514 = vsel %vm850, %v2507, 0
        %v2516 = vsel %vm850, %v2509, 0
        %v2518 = vsel %vm850, %v2511, 0
        %v2520 = vsel %vm850, %v2513, 0
        %2522 = vmatpush.xpose.msra.mxu0 0.0
        %2523 = vmatpush.xpose.msra.mxu0 0.0
        %2524 = vmatpush.xpose.msra.mxu0 0.0
        %2525 = vmatpush.xpose.msra.mxu0 0.0
        %2526 = vmatpush.xpose.msra.mxu0 0.0
        %2527 = vmatpush.xpose.msra.mxu0 0.0
        %2528 = vmatpush.xpose.msra.mxu0 0.0
        %2529 = vmatpush.xpose.msra.mxu0 0.0
        %2530 = vmatpush.xpose.msra.mxu0 0.0
        %2531 = vmatpush.xpose.msra.mxu0 0.0
        %2532 = vmatpush.xpose.msra.mxu0 0.0
        %2533 = vmatpush.xpose.msra.mxu0 0.0
        %2534 = vmatpush.xpose.msra.mxu0 0.0
        %2535 = vmatpush.xpose.msra.mxu0 0.0
        %2536 = vmatpush.xpose.msra.mxu0 %v2520
        %2537 = vmatpush.xpose.msra.mxu0 %v2518
        %2538 = vmatmul.f32.gmra.mxu0 %v2514
        %v2539 = vpop.f32.mrf.mxu0
        %v2540 = vadd.f32 0.0, %v2539
        %2541 = vmatmul.f32.gmra.mxu0 %v2516
        %v2542 = vpop.f32.mrf.mxu0
        %v2543 = vadd.f32 0.0, %v2542
        %2544 = vdwg.mxu0
        %v2545 = vmul.f32 %v2540, 0.17677669
        %v2546 = vmul.f32 %v2543, 0.17677669
        %v2547 = vsel %vm704, %v2545, -1e+30
        %v2548 = vsel %vm705, %v2546, -1e+30
        %v2549 = vsel %vm886, %v2547, -inf
        %2550 = vmax.xlane.f32.xlu0 %v2549
        %v2551 = vpop.xlane.xlu0 %2550
        %v2552 = vsel %vm890, %v2548, -inf
        %2553 = vmax.xlane.f32.xlu0 %v2552
        %v2554 = vpop.xlane.xlu0 %2553
        %v2555 = vsub.f32 %v2547, %v2551
        %v2556 = vsub.f32 %v2548, %v2554
        %v2557 = vmul.f32 %v2555, 1.442695
        %v2558 = vpow.pop %v2557
        %v2559 = vmul.f32 %v2556, 1.442695
        %v2560 = vpow.pop %v2559
        %v2561 = vsel %vm886, %v2558, 0.0
        %2562 = vadd.xlane.f32.xlu0 %v2561
        %v2563 = vpop.xlane.xlu0 %2562
        %v2564 = vsel %vm890, %v2560, 0.0
        %2565 = vadd.xlane.f32.xlu0 %v2564
        %v2566 = vpop.xlane.xlu0 %2565
        %2568 = vrot.lane.b32.xlu0 %v2397, 96
        %v2569 = vpop.permute.xlu0 %2568
        %2570 = vrot.lane.b32.xlu0 %v2400, 96
        %v2571 = vpop.permute.xlu0 %2570
        %v2574 = vsel %vm886, %v2558, 0
        %v2577 = vsel %vm886, %v2560, 0
        %v2579 = vsel %vm912, %v2571, 0
        %2581 = vmatpush.msra.mxu0 0.0
        %2582 = vmatpush.msra.mxu0 0.0
        %2583 = vmatpush.msra.mxu0 0.0
        %2584 = vmatpush.msra.mxu0 0.0
        %2585 = vmatpush.msra.mxu0 0.0
        %2586 = vmatpush.msra.mxu0 0.0
        %2587 = vmatpush.msra.mxu0 0.0
        %2588 = vmatpush.msra.mxu0 0.0
        %2589 = vmatpush.msra.mxu0 0.0
        %2590 = vmatpush.msra.mxu0 0.0
        %2591 = vmatpush.msra.mxu0 0.0
        %2592 = vmatpush.msra.mxu0 0.0
        %2593 = vmatpush.msra.mxu0 0.0
        %2594 = vmatpush.msra.mxu0 0.0
        %2595 = vmatpush.msra.mxu0 %v2579
        %2596 = vmatpush.msra.mxu0 %v2569
        %2597 = vmatmul.f32.gmra.mxu0 %v2574
        %v2598 = vpop.f32.mrf.mxu0
        %v2599 = vadd.f32 0.0, %v2598
        %2600 = vmatmul.f32.gmra.mxu0 %v2577
        %v2601 = vpop.f32.mrf.mxu0
        %v2602 = vadd.f32 0.0, %v2601
        %2603 = vdwg.mxu0
        %v2604 = vrcp.pop %v2563
        %v2605 = vrcp.pop %v2566
        %v2606 = vmul.f32 %v2599, %v2604
        %v2607 = vmul.f32 %v2602, %v2605
        %v2609 = vsel %vm850, %v2606, 0
        %v2612 = vsel %vm850, %v2607, 0
        %2614 = vmatpush.msra.mxu0 0.0
        %2615 = vmatpush.msra.mxu0 0.0
        %2616 = vmatpush.msra.mxu0 0.0
        %2617 = vmatpush.msra.mxu0 0.0
        %2618 = vmatpush.msra.mxu0 0.0
        %2619 = vmatpush.msra.mxu0 0.0
        %2620 = vmatpush.msra.mxu0 0.0
        %2621 = vmatpush.msra.mxu0 0.0
        %2622 = vmatpush.msra.mxu0 0.0
        %2623 = vmatpush.msra.mxu0 0.0
        %2624 = vmatpush.msra.mxu0 0.0
        %2625 = vmatpush.msra.mxu0 0.0
        %2626 = vmatpush.msra.mxu0 %v2410
        %2627 = vmatpush.msra.mxu0 %v2409
        %2628 = vmatpush.msra.mxu0 %v2408
        %2629 = vmatpush.msra.mxu0 %v2407
        %2630 = vmatmul.f32.gmra.mxu0 %v2609
        %v2631 = vpop.f32.mrf.mxu0
        %v2632 = vadd.f32 0.0, %v2631
        %2633 = vmatmul.f32.gmra.mxu0 %v2612
        %v2634 = vpop.f32.mrf.mxu0
        %v2635 = vadd.f32 0.0, %v2634
        %2636 = vdwg.mxu0
        %v2638 = vsel %vm850, %v2504, 0
        %v2641 = vsel %vm850, %v2505, 0
        %2643 = vmatpush.msra.mxu0 0.0
        %2644 = vmatpush.msra.mxu0 0.0
        %2645 = vmatpush.msra.mxu0 0.0
        %2646 = vmatpush.msra.mxu0 0.0
        %2647 = vmatpush.msra.mxu0 0.0
        %2648 = vmatpush.msra.mxu0 0.0
        %2649 = vmatpush.msra.mxu0 0.0
        %2650 = vmatpush.msra.mxu0 0.0
        %2651 = vmatpush.msra.mxu0 0.0
        %2652 = vmatpush.msra.mxu0 0.0
        %2653 = vmatpush.msra.mxu0 0.0
        %2654 = vmatpush.msra.mxu0 0.0
        %2655 = vmatpush.msra.mxu0 %v2406
        %2656 = vmatpush.msra.mxu0 %v2405
        %2657 = vmatpush.msra.mxu0 %v2404
        %2658 = vmatpush.msra.mxu0 %v2403
        %2659 = vmatmul.f32.gmra.mxu0 %v2638
        %v2660 = vpop.f32.mrf.mxu0
        %v2661 = vadd.f32 %v2632, %v2660
        %2662 = vmatmul.f32.gmra.mxu0 %v2641
        %v2663 = vpop.f32.mrf.mxu0
        %v2664 = vadd.f32 %v2635, %v2663
        %2665 = vdwg.mxu0
        %v2666 = vadd.f32 %v2266, %v2661
        %v2667 = vadd.f32 %v2267, %v2664
        %s2668 = scalar_lea.vmem %s9, 2
        %v2669 = vld [vmem:[%s2668] sm:$0x1]
        %v2671 = vperm.slane %v2669, 0
        %v2673 = vadd.f32 %v2666, %v2671
        %v2674 = vadd.f32 %v2667, %v2671
        %s2675 = scalar_lea.vmem %s10, 2
        %v2676 = vld [vmem:[%s2675] sm:$0x1]
        %s2677 = scalar_lea.vmem %s11, 2
        %v2678 = vld [vmem:[%s2677] sm:$0x1]
        %v2679 = vsel %vm632, %v2673, 0.0
        %2680 = vadd.xlane.f32.xlu0 %v2679
        %v2681 = vpop.xlane.xlu0 %2680
        %v2682 = vsel %vm636, %v2674, 0.0
        %2683 = vadd.xlane.f32.xlu0 %v2682
        %v2684 = vpop.xlane.xlu0 %2683
        %v2685 = vmul.f32 %v2681, %v646
        %v2686 = vmul.f32 %v2684, %v646
        %v2687 = vsub.f32 %v2673, %v2685
        %v2688 = vsub.f32 %v2674, %v2686
        %v2689 = vmul.f32 %v2687, %v2687
        %v2690 = vmul.f32 %v2688, %v2688
        %v2691 = vsel %vm632, %v2689, 0.0
        %2692 = vadd.xlane.f32.xlu0 %v2691
        %v2693 = vpop.xlane.xlu0 %2692
        %v2694 = vsel %vm636, %v2690, 0.0
        %2695 = vadd.xlane.f32.xlu0 %v2694
        %v2696 = vpop.xlane.xlu0 %2695
        %v2697 = vmul.f32 %v2693, %v646
        %v2698 = vmul.f32 %v2696, %v646
        %v2699 = vadd.f32 %v2697, 1e-05
        %v2700 = vadd.f32 %v2698, 1e-05
        %v2701 = vrsqrt.pop %v2699
        %v2702 = vmul.f32 %v2701, %v2699
        %v2703 = vmul.f32 %v2702, %v2701
        %v2704 = vmul.f32 0.5, %v2703
        %v2705 = vsub.f32 1.5, %v2704
        %v2706 = vmul.f32 %v2701, %v2705
        %vm2707 = vweird.f32 %v2699
        %vm2708 = vweird.f32 %v2701
        %vm2709 = vmor %vm2707, %vm2708
        %v2710 = vsel %vm2709, %v2701, %v2706
        %v2711 = vrsqrt.pop %v2700
        %v2712 = vmul.f32 %v2711, %v2700
        %v2713 = vmul.f32 %v2712, %v2711
        %v2714 = vmul.f32 0.5, %v2713
        %v2715 = vsub.f32 1.5, %v2714
        %v2716 = vmul.f32 %v2711, %v2715
        %vm2717 = vweird.f32 %v2700
        %vm2718 = vweird.f32 %v2711
        %vm2719 = vmor %vm2717, %vm2718
        %v2720 = vsel %vm2719, %v2711, %v2716
        %v2722 = vperm.slane %v2676, 0
        %v2724 = vmul.f32 %v2710, %v2722
        %v2725 = vmul.f32 %v2720, %v2722
        %v2726 = vmul.f32 %v2687, %v2724
        %v2727 = vmul.f32 %v2688, %v2725
        %v2729 = vperm.slane %v2678, 0
        %v2731 = vadd.f32 %v2726, %v2729
        %v2732 = vadd.f32 %v2727, %v2729
        %s2733 = scalar_lea.vmem %s12, 256
        %v2734 = vld [vmem:[%s2733] sm:$0xff]
        %v2735 = vld [vmem:[%s2733 + $0x8] sm:$0xff]
        %v2736 = vld [vmem:[%s2733 + $0x10] sm:$0xff]
        %v2737 = vld [vmem:[%s2733 + $0x18] sm:$0xff]
        %v2738 = vld [vmem:[%s2733 + $0x20] sm:$0xff]
        %v2739 = vld [vmem:[%s2733 + $0x28] sm:$0xff]
        %v2740 = vld [vmem:[%s2733 + $0x30] sm:$0xff]
        %v2741 = vld [vmem:[%s2733 + $0x38] sm:$0xff]
        %v2742 = vld [vmem:[%s2733 + $0x40] sm:$0xff]
        %v2743 = vld [vmem:[%s2733 + $0x48] sm:$0xff]
        %v2744 = vld [vmem:[%s2733 + $0x50] sm:$0xff]
        %v2745 = vld [vmem:[%s2733 + $0x58] sm:$0xff]
        %v2746 = vld [vmem:[%s2733 + $0x60] sm:$0xff]
        %v2747 = vld [vmem:[%s2733 + $0x68] sm:$0xff]
        %v2748 = vld [vmem:[%s2733 + $0x70] sm:$0xff]
        %v2749 = vld [vmem:[%s2733 + $0x78] sm:$0xff]
        %s2750 = scalar_lea.vmem %s13, 4
        %v2751 = vld [vmem:[%s2750] sm:$0x3]
        %v2753 = vperm.slane %v2751, 0
        %v2754 = vperm.slane %v2751, 1
        %v2758 = vsel %vm632, %v2731, 0
        %v2761 = vsel %vm632, %v2732, 0
        %2763 = vmatpush.msra.mxu0 0.0
        %2764 = vmatpush.msra.mxu0 0.0
        %2765 = vmatpush.msra.mxu0 0.0
        %2766 = vmatpush.msra.mxu0 0.0
        %2767 = vmatpush.msra.mxu0 0.0
        %2768 = vmatpush.msra.mxu0 0.0
        %2769 = vmatpush.msra.mxu0 0.0
        %2770 = vmatpush.msra.mxu0 0.0
        %2771 = vmatpush.msra.mxu0 %v2748
        %2772 = vmatpush.msra.mxu0 %v2746
        %2773 = vmatpush.msra.mxu0 %v2744
        %2774 = vmatpush.msra.mxu0 %v2742
        %2775 = vmatpush.msra.mxu0 %v2740
        %2776 = vmatpush.msra.mxu0 %v2738
        %2777 = vmatpush.msra.mxu0 %v2736
        %2778 = vmatpush.msra.mxu0 %v2734
        %2779 = vmatmul.f32.gmra.mxu0 %v2758
        %v2780 = vpop.f32.mrf.mxu0
        %v2781 = vadd.f32 %v2753, %v2780
        %2782 = vmatmul.f32.gmra.mxu0 %v2761
        %v2783 = vpop.f32.mrf.mxu0
        %v2784 = vadd.f32 %v2753, %v2783
        %2785 = vdwg.mxu0
        %2786 = vmatpush.msra.mxu0 0.0
        %2787 = vmatpush.msra.mxu0 0.0
        %2788 = vmatpush.msra.mxu0 0.0
        %2789 = vmatpush.msra.mxu0 0.0
        %2790 = vmatpush.msra.mxu0 0.0
        %2791 = vmatpush.msra.mxu0 0.0
        %2792 = vmatpush.msra.mxu0 0.0
        %2793 = vmatpush.msra.mxu0 0.0
        %2794 = vmatpush.msra.mxu0 %v2749
        %2795 = vmatpush.msra.mxu0 %v2747
        %2796 = vmatpush.msra.mxu0 %v2745
        %2797 = vmatpush.msra.mxu0 %v2743
        %2798 = vmatpush.msra.mxu0 %v2741
        %2799 = vmatpush.msra.mxu0 %v2739
        %2800 = vmatpush.msra.mxu0 %v2737
        %2801 = vmatpush.msra.mxu0 %v2735
        %2802 = vmatmul.f32.gmra.mxu0 %v2758
        %v2803 = vpop.f32.mrf.mxu0
        %v2804 = vadd.f32 %v2754, %v2803
        %2805 = vmatmul.f32.gmra.mxu0 %v2761
        %v2806 = vpop.f32.mrf.mxu0
        %v2807 = vadd.f32 %v2754, %v2806
        %2808 = vdwg.mxu0
        %v2809 = vsub.f32 0.0, %v2781
        %v2810 = vsub.f32 0.0, %v2804
        %v2811 = vsub.f32 0.0, %v2784
        %v2812 = vsub.f32 0.0, %v2807
        %v2813 = vxor.u32 %v2809, 2147483648
        %v2814 = vxor.u32 %v2810, 2147483648
        %v2815 = vxor.u32 %v2811, 2147483648
        %v2816 = vxor.u32 %v2812, 2147483648
        %v2817 = vmul.f32 %v2813, 1.442695
        %v2818 = vpow.pop %v2817
        %v2819 = vmul.f32 %v2814, 1.442695
        %v2820 = vpow.pop %v2819
        %v2821 = vmul.f32 %v2815, 1.442695
        %v2822 = vpow.pop %v2821
        %v2823 = vmul.f32 %v2816, 1.442695
        %v2824 = vpow.pop %v2823
        %v2825 = vadd.f32 %v2818, 1.0
        %v2826 = vadd.f32 %v2820, 1.0
        %v2827 = vadd.f32 %v2822, 1.0
        %v2828 = vadd.f32 %v2824, 1.0
        %v2829 = vrcp.pop %v2825
        %v2830 = vmul.f32 %v2825, %v2829
        %v2831 = vsub.f32 1.0, %v2830
        %v2832 = vmul.f32 %v2829, %v2831
        %v2833 = vadd.f32 %v2829, %v2832
        %vm2834 = vweird.f32 %v2825
        %vm2835 = vweird.f32 %v2829
        %vm2836 = vmor %vm2834, %vm2835
        %v2837 = vsel %vm2836, %v2829, %v2833
        %v2838 = vand.u32 2147483647, %v2825
        %vm2839 = vcmp.eq.f32.partialorder %v2838, 8.507059e+37
        %v2840 = vand.u32 %v2825, 2147483648
        %v2841 = vor.u32 1.1754944e-38, %v2840
        %v2842 = vsel %vm2839, %v2841, %v2837
        %v2843 = vmul.f32 1.0, %v2842
        %v2844 = vrcp.pop %v2826
        %v2845 = vmul.f32 %v2826, %v2844
        %v2846 = vsub.f32 1.0, %v2845
        %v2847 = vmul.f32 %v2844, %v2846
        %v2848 = vadd.f32 %v2844, %v2847
        %vm2849 = vweird.f32 %v2826
        %vm2850 = vweird.f32 %v2844
        %vm2851 = vmor %vm2849, %vm2850
        %v2852 = vsel %vm2851, %v2844, %v2848
        %v2853 = vand.u32 2147483647, %v2826
        %vm2854 = vcmp.eq.f32.partialorder %v2853, 8.507059e+37
        %v2855 = vand.u32 %v2826, 2147483648
        %v2856 = vor.u32 1.1754944e-38, %v2855
        %v2857 = vsel %vm2854, %v2856, %v2852
        %v2858 = vmul.f32 1.0, %v2857
        %v2859 = vrcp.pop %v2827
        %v2860 = vmul.f32 %v2827, %v2859
        %v2861 = vsub.f32 1.0, %v2860
        %v2862 = vmul.f32 %v2859, %v2861
        %v2863 = vadd.f32 %v2859, %v2862
        %vm2864 = vweird.f32 %v2827
        %vm2865 = vweird.f32 %v2859
        %vm2866 = vmor %vm2864, %vm2865
        %v2867 = vsel %vm2866, %v2859, %v2863
        %v2868 = vand.u32 2147483647, %v2827
        %vm2869 = vcmp.eq.f32.partialorder %v2868, 8.507059e+37
        %v2870 = vand.u32 %v2827, 2147483648
        %v2871 = vor.u32 1.1754944e-38, %v2870
        %v2872 = vsel %vm2869, %v2871, %v2867
        %v2873 = vmul.f32 1.0, %v2872
        %v2874 = vrcp.pop %v2828
        %v2875 = vmul.f32 %v2828, %v2874
        %v2876 = vsub.f32 1.0, %v2875
        %v2877 = vmul.f32 %v2874, %v2876
        %v2878 = vadd.f32 %v2874, %v2877
        %vm2879 = vweird.f32 %v2828
        %vm2880 = vweird.f32 %v2874
        %vm2881 = vmor %vm2879, %vm2880
        %v2882 = vsel %vm2881, %v2874, %v2878
        %v2883 = vand.u32 2147483647, %v2828
        %vm2884 = vcmp.eq.f32.partialorder %v2883, 8.507059e+37
        %v2885 = vand.u32 %v2828, 2147483648
        %v2886 = vor.u32 1.1754944e-38, %v2885
        %v2887 = vsel %vm2884, %v2886, %v2882
        %v2888 = vmul.f32 1.0, %v2887
        %v2889 = vmul.f32 %v2843, %v2843
        %v2890 = vmul.f32 %v2858, %v2858
        %v2891 = vmul.f32 %v2873, %v2873
        %v2892 = vmul.f32 %v2888, %v2888
        %v2893 = vsub.f32 1.0, %v2889
        %v2894 = vsub.f32 1.0, %v2890
        %v2895 = vsub.f32 1.0, %v2891
        %v2896 = vsub.f32 1.0, %v2892
        %v2897 = vmul.f32 %v2781, %v2893
        %v2898 = vmul.f32 %v2804, %v2894
        %v2899 = vmul.f32 %v2784, %v2895
        %v2900 = vmul.f32 %v2807, %v2896
        %v2901 = vadd.f32 %v2889, 1.0
        %v2902 = vadd.f32 %v2890, 1.0
        %v2903 = vadd.f32 %v2891, 1.0
        %v2904 = vadd.f32 %v2892, 1.0
        %v2905 = vrcp.pop %v2901
        %v2906 = vmul.f32 %v2901, %v2905
        %v2907 = vsub.f32 1.0, %v2906
        %v2908 = vmul.f32 %v2905, %v2907
        %v2909 = vadd.f32 %v2905, %v2908
        %vm2910 = vweird.f32 %v2901
        %vm2911 = vweird.f32 %v2905
        %vm2912 = vmor %vm2910, %vm2911
        %v2913 = vsel %vm2912, %v2905, %v2909
        %v2914 = vand.u32 2147483647, %v2901
        %vm2915 = vcmp.eq.f32.partialorder %v2914, 8.507059e+37
        %v2916 = vand.u32 %v2901, 2147483648
        %v2917 = vor.u32 1.1754944e-38, %v2916
        %v2918 = vsel %vm2915, %v2917, %v2913
        %v2919 = vmul.f32 %v2897, %v2918
        %v2920 = vrcp.pop %v2902
        %v2921 = vmul.f32 %v2902, %v2920
        %v2922 = vsub.f32 1.0, %v2921
        %v2923 = vmul.f32 %v2920, %v2922
        %v2924 = vadd.f32 %v2920, %v2923
        %vm2925 = vweird.f32 %v2902
        %vm2926 = vweird.f32 %v2920
        %vm2927 = vmor %vm2925, %vm2926
        %v2928 = vsel %vm2927, %v2920, %v2924
        %v2929 = vand.u32 2147483647, %v2902
        %vm2930 = vcmp.eq.f32.partialorder %v2929, 8.507059e+37
        %v2931 = vand.u32 %v2902, 2147483648
        %v2932 = vor.u32 1.1754944e-38, %v2931
        %v2933 = vsel %vm2930, %v2932, %v2928
        %v2934 = vmul.f32 %v2898, %v2933
        %v2935 = vrcp.pop %v2903
        %v2936 = vmul.f32 %v2903, %v2935
        %v2937 = vsub.f32 1.0, %v2936
        %v2938 = vmul.f32 %v2935, %v2937
        %v2939 = vadd.f32 %v2935, %v2938
        %vm2940 = vweird.f32 %v2903
        %vm2941 = vweird.f32 %v2935
        %vm2942 = vmor %vm2940, %vm2941
        %v2943 = vsel %vm2942, %v2935, %v2939
        %v2944 = vand.u32 2147483647, %v2903
        %vm2945 = vcmp.eq.f32.partialorder %v2944, 8.507059e+37
        %v2946 = vand.u32 %v2903, 2147483648
        %v2947 = vor.u32 1.1754944e-38, %v2946
        %v2948 = vsel %vm2945, %v2947, %v2943
        %v2949 = vmul.f32 %v2899, %v2948
        %v2950 = vrcp.pop %v2904
        %v2951 = vmul.f32 %v2904, %v2950
        %v2952 = vsub.f32 1.0, %v2951
        %v2953 = vmul.f32 %v2950, %v2952
        %v2954 = vadd.f32 %v2950, %v2953
        %vm2955 = vweird.f32 %v2904
        %vm2956 = vweird.f32 %v2950
        %vm2957 = vmor %vm2955, %vm2956
        %v2958 = vsel %vm2957, %v2950, %v2954
        %v2959 = vand.u32 2147483647, %v2904
        %vm2960 = vcmp.eq.f32.partialorder %v2959, 8.507059e+37
        %v2961 = vand.u32 %v2904, 2147483648
        %v2962 = vor.u32 1.1754944e-38, %v2961
        %v2963 = vsel %vm2960, %v2962, %v2958
        %v2964 = vmul.f32 %v2900, %v2963
        %s2965 = scalar_lea.vmem %s14, 512
        %v2966 = vld [vmem:[%s2965] sm:$0xff]
        %v2967 = vld [vmem:[%s2965 + $0x8] sm:$0xff]
        %v2968 = vld [vmem:[%s2965 + $0x10] sm:$0xff]
        %v2969 = vld [vmem:[%s2965 + $0x18] sm:$0xff]
        %v2970 = vld [vmem:[%s2965 + $0x20] sm:$0xff]
        %v2971 = vld [vmem:[%s2965 + $0x28] sm:$0xff]
        %v2972 = vld [vmem:[%s2965 + $0x30] sm:$0xff]
        %v2973 = vld [vmem:[%s2965 + $0x38] sm:$0xff]
        %v2974 = vld [vmem:[%s2965 + $0x40] sm:$0xff]
        %v2975 = vld [vmem:[%s2965 + $0x48] sm:$0xff]
        %v2976 = vld [vmem:[%s2965 + $0x50] sm:$0xff]
        %v2977 = vld [vmem:[%s2965 + $0x58] sm:$0xff]
        %v2978 = vld [vmem:[%s2965 + $0x60] sm:$0xff]
        %v2979 = vld [vmem:[%s2965 + $0x68] sm:$0xff]
        %v2980 = vld [vmem:[%s2965 + $0x70] sm:$0xff]
        %v2981 = vld [vmem:[%s2965 + $0x78] sm:$0xff]
        %v2982 = vld [vmem:[%s2965 + $0x80] sm:$0xff]
        %v2983 = vld [vmem:[%s2965 + $0x88] sm:$0xff]
        %v2984 = vld [vmem:[%s2965 + $0x90] sm:$0xff]
        %v2985 = vld [vmem:[%s2965 + $0x98] sm:$0xff]
        %v2986 = vld [vmem:[%s2965 + $0xa0] sm:$0xff]
        %v2987 = vld [vmem:[%s2965 + $0xa8] sm:$0xff]
        %v2988 = vld [vmem:[%s2965 + $0xb0] sm:$0xff]
        %v2989 = vld [vmem:[%s2965 + $0xb8] sm:$0xff]
        %v2990 = vld [vmem:[%s2965 + $0xc0] sm:$0xff]
        %v2991 = vld [vmem:[%s2965 + $0xc8] sm:$0xff]
        %v2992 = vld [vmem:[%s2965 + $0xd0] sm:$0xff]
        %v2993 = vld [vmem:[%s2965 + $0xd8] sm:$0xff]
        %v2994 = vld [vmem:[%s2965 + $0xe0] sm:$0xff]
        %v2995 = vld [vmem:[%s2965 + $0xe8] sm:$0xff]
        %v2996 = vld [vmem:[%s2965 + $0xf0] sm:$0xff]
        %v2997 = vld [vmem:[%s2965 + $0xf8] sm:$0xff]
        %2998 = vmatpush.msra.mxu0 %v2981
        %2999 = vmatpush.msra.mxu0 %v2980
        %3000 = vmatpush.msra.mxu0 %v2979
        %3001 = vmatpush.msra.mxu0 %v2978
        %3002 = vmatpush.msra.mxu0 %v2977
        %3003 = vmatpush.msra.mxu0 %v2976
        %3004 = vmatpush.msra.mxu0 %v2975
        %3005 = vmatpush.msra.mxu0 %v2974
        %3006 = vmatpush.msra.mxu0 %v2973
        %3007 = vmatpush.msra.mxu0 %v2972
        %3008 = vmatpush.msra.mxu0 %v2971
        %3009 = vmatpush.msra.mxu0 %v2970
        %3010 = vmatpush.msra.mxu0 %v2969
        %3011 = vmatpush.msra.mxu0 %v2968
        %3012 = vmatpush.msra.mxu0 %v2967
        %3013 = vmatpush.msra.mxu0 %v2966
        %3014 = vmatmul.f32.gmra.mxu0 %v2919
        %v3015 = vpop.f32.mrf.mxu0
        %v3016 = vadd.f32 0.0, %v3015
        %3017 = vmatmul.f32.gmra.mxu0 %v2949
        %v3018 = vpop.f32.mrf.mxu0
        %v3019 = vadd.f32 0.0, %v3018
        %3020 = vdwg.mxu0
        %3021 = vmatpush.msra.mxu0 %v2997
        %3022 = vmatpush.msra.mxu0 %v2996
        %3023 = vmatpush.msra.mxu0 %v2995
        %3024 = vmatpush.msra.mxu0 %v2994
        %3025 = vmatpush.msra.mxu0 %v2993
        %3026 = vmatpush.msra.mxu0 %v2992
        %3027 = vmatpush.msra.mxu0 %v2991
        %3028 = vmatpush.msra.mxu0 %v2990
        %3029 = vmatpush.msra.mxu0 %v2989
        %3030 = vmatpush.msra.mxu0 %v2988
        %3031 = vmatpush.msra.mxu0 %v2987
        %3032 = vmatpush.msra.mxu0 %v2986
        %3033 = vmatpush.msra.mxu0 %v2985
        %3034 = vmatpush.msra.mxu0 %v2984
        %3035 = vmatpush.msra.mxu0 %v2983
        %3036 = vmatpush.msra.mxu0 %v2982
        %3037 = vmatmul.f32.gmra.mxu0 %v2934
        %v3038 = vpop.f32.mrf.mxu0
        %v3039 = vadd.f32 %v3016, %v3038
        %3040 = vmatmul.f32.gmra.mxu0 %v2964
        %v3041 = vpop.f32.mrf.mxu0
        %v3042 = vadd.f32 %v3019, %v3041
        %3043 = vdwg.mxu0
        %v3044 = vadd.f32 %v2673, %v3039
        %v3045 = vadd.f32 %v2674, %v3042
        %s3046 = scalar_lea.vmem %s15, 2
        %v3047 = vld [vmem:[%s3046] sm:$0x1]
        %v3049 = vperm.slane %v3047, 0
        %v3051 = vadd.f32 %v3044, %v3049
        %v3052 = vadd.f32 %v3045, %v3049
        %s3053 = scalar_lea.vmem %s4, 3
        %v3054 = vld [vmem:[%s3053] sm:$0x1]
        %s3055 = scalar_lea.vmem %s5, 3
        %v3056 = vld [vmem:[%s3055] sm:$0x1]
        %v3057 = vsel %vm632, %v3051, 0.0
        %3058 = vadd.xlane.f32.xlu0 %v3057
        %v3059 = vpop.xlane.xlu0 %3058
        %v3060 = vsel %vm636, %v3052, 0.0
        %3061 = vadd.xlane.f32.xlu0 %v3060
        %v3062 = vpop.xlane.xlu0 %3061
        %v3063 = vmul.f32 %v3059, %v646
        %v3064 = vmul.f32 %v3062, %v646
        %v3065 = vsub.f32 %v3051, %v3063
        %v3066 = vsub.f32 %v3052, %v3064
        %v3067 = vmul.f32 %v3065, %v3065
        %v3068 = vmul.f32 %v3066, %v3066
        %v3069 = vsel %vm632, %v3067, 0.0
        %3070 = vadd.xlane.f32.xlu0 %v3069
        %v3071 = vpop.xlane.xlu0 %3070
        %v3072 = vsel %vm636, %v3068, 0.0
        %3073 = vadd.xlane.f32.xlu0 %v3072
        %v3074 = vpop.xlane.xlu0 %3073
        %v3075 = vmul.f32 %v3071, %v646
        %v3076 = vmul.f32 %v3074, %v646
        %v3077 = vadd.f32 %v3075, 1e-05
        %v3078 = vadd.f32 %v3076, 1e-05
        %v3079 = vrsqrt.pop %v3077
        %v3080 = vmul.f32 %v3079, %v3077
        %v3081 = vmul.f32 %v3080, %v3079
        %v3082 = vmul.f32 0.5, %v3081
        %v3083 = vsub.f32 1.5, %v3082
        %v3084 = vmul.f32 %v3079, %v3083
        %vm3085 = vweird.f32 %v3077
        %vm3086 = vweird.f32 %v3079
        %vm3087 = vmor %vm3085, %vm3086
        %v3088 = vsel %vm3087, %v3079, %v3084
        %v3089 = vrsqrt.pop %v3078
        %v3090 = vmul.f32 %v3089, %v3078
        %v3091 = vmul.f32 %v3090, %v3089
        %v3092 = vmul.f32 0.5, %v3091
        %v3093 = vsub.f32 1.5, %v3092
        %v3094 = vmul.f32 %v3089, %v3093
        %vm3095 = vweird.f32 %v3078
        %vm3096 = vweird.f32 %v3089
        %vm3097 = vmor %vm3095, %vm3096
        %v3098 = vsel %vm3097, %v3089, %v3094
        %v3100 = vperm.slane %v3054, 0
        %v3102 = vmul.f32 %v3088, %v3100
        %v3103 = vmul.f32 %v3098, %v3100
        %v3104 = vmul.f32 %v3065, %v3102
        %v3105 = vmul.f32 %v3066, %v3103
        %v3107 = vperm.slane %v3056, 0
        %v3109 = vadd.f32 %v3104, %v3107
        %v3110 = vadd.f32 %v3105, %v3107
        %s3111 = scalar_lea.vmem %s6, 384
        %v3112 = vld [vmem:[%s3111] sm:$0xff]
        %v3113 = vld [vmem:[%s3111 + $0x8] sm:$0xff]
        %v3114 = vld [vmem:[%s3111 + $0x10] sm:$0xff]
        %v3115 = vld [vmem:[%s3111 + $0x18] sm:$0xff]
        %v3116 = vld [vmem:[%s3111 + $0x20] sm:$0xff]
        %v3117 = vld [vmem:[%s3111 + $0x28] sm:$0xff]
        %v3118 = vld [vmem:[%s3111 + $0x30] sm:$0xff]
        %v3119 = vld [vmem:[%s3111 + $0x38] sm:$0xff]
        %v3120 = vld [vmem:[%s3111 + $0x40] sm:$0xff]
        %v3121 = vld [vmem:[%s3111 + $0x48] sm:$0xff]
        %v3122 = vld [vmem:[%s3111 + $0x50] sm:$0xff]
        %v3123 = vld [vmem:[%s3111 + $0x58] sm:$0xff]
        %v3124 = vld [vmem:[%s3111 + $0x60] sm:$0xff]
        %v3125 = vld [vmem:[%s3111 + $0x68] sm:$0xff]
        %v3126 = vld [vmem:[%s3111 + $0x70] sm:$0xff]
        %v3127 = vld [vmem:[%s3111 + $0x78] sm:$0xff]
        %s3128 = scalar_lea.vmem %s7, 6
        %v3129 = vld [vmem:[%s3128] sm:$0x3]
        %v3131 = vperm.slane %v3129, 0
        %v3132 = vperm.slane %v3129, 1
        %v3136 = vsel %vm632, %v3109, 0
        %v3139 = vsel %vm632, %v3110, 0
        %3141 = vmatpush.msra.mxu0 0.0
        %3142 = vmatpush.msra.mxu0 0.0
        %3143 = vmatpush.msra.mxu0 0.0
        %3144 = vmatpush.msra.mxu0 0.0
        %3145 = vmatpush.msra.mxu0 0.0
        %3146 = vmatpush.msra.mxu0 0.0
        %3147 = vmatpush.msra.mxu0 0.0
        %3148 = vmatpush.msra.mxu0 0.0
        %3149 = vmatpush.msra.mxu0 %v3126
        %3150 = vmatpush.msra.mxu0 %v3124
        %3151 = vmatpush.msra.mxu0 %v3122
        %3152 = vmatpush.msra.mxu0 %v3120
        %3153 = vmatpush.msra.mxu0 %v3118
        %3154 = vmatpush.msra.mxu0 %v3116
        %3155 = vmatpush.msra.mxu0 %v3114
        %3156 = vmatpush.msra.mxu0 %v3112
        %3157 = vmatmul.f32.gmra.mxu0 %v3136
        %v3158 = vpop.f32.mrf.mxu0
        %v3159 = vadd.f32 %v3131, %v3158
        %3160 = vmatmul.f32.gmra.mxu0 %v3139
        %v3161 = vpop.f32.mrf.mxu0
        %v3162 = vadd.f32 %v3131, %v3161
        %3163 = vdwg.mxu0
        %3164 = vmatpush.msra.mxu0 0.0
        %3165 = vmatpush.msra.mxu0 0.0
        %3166 = vmatpush.msra.mxu0 0.0
        %3167 = vmatpush.msra.mxu0 0.0
        %3168 = vmatpush.msra.mxu0 0.0
        %3169 = vmatpush.msra.mxu0 0.0
        %3170 = vmatpush.msra.mxu0 0.0
        %3171 = vmatpush.msra.mxu0 0.0
        %3172 = vmatpush.msra.mxu0 %v3127
        %3173 = vmatpush.msra.mxu0 %v3125
        %3174 = vmatpush.msra.mxu0 %v3123
        %3175 = vmatpush.msra.mxu0 %v3121
        %3176 = vmatpush.msra.mxu0 %v3119
        %3177 = vmatpush.msra.mxu0 %v3117
        %3178 = vmatpush.msra.mxu0 %v3115
        %3179 = vmatpush.msra.mxu0 %v3113
        %3180 = vmatmul.f32.gmra.mxu0 %v3136
        %v3181 = vpop.f32.mrf.mxu0
        %v3182 = vadd.f32 %v3132, %v3181
        %3183 = vmatmul.f32.gmra.mxu0 %v3139
        %v3184 = vpop.f32.mrf.mxu0
        %v3185 = vadd.f32 %v3132, %v3184
        %3186 = vdwg.mxu0
        %s3187 = scalar_lea.vmem %s8, 192
        %v3188 = vld [vmem:[%s3187] sm:$0xff]
        %v3189 = vld [vmem:[%s3187 + $0x8] sm:$0xff]
        %v3190 = vld [vmem:[%s3187 + $0x10] sm:$0xff]
        %v3191 = vld [vmem:[%s3187 + $0x18] sm:$0xff]
        %v3192 = vld [vmem:[%s3187 + $0x20] sm:$0xff]
        %v3193 = vld [vmem:[%s3187 + $0x28] sm:$0xff]
        %v3194 = vld [vmem:[%s3187 + $0x30] sm:$0xff]
        %v3195 = vld [vmem:[%s3187 + $0x38] sm:$0xff]
        %3198 = vrot.lane.b32.xlu0 %v3159, 64
        %v3199 = vpop.permute.xlu0 %3198
        %3200 = vrot.lane.b32.xlu0 %v3162, 64
        %v3201 = vpop.permute.xlu0 %3200
        %v3202 = vsel %vm850, %v3159, 0
        %v3204 = vsel %vm850, %v3162, 0
        %v3206 = vsel %vm850, %v3199, 0
        %v3208 = vsel %vm850, %v3201, 0
        %3210 = vmatpush.xpose.msra.mxu0 0.0
        %3211 = vmatpush.xpose.msra.mxu0 0.0
        %3212 = vmatpush.xpose.msra.mxu0 0.0
        %3213 = vmatpush.xpose.msra.mxu0 0.0
        %3214 = vmatpush.xpose.msra.mxu0 0.0
        %3215 = vmatpush.xpose.msra.mxu0 0.0
        %3216 = vmatpush.xpose.msra.mxu0 0.0
        %3217 = vmatpush.xpose.msra.mxu0 0.0
        %3218 = vmatpush.xpose.msra.mxu0 0.0
        %3219 = vmatpush.xpose.msra.mxu0 0.0
        %3220 = vmatpush.xpose.msra.mxu0 0.0
        %3221 = vmatpush.xpose.msra.mxu0 0.0
        %3222 = vmatpush.xpose.msra.mxu0 0.0
        %3223 = vmatpush.xpose.msra.mxu0 0.0
        %3224 = vmatpush.xpose.msra.mxu0 %v3208
        %3225 = vmatpush.xpose.msra.mxu0 %v3206
        %3226 = vmatmul.f32.gmra.mxu0 %v3202
        %v3227 = vpop.f32.mrf.mxu0
        %v3228 = vadd.f32 0.0, %v3227
        %3229 = vmatmul.f32.gmra.mxu0 %v3204
        %v3230 = vpop.f32.mrf.mxu0
        %v3231 = vadd.f32 0.0, %v3230
        %3232 = vdwg.mxu0
        %v3233 = vmul.f32 %v3228, 0.17677669
        %v3234 = vmul.f32 %v3231, 0.17677669
        %v3235 = vsel %vm704, %v3233, -1e+30
        %v3236 = vsel %vm705, %v3234, -1e+30
        %v3237 = vsel %vm886, %v3235, -inf
        %3238 = vmax.xlane.f32.xlu0 %v3237
        %v3239 = vpop.xlane.xlu0 %3238
        %v3240 = vsel %vm890, %v3236, -inf
        %3241 = vmax.xlane.f32.xlu0 %v3240
        %v3242 = vpop.xlane.xlu0 %3241
        %v3243 = vsub.f32 %v3235, %v3239
        %v3244 = vsub.f32 %v3236, %v3242
        %v3245 = vmul.f32 %v3243, 1.442695
        %v3246 = vpow.pop %v3245
        %v3247 = vmul.f32 %v3244, 1.442695
        %v3248 = vpow.pop %v3247
        %v3249 = vsel %vm886, %v3246, 0.0
        %3250 = vadd.xlane.f32.xlu0 %v3249
        %v3251 = vpop.xlane.xlu0 %3250
        %v3252 = vsel %vm890, %v3248, 0.0
        %3253 = vadd.xlane.f32.xlu0 %v3252
        %v3254 = vpop.xlane.xlu0 %3253
        %v3256 = vsel %vm886, %v3246, 0
        %v3259 = vsel %vm886, %v3248, 0
        %v3262 = vsel %vm912, %v3185, 0
        %3264 = vmatpush.msra.mxu0 0.0
        %3265 = vmatpush.msra.mxu0 0.0
        %3266 = vmatpush.msra.mxu0 0.0
        %3267 = vmatpush.msra.mxu0 0.0
        %3268 = vmatpush.msra.mxu0 0.0
        %3269 = vmatpush.msra.mxu0 0.0
        %3270 = vmatpush.msra.mxu0 0.0
        %3271 = vmatpush.msra.mxu0 0.0
        %3272 = vmatpush.msra.mxu0 0.0
        %3273 = vmatpush.msra.mxu0 0.0
        %3274 = vmatpush.msra.mxu0 0.0
        %3275 = vmatpush.msra.mxu0 0.0
        %3276 = vmatpush.msra.mxu0 0.0
        %3277 = vmatpush.msra.mxu0 0.0
        %3278 = vmatpush.msra.mxu0 %v3262
        %3279 = vmatpush.msra.mxu0 %v3182
        %3280 = vmatmul.f32.gmra.mxu0 %v3256
        %v3281 = vpop.f32.mrf.mxu0
        %v3282 = vadd.f32 0.0, %v3281
        %3283 = vmatmul.f32.gmra.mxu0 %v3259
        %v3284 = vpop.f32.mrf.mxu0
        %v3285 = vadd.f32 0.0, %v3284
        %3286 = vdwg.mxu0
        %v3287 = vrcp.pop %v3251
        %v3288 = vrcp.pop %v3254
        %v3289 = vmul.f32 %v3282, %v3287
        %v3290 = vmul.f32 %v3285, %v3288
        %3291 = vrot.lane.b32.xlu0 %v3159, 96
        %v3292 = vpop.permute.xlu0 %3291
        %3293 = vrot.lane.b32.xlu0 %v3162, 96
        %v3294 = vpop.permute.xlu0 %3293
        %3295 = vrot.lane.b32.xlu0 %v3159, 32
        %v3296 = vpop.permute.xlu0 %3295
        %3297 = vrot.lane.b32.xlu0 %v3162, 32
        %v3298 = vpop.permute.xlu0 %3297
        %v3299 = vsel %vm850, %v3292, 0
        %v3301 = vsel %vm850, %v3294, 0
        %v3303 = vsel %vm850, %v3296, 0
        %v3305 = vsel %vm850, %v3298, 0
        %3307 = vmatpush.xpose.msra.mxu0 0.0
        %3308 = vmatpush.xpose.msra.mxu0 0.0
        %3309 = vmatpush.xpose.msra.mxu0 0.0
        %3310 = vmatpush.xpose.msra.mxu0 0.0
        %3311 = vmatpush.xpose.msra.mxu0 0.0
        %3312 = vmatpush.xpose.msra.mxu0 0.0
        %3313 = vmatpush.xpose.msra.mxu0 0.0
        %3314 = vmatpush.xpose.msra.mxu0 0.0
        %3315 = vmatpush.xpose.msra.mxu0 0.0
        %3316 = vmatpush.xpose.msra.mxu0 0.0
        %3317 = vmatpush.xpose.msra.mxu0 0.0
        %3318 = vmatpush.xpose.msra.mxu0 0.0
        %3319 = vmatpush.xpose.msra.mxu0 0.0
        %3320 = vmatpush.xpose.msra.mxu0 0.0
        %3321 = vmatpush.xpose.msra.mxu0 %v3305
        %3322 = vmatpush.xpose.msra.mxu0 %v3303
        %3323 = vmatmul.f32.gmra.mxu0 %v3299
        %v3324 = vpop.f32.mrf.mxu0
        %v3325 = vadd.f32 0.0, %v3324
        %3326 = vmatmul.f32.gmra.mxu0 %v3301
        %v3327 = vpop.f32.mrf.mxu0
        %v3328 = vadd.f32 0.0, %v3327
        %3329 = vdwg.mxu0
        %v3330 = vmul.f32 %v3325, 0.17677669
        %v3331 = vmul.f32 %v3328, 0.17677669
        %v3332 = vsel %vm704, %v3330, -1e+30
        %v3333 = vsel %vm705, %v3331, -1e+30
        %v3334 = vsel %vm886, %v3332, -inf
        %3335 = vmax.xlane.f32.xlu0 %v3334
        %v3336 = vpop.xlane.xlu0 %3335
        %v3337 = vsel %vm890, %v3333, -inf
        %3338 = vmax.xlane.f32.xlu0 %v3337
        %v3339 = vpop.xlane.xlu0 %3338
        %v3340 = vsub.f32 %v3332, %v3336
        %v3341 = vsub.f32 %v3333, %v3339
        %v3342 = vmul.f32 %v3340, 1.442695
        %v3343 = vpow.pop %v3342
        %v3344 = vmul.f32 %v3341, 1.442695
        %v3345 = vpow.pop %v3344
        %v3346 = vsel %vm886, %v3343, 0.0
        %3347 = vadd.xlane.f32.xlu0 %v3346
        %v3348 = vpop.xlane.xlu0 %3347
        %v3349 = vsel %vm890, %v3345, 0.0
        %3350 = vadd.xlane.f32.xlu0 %v3349
        %v3351 = vpop.xlane.xlu0 %3350
        %3353 = vrot.lane.b32.xlu0 %v3182, 96
        %v3354 = vpop.permute.xlu0 %3353
        %3355 = vrot.lane.b32.xlu0 %v3185, 96
        %v3356 = vpop.permute.xlu0 %3355
        %v3359 = vsel %vm886, %v3343, 0
        %v3362 = vsel %vm886, %v3345, 0
        %v3364 = vsel %vm912, %v3356, 0
        %3366 = vmatpush.msra.mxu0 0.0
        %3367 = vmatpush.msra.mxu0 0.0
        %3368 = vmatpush.msra.mxu0 0.0
        %3369 = vmatpush.msra.mxu0 0.0
        %3370 = vmatpush.msra.mxu0 0.0
        %3371 = vmatpush.msra.mxu0 0.0
        %3372 = vmatpush.msra.mxu0 0.0
        %3373 = vmatpush.msra.mxu0 0.0
        %3374 = vmatpush.msra.mxu0 0.0
        %3375 = vmatpush.msra.mxu0 0.0
        %3376 = vmatpush.msra.mxu0 0.0
        %3377 = vmatpush.msra.mxu0 0.0
        %3378 = vmatpush.msra.mxu0 0.0
        %3379 = vmatpush.msra.mxu0 0.0
        %3380 = vmatpush.msra.mxu0 %v3364
        %3381 = vmatpush.msra.mxu0 %v3354
        %3382 = vmatmul.f32.gmra.mxu0 %v3359
        %v3383 = vpop.f32.mrf.mxu0
        %v3384 = vadd.f32 0.0, %v3383
        %3385 = vmatmul.f32.gmra.mxu0 %v3362
        %v3386 = vpop.f32.mrf.mxu0
        %v3387 = vadd.f32 0.0, %v3386
        %3388 = vdwg.mxu0
        %v3389 = vrcp.pop %v3348
        %v3390 = vrcp.pop %v3351
        %v3391 = vmul.f32 %v3384, %v3389
        %v3392 = vmul.f32 %v3387, %v3390
        %v3394 = vsel %vm850, %v3391, 0
        %v3397 = vsel %vm850, %v3392, 0
        %3399 = vmatpush.msra.mxu0 0.0
        %3400 = vmatpush.msra.mxu0 0.0
        %3401 = vmatpush.msra.mxu0 0.0
        %3402 = vmatpush.msra.mxu0 0.0
        %3403 = vmatpush.msra.mxu0 0.0
        %3404 = vmatpush.msra.mxu0 0.0
        %3405 = vmatpush.msra.mxu0 0.0
        %3406 = vmatpush.msra.mxu0 0.0
        %3407 = vmatpush.msra.mxu0 0.0
        %3408 = vmatpush.msra.mxu0 0.0
        %3409 = vmatpush.msra.mxu0 0.0
        %3410 = vmatpush.msra.mxu0 0.0
        %3411 = vmatpush.msra.mxu0 %v3195
        %3412 = vmatpush.msra.mxu0 %v3194
        %3413 = vmatpush.msra.mxu0 %v3193
        %3414 = vmatpush.msra.mxu0 %v3192
        %3415 = vmatmul.f32.gmra.mxu0 %v3394
        %v3416 = vpop.f32.mrf.mxu0
        %v3417 = vadd.f32 0.0, %v3416
        %3418 = vmatmul.f32.gmra.mxu0 %v3397
        %v3419 = vpop.f32.mrf.mxu0
        %v3420 = vadd.f32 0.0, %v3419
        %3421 = vdwg.mxu0
        %v3423 = vsel %vm850, %v3289, 0
        %v3426 = vsel %vm850, %v3290, 0
        %3428 = vmatpush.msra.mxu0 0.0
        %3429 = vmatpush.msra.mxu0 0.0
        %3430 = vmatpush.msra.mxu0 0.0
        %3431 = vmatpush.msra.mxu0 0.0
        %3432 = vmatpush.msra.mxu0 0.0
        %3433 = vmatpush.msra.mxu0 0.0
        %3434 = vmatpush.msra.mxu0 0.0
        %3435 = vmatpush.msra.mxu0 0.0
        %3436 = vmatpush.msra.mxu0 0.0
        %3437 = vmatpush.msra.mxu0 0.0
        %3438 = vmatpush.msra.mxu0 0.0
        %3439 = vmatpush.msra.mxu0 0.0
        %3440 = vmatpush.msra.mxu0 %v3191
        %3441 = vmatpush.msra.mxu0 %v3190
        %3442 = vmatpush.msra.mxu0 %v3189
        %3443 = vmatpush.msra.mxu0 %v3188
        %3444 = vmatmul.f32.gmra.mxu0 %v3423
        %v3445 = vpop.f32.mrf.mxu0
        %v3446 = vadd.f32 %v3417, %v3445
        %3447 = vmatmul.f32.gmra.mxu0 %v3426
        %v3448 = vpop.f32.mrf.mxu0
        %v3449 = vadd.f32 %v3420, %v3448
        %3450 = vdwg.mxu0
        %v3451 = vadd.f32 %v3051, %v3446
        %v3452 = vadd.f32 %v3052, %v3449
        %s3453 = scalar_lea.vmem %s9, 3
        %v3454 = vld [vmem:[%s3453] sm:$0x1]
        %v3456 = vperm.slane %v3454, 0
        %v3458 = vadd.f32 %v3451, %v3456
        %v3459 = vadd.f32 %v3452, %v3456
        %s3460 = scalar_lea.vmem %s10, 3
        %v3461 = vld [vmem:[%s3460] sm:$0x1]
        %s3462 = scalar_lea.vmem %s11, 3
        %v3463 = vld [vmem:[%s3462] sm:$0x1]
        %v3464 = vsel %vm632, %v3458, 0.0
        %3465 = vadd.xlane.f32.xlu0 %v3464
        %v3466 = vpop.xlane.xlu0 %3465
        %v3467 = vsel %vm636, %v3459, 0.0
        %3468 = vadd.xlane.f32.xlu0 %v3467
        %v3469 = vpop.xlane.xlu0 %3468
        %v3470 = vmul.f32 %v3466, %v646
        %v3471 = vmul.f32 %v3469, %v646
        %v3472 = vsub.f32 %v3458, %v3470
        %v3473 = vsub.f32 %v3459, %v3471
        %v3474 = vmul.f32 %v3472, %v3472
        %v3475 = vmul.f32 %v3473, %v3473
        %v3476 = vsel %vm632, %v3474, 0.0
        %3477 = vadd.xlane.f32.xlu0 %v3476
        %v3478 = vpop.xlane.xlu0 %3477
        %v3479 = vsel %vm636, %v3475, 0.0
        %3480 = vadd.xlane.f32.xlu0 %v3479
        %v3481 = vpop.xlane.xlu0 %3480
        %v3482 = vmul.f32 %v3478, %v646
        %v3483 = vmul.f32 %v3481, %v646
        %v3484 = vadd.f32 %v3482, 1e-05
        %v3485 = vadd.f32 %v3483, 1e-05
        %v3486 = vrsqrt.pop %v3484
        %v3487 = vmul.f32 %v3486, %v3484
        %v3488 = vmul.f32 %v3487, %v3486
        %v3489 = vmul.f32 0.5, %v3488
        %v3490 = vsub.f32 1.5, %v3489
        %v3491 = vmul.f32 %v3486, %v3490
        %vm3492 = vweird.f32 %v3484
        %vm3493 = vweird.f32 %v3486
        %vm3494 = vmor %vm3492, %vm3493
        %v3495 = vsel %vm3494, %v3486, %v3491
        %v3496 = vrsqrt.pop %v3485
        %v3497 = vmul.f32 %v3496, %v3485
        %v3498 = vmul.f32 %v3497, %v3496
        %v3499 = vmul.f32 0.5, %v3498
        %v3500 = vsub.f32 1.5, %v3499
        %v3501 = vmul.f32 %v3496, %v3500
        %vm3502 = vweird.f32 %v3485
        %vm3503 = vweird.f32 %v3496
        %vm3504 = vmor %vm3502, %vm3503
        %v3505 = vsel %vm3504, %v3496, %v3501
        %v3507 = vperm.slane %v3461, 0
        %v3509 = vmul.f32 %v3495, %v3507
        %v3510 = vmul.f32 %v3505, %v3507
        %v3511 = vmul.f32 %v3472, %v3509
        %v3512 = vmul.f32 %v3473, %v3510
        %v3514 = vperm.slane %v3463, 0
        %v3516 = vadd.f32 %v3511, %v3514
        %v3517 = vadd.f32 %v3512, %v3514
        %s3518 = scalar_lea.vmem %s12, 384
        %v3519 = vld [vmem:[%s3518] sm:$0xff]
        %v3520 = vld [vmem:[%s3518 + $0x8] sm:$0xff]
        %v3521 = vld [vmem:[%s3518 + $0x10] sm:$0xff]
        %v3522 = vld [vmem:[%s3518 + $0x18] sm:$0xff]
        %v3523 = vld [vmem:[%s3518 + $0x20] sm:$0xff]
        %v3524 = vld [vmem:[%s3518 + $0x28] sm:$0xff]
        %v3525 = vld [vmem:[%s3518 + $0x30] sm:$0xff]
        %v3526 = vld [vmem:[%s3518 + $0x38] sm:$0xff]
        %v3527 = vld [vmem:[%s3518 + $0x40] sm:$0xff]
        %v3528 = vld [vmem:[%s3518 + $0x48] sm:$0xff]
        %v3529 = vld [vmem:[%s3518 + $0x50] sm:$0xff]
        %v3530 = vld [vmem:[%s3518 + $0x58] sm:$0xff]
        %v3531 = vld [vmem:[%s3518 + $0x60] sm:$0xff]
        %v3532 = vld [vmem:[%s3518 + $0x68] sm:$0xff]
        %v3533 = vld [vmem:[%s3518 + $0x70] sm:$0xff]
        %v3534 = vld [vmem:[%s3518 + $0x78] sm:$0xff]
        %s3535 = scalar_lea.vmem %s13, 6
        %v3536 = vld [vmem:[%s3535] sm:$0x3]
        %v3538 = vperm.slane %v3536, 0
        %v3539 = vperm.slane %v3536, 1
        %v3543 = vsel %vm632, %v3516, 0
        %v3546 = vsel %vm632, %v3517, 0
        %3548 = vmatpush.msra.mxu0 0.0
        %3549 = vmatpush.msra.mxu0 0.0
        %3550 = vmatpush.msra.mxu0 0.0
        %3551 = vmatpush.msra.mxu0 0.0
        %3552 = vmatpush.msra.mxu0 0.0
        %3553 = vmatpush.msra.mxu0 0.0
        %3554 = vmatpush.msra.mxu0 0.0
        %3555 = vmatpush.msra.mxu0 0.0
        %3556 = vmatpush.msra.mxu0 %v3533
        %3557 = vmatpush.msra.mxu0 %v3531
        %3558 = vmatpush.msra.mxu0 %v3529
        %3559 = vmatpush.msra.mxu0 %v3527
        %3560 = vmatpush.msra.mxu0 %v3525
        %3561 = vmatpush.msra.mxu0 %v3523
        %3562 = vmatpush.msra.mxu0 %v3521
        %3563 = vmatpush.msra.mxu0 %v3519
        %3564 = vmatmul.f32.gmra.mxu0 %v3543
        %v3565 = vpop.f32.mrf.mxu0
        %v3566 = vadd.f32 %v3538, %v3565
        %3567 = vmatmul.f32.gmra.mxu0 %v3546
        %v3568 = vpop.f32.mrf.mxu0
        %v3569 = vadd.f32 %v3538, %v3568
        %3570 = vdwg.mxu0
        %3571 = vmatpush.msra.mxu0 0.0
        %3572 = vmatpush.msra.mxu0 0.0
        %3573 = vmatpush.msra.mxu0 0.0
        %3574 = vmatpush.msra.mxu0 0.0
        %3575 = vmatpush.msra.mxu0 0.0
        %3576 = vmatpush.msra.mxu0 0.0
        %3577 = vmatpush.msra.mxu0 0.0
        %3578 = vmatpush.msra.mxu0 0.0
        %3579 = vmatpush.msra.mxu0 %v3534
        %3580 = vmatpush.msra.mxu0 %v3532
        %3581 = vmatpush.msra.mxu0 %v3530
        %3582 = vmatpush.msra.mxu0 %v3528
        %3583 = vmatpush.msra.mxu0 %v3526
        %3584 = vmatpush.msra.mxu0 %v3524
        %3585 = vmatpush.msra.mxu0 %v3522
        %3586 = vmatpush.msra.mxu0 %v3520
        %3587 = vmatmul.f32.gmra.mxu0 %v3543
        %v3588 = vpop.f32.mrf.mxu0
        %v3589 = vadd.f32 %v3539, %v3588
        %3590 = vmatmul.f32.gmra.mxu0 %v3546
        %v3591 = vpop.f32.mrf.mxu0
        %v3592 = vadd.f32 %v3539, %v3591
        %3593 = vdwg.mxu0
        %v3594 = vsub.f32 0.0, %v3566
        %v3595 = vsub.f32 0.0, %v3589
        %v3596 = vsub.f32 0.0, %v3569
        %v3597 = vsub.f32 0.0, %v3592
        %v3598 = vxor.u32 %v3594, 2147483648
        %v3599 = vxor.u32 %v3595, 2147483648
        %v3600 = vxor.u32 %v3596, 2147483648
        %v3601 = vxor.u32 %v3597, 2147483648
        %v3602 = vmul.f32 %v3598, 1.442695
        %v3603 = vpow.pop %v3602
        %v3604 = vmul.f32 %v3599, 1.442695
        %v3605 = vpow.pop %v3604
        %v3606 = vmul.f32 %v3600, 1.442695
        %v3607 = vpow.pop %v3606
        %v3608 = vmul.f32 %v3601, 1.442695
        %v3609 = vpow.pop %v3608
        %v3610 = vadd.f32 %v3603, 1.0
        %v3611 = vadd.f32 %v3605, 1.0
        %v3612 = vadd.f32 %v3607, 1.0
        %v3613 = vadd.f32 %v3609, 1.0
        %v3614 = vrcp.pop %v3610
        %v3615 = vmul.f32 %v3610, %v3614
        %v3616 = vsub.f32 1.0, %v3615
        %v3617 = vmul.f32 %v3614, %v3616
        %v3618 = vadd.f32 %v3614, %v3617
        %vm3619 = vweird.f32 %v3610
        %vm3620 = vweird.f32 %v3614
        %vm3621 = vmor %vm3619, %vm3620
        %v3622 = vsel %vm3621, %v3614, %v3618
        %v3623 = vand.u32 2147483647, %v3610
        %vm3624 = vcmp.eq.f32.partialorder %v3623, 8.507059e+37
        %v3625 = vand.u32 %v3610, 2147483648
        %v3626 = vor.u32 1.1754944e-38, %v3625
        %v3627 = vsel %vm3624, %v3626, %v3622
        %v3628 = vmul.f32 1.0, %v3627
        %v3629 = vrcp.pop %v3611
        %v3630 = vmul.f32 %v3611, %v3629
        %v3631 = vsub.f32 1.0, %v3630
        %v3632 = vmul.f32 %v3629, %v3631
        %v3633 = vadd.f32 %v3629, %v3632
        %vm3634 = vweird.f32 %v3611
        %vm3635 = vweird.f32 %v3629
        %vm3636 = vmor %vm3634, %vm3635
        %v3637 = vsel %vm3636, %v3629, %v3633
        %v3638 = vand.u32 2147483647, %v3611
        %vm3639 = vcmp.eq.f32.partialorder %v3638, 8.507059e+37
        %v3640 = vand.u32 %v3611, 2147483648
        %v3641 = vor.u32 1.1754944e-38, %v3640
        %v3642 = vsel %vm3639, %v3641, %v3637
        %v3643 = vmul.f32 1.0, %v3642
        %v3644 = vrcp.pop %v3612
        %v3645 = vmul.f32 %v3612, %v3644
        %v3646 = vsub.f32 1.0, %v3645
        %v3647 = vmul.f32 %v3644, %v3646
        %v3648 = vadd.f32 %v3644, %v3647
        %vm3649 = vweird.f32 %v3612
        %vm3650 = vweird.f32 %v3644
        %vm3651 = vmor %vm3649, %vm3650
        %v3652 = vsel %vm3651, %v3644, %v3648
        %v3653 = vand.u32 2147483647, %v3612
        %vm3654 = vcmp.eq.f32.partialorder %v3653, 8.507059e+37
        %v3655 = vand.u32 %v3612, 2147483648
        %v3656 = vor.u32 1.1754944e-38, %v3655
        %v3657 = vsel %vm3654, %v3656, %v3652
        %v3658 = vmul.f32 1.0, %v3657
        %v3659 = vrcp.pop %v3613
        %v3660 = vmul.f32 %v3613, %v3659
        %v3661 = vsub.f32 1.0, %v3660
        %v3662 = vmul.f32 %v3659, %v3661
        %v3663 = vadd.f32 %v3659, %v3662
        %vm3664 = vweird.f32 %v3613
        %vm3665 = vweird.f32 %v3659
        %vm3666 = vmor %vm3664, %vm3665
        %v3667 = vsel %vm3666, %v3659, %v3663
        %v3668 = vand.u32 2147483647, %v3613
        %vm3669 = vcmp.eq.f32.partialorder %v3668, 8.507059e+37
        %v3670 = vand.u32 %v3613, 2147483648
        %v3671 = vor.u32 1.1754944e-38, %v3670
        %v3672 = vsel %vm3669, %v3671, %v3667
        %v3673 = vmul.f32 1.0, %v3672
        %v3674 = vmul.f32 %v3628, %v3628
        %v3675 = vmul.f32 %v3643, %v3643
        %v3676 = vmul.f32 %v3658, %v3658
        %v3677 = vmul.f32 %v3673, %v3673
        %v3678 = vsub.f32 1.0, %v3674
        %v3679 = vsub.f32 1.0, %v3675
        %v3680 = vsub.f32 1.0, %v3676
        %v3681 = vsub.f32 1.0, %v3677
        %v3682 = vmul.f32 %v3566, %v3678
        %v3683 = vmul.f32 %v3589, %v3679
        %v3684 = vmul.f32 %v3569, %v3680
        %v3685 = vmul.f32 %v3592, %v3681
        %v3686 = vadd.f32 %v3674, 1.0
        %v3687 = vadd.f32 %v3675, 1.0
        %v3688 = vadd.f32 %v3676, 1.0
        %v3689 = vadd.f32 %v3677, 1.0
        %v3690 = vrcp.pop %v3686
        %v3691 = vmul.f32 %v3686, %v3690
        %v3692 = vsub.f32 1.0, %v3691
        %v3693 = vmul.f32 %v3690, %v3692
        %v3694 = vadd.f32 %v3690, %v3693
        %vm3695 = vweird.f32 %v3686
        %vm3696 = vweird.f32 %v3690
        %vm3697 = vmor %vm3695, %vm3696
        %v3698 = vsel %vm3697, %v3690, %v3694
        %v3699 = vand.u32 2147483647, %v3686
        %vm3700 = vcmp.eq.f32.partialorder %v3699, 8.507059e+37
        %v3701 = vand.u32 %v3686, 2147483648
        %v3702 = vor.u32 1.1754944e-38, %v3701
        %v3703 = vsel %vm3700, %v3702, %v3698
        %v3704 = vmul.f32 %v3682, %v3703
        %v3705 = vrcp.pop %v3687
        %v3706 = vmul.f32 %v3687, %v3705
        %v3707 = vsub.f32 1.0, %v3706
        %v3708 = vmul.f32 %v3705, %v3707
        %v3709 = vadd.f32 %v3705, %v3708
        %vm3710 = vweird.f32 %v3687
        %vm3711 = vweird.f32 %v3705
        %vm3712 = vmor %vm3710, %vm3711
        %v3713 = vsel %vm3712, %v3705, %v3709
        %v3714 = vand.u32 2147483647, %v3687
        %vm3715 = vcmp.eq.f32.partialorder %v3714, 8.507059e+37
        %v3716 = vand.u32 %v3687, 2147483648
        %v3717 = vor.u32 1.1754944e-38, %v3716
        %v3718 = vsel %vm3715, %v3717, %v3713
        %v3719 = vmul.f32 %v3683, %v3718
        %v3720 = vrcp.pop %v3688
        %v3721 = vmul.f32 %v3688, %v3720
        %v3722 = vsub.f32 1.0, %v3721
        %v3723 = vmul.f32 %v3720, %v3722
        %v3724 = vadd.f32 %v3720, %v3723
        %vm3725 = vweird.f32 %v3688
        %vm3726 = vweird.f32 %v3720
        %vm3727 = vmor %vm3725, %vm3726
        %v3728 = vsel %vm3727, %v3720, %v3724
        %v3729 = vand.u32 2147483647, %v3688
        %vm3730 = vcmp.eq.f32.partialorder %v3729, 8.507059e+37
        %v3731 = vand.u32 %v3688, 2147483648
        %v3732 = vor.u32 1.1754944e-38, %v3731
        %v3733 = vsel %vm3730, %v3732, %v3728
        %v3734 = vmul.f32 %v3684, %v3733
        %v3735 = vrcp.pop %v3689
        %v3736 = vmul.f32 %v3689, %v3735
        %v3737 = vsub.f32 1.0, %v3736
        %v3738 = vmul.f32 %v3735, %v3737
        %v3739 = vadd.f32 %v3735, %v3738
        %vm3740 = vweird.f32 %v3689
        %vm3741 = vweird.f32 %v3735
        %vm3742 = vmor %vm3740, %vm3741
        %v3743 = vsel %vm3742, %v3735, %v3739
        %v3744 = vand.u32 2147483647, %v3689
        %vm3745 = vcmp.eq.f32.partialorder %v3744, 8.507059e+37
        %v3746 = vand.u32 %v3689, 2147483648
        %v3747 = vor.u32 1.1754944e-38, %v3746
        %v3748 = vsel %vm3745, %v3747, %v3743
        %v3749 = vmul.f32 %v3685, %v3748
        %s3750 = scalar_lea.vmem %s14, 768
        %v3751 = vld [vmem:[%s3750] sm:$0xff]
        %v3752 = vld [vmem:[%s3750 + $0x8] sm:$0xff]
        %v3753 = vld [vmem:[%s3750 + $0x10] sm:$0xff]
        %v3754 = vld [vmem:[%s3750 + $0x18] sm:$0xff]
        %v3755 = vld [vmem:[%s3750 + $0x20] sm:$0xff]
        %v3756 = vld [vmem:[%s3750 + $0x28] sm:$0xff]
        %v3757 = vld [vmem:[%s3750 + $0x30] sm:$0xff]
        %v3758 = vld [vmem:[%s3750 + $0x38] sm:$0xff]
        %v3759 = vld [vmem:[%s3750 + $0x40] sm:$0xff]
        %v3760 = vld [vmem:[%s3750 + $0x48] sm:$0xff]
        %v3761 = vld [vmem:[%s3750 + $0x50] sm:$0xff]
        %v3762 = vld [vmem:[%s3750 + $0x58] sm:$0xff]
        %v3763 = vld [vmem:[%s3750 + $0x60] sm:$0xff]
        %v3764 = vld [vmem:[%s3750 + $0x68] sm:$0xff]
        %v3765 = vld [vmem:[%s3750 + $0x70] sm:$0xff]
        %v3766 = vld [vmem:[%s3750 + $0x78] sm:$0xff]
        %v3767 = vld [vmem:[%s3750 + $0x80] sm:$0xff]
        %v3768 = vld [vmem:[%s3750 + $0x88] sm:$0xff]
        %v3769 = vld [vmem:[%s3750 + $0x90] sm:$0xff]
        %v3770 = vld [vmem:[%s3750 + $0x98] sm:$0xff]
        %v3771 = vld [vmem:[%s3750 + $0xa0] sm:$0xff]
        %v3772 = vld [vmem:[%s3750 + $0xa8] sm:$0xff]
        %v3773 = vld [vmem:[%s3750 + $0xb0] sm:$0xff]
        %v3774 = vld [vmem:[%s3750 + $0xb8] sm:$0xff]
        %v3775 = vld [vmem:[%s3750 + $0xc0] sm:$0xff]
        %v3776 = vld [vmem:[%s3750 + $0xc8] sm:$0xff]
        %v3777 = vld [vmem:[%s3750 + $0xd0] sm:$0xff]
        %v3778 = vld [vmem:[%s3750 + $0xd8] sm:$0xff]
        %v3779 = vld [vmem:[%s3750 + $0xe0] sm:$0xff]
        %v3780 = vld [vmem:[%s3750 + $0xe8] sm:$0xff]
        %v3781 = vld [vmem:[%s3750 + $0xf0] sm:$0xff]
        %v3782 = vld [vmem:[%s3750 + $0xf8] sm:$0xff]
        %3783 = vmatpush.msra.mxu0 %v3766
        %3784 = vmatpush.msra.mxu0 %v3765
        %3785 = vmatpush.msra.mxu0 %v3764
        %3786 = vmatpush.msra.mxu0 %v3763
        %3787 = vmatpush.msra.mxu0 %v3762
        %3788 = vmatpush.msra.mxu0 %v3761
        %3789 = vmatpush.msra.mxu0 %v3760
        %3790 = vmatpush.msra.mxu0 %v3759
        %3791 = vmatpush.msra.mxu0 %v3758
        %3792 = vmatpush.msra.mxu0 %v3757
        %3793 = vmatpush.msra.mxu0 %v3756
        %3794 = vmatpush.msra.mxu0 %v3755
        %3795 = vmatpush.msra.mxu0 %v3754
        %3796 = vmatpush.msra.mxu0 %v3753
        %3797 = vmatpush.msra.mxu0 %v3752
        %3798 = vmatpush.msra.mxu0 %v3751
        %3799 = vmatmul.f32.gmra.mxu0 %v3704
        %v3800 = vpop.f32.mrf.mxu0
        %v3801 = vadd.f32 0.0, %v3800
        %3802 = vmatmul.f32.gmra.mxu0 %v3734
        %v3803 = vpop.f32.mrf.mxu0
        %v3804 = vadd.f32 0.0, %v3803
        %3805 = vdwg.mxu0
        %3806 = vmatpush.msra.mxu0 %v3782
        %3807 = vmatpush.msra.mxu0 %v3781
        %3808 = vmatpush.msra.mxu0 %v3780
        %3809 = vmatpush.msra.mxu0 %v3779
        %3810 = vmatpush.msra.mxu0 %v3778
        %3811 = vmatpush.msra.mxu0 %v3777
        %3812 = vmatpush.msra.mxu0 %v3776
        %3813 = vmatpush.msra.mxu0 %v3775
        %3814 = vmatpush.msra.mxu0 %v3774
        %3815 = vmatpush.msra.mxu0 %v3773
        %3816 = vmatpush.msra.mxu0 %v3772
        %3817 = vmatpush.msra.mxu0 %v3771
        %3818 = vmatpush.msra.mxu0 %v3770
        %3819 = vmatpush.msra.mxu0 %v3769
        %3820 = vmatpush.msra.mxu0 %v3768
        %3821 = vmatpush.msra.mxu0 %v3767
        %3822 = vmatmul.f32.gmra.mxu0 %v3719
        %v3823 = vpop.f32.mrf.mxu0
        %v3824 = vadd.f32 %v3801, %v3823
        %3825 = vmatmul.f32.gmra.mxu0 %v3749
        %v3826 = vpop.f32.mrf.mxu0
        %v3827 = vadd.f32 %v3804, %v3826
        %3828 = vdwg.mxu0
        %v3829 = vadd.f32 %v3458, %v3824
        %v3830 = vadd.f32 %v3459, %v3827
        %s3831 = scalar_lea.vmem %s15, 3
        %v3832 = vld [vmem:[%s3831] sm:$0x1]
        %v3834 = vperm.slane %v3832, 0
        %v3836 = vadd.f32 %v3829, %v3834
        %v3837 = vadd.f32 %v3830, %v3834
        %v3838 = vld [vmem:[%s16] sm:$0x1]
        %v3839 = vld [vmem:[%s17] sm:$0x1]
        %v3840 = vsel %vm632, %v3836, 0.0
        %3841 = vadd.xlane.f32.xlu0 %v3840
        %v3842 = vpop.xlane.xlu0 %3841
        %v3843 = vsel %vm636, %v3837, 0.0
        %3844 = vadd.xlane.f32.xlu0 %v3843
        %v3845 = vpop.xlane.xlu0 %3844
        %v3846 = vmul.f32 %v3842, %v646
        %v3847 = vmul.f32 %v3845, %v646
        %v3848 = vsub.f32 %v3836, %v3846
        %v3849 = vsub.f32 %v3837, %v3847
        %v3850 = vmul.f32 %v3848, %v3848
        %v3851 = vmul.f32 %v3849, %v3849
        %v3852 = vsel %vm632, %v3850, 0.0
        %3853 = vadd.xlane.f32.xlu0 %v3852
        %v3854 = vpop.xlane.xlu0 %3853
        %v3855 = vsel %vm636, %v3851, 0.0
        %3856 = vadd.xlane.f32.xlu0 %v3855
        %v3857 = vpop.xlane.xlu0 %3856
        %v3858 = vmul.f32 %v3854, %v646
        %v3859 = vmul.f32 %v3857, %v646
        %v3860 = vadd.f32 %v3858, 1e-05
        %v3861 = vadd.f32 %v3859, 1e-05
        %v3862 = vrsqrt.pop %v3860
        %v3863 = vmul.f32 %v3862, %v3860
        %v3864 = vmul.f32 %v3863, %v3862
        %v3865 = vmul.f32 0.5, %v3864
        %v3866 = vsub.f32 1.5, %v3865
        %v3867 = vmul.f32 %v3862, %v3866
        %vm3868 = vweird.f32 %v3860
        %vm3869 = vweird.f32 %v3862
        %vm3870 = vmor %vm3868, %vm3869
        %v3871 = vsel %vm3870, %v3862, %v3867
        %v3872 = vrsqrt.pop %v3861
        %v3873 = vmul.f32 %v3872, %v3861
        %v3874 = vmul.f32 %v3873, %v3872
        %v3875 = vmul.f32 0.5, %v3874
        %v3876 = vsub.f32 1.5, %v3875
        %v3877 = vmul.f32 %v3872, %v3876
        %vm3878 = vweird.f32 %v3861
        %vm3879 = vweird.f32 %v3872
        %vm3880 = vmor %vm3878, %vm3879
        %v3881 = vsel %vm3880, %v3872, %v3877
        %v3883 = vperm.slane %v3838, 0
        %v3885 = vmul.f32 %v3871, %v3883
        %v3886 = vmul.f32 %v3881, %v3883
        %v3887 = vmul.f32 %v3848, %v3885
        %v3888 = vmul.f32 %v3849, %v3886
        %v3890 = vperm.slane %v3839, 0
        %v3892 = vadd.f32 %v3887, %v3890
        %v3893 = vadd.f32 %v3888, %v3890
        %v3894 = vld [vmem:[%s18] sm:$0xff]
        %v3895 = vld [vmem:[%s18 + $0x8] sm:$0xff]
        %v3896 = vld [vmem:[%s18 + $0x10] sm:$0xff]
        %v3897 = vld [vmem:[%s18 + $0x18] sm:$0xff]
        %v3898 = vld [vmem:[%s18 + $0x20] sm:$0xff]
        %v3899 = vld [vmem:[%s18 + $0x28] sm:$0xff]
        %v3900 = vld [vmem:[%s18 + $0x30] sm:$0xff]
        %v3901 = vld [vmem:[%s18 + $0x38] sm:$0xff]
        %v3902 = vld [vmem:[%s19] sm:$0x1]
        %v3904 = vperm.slane %v3902, 0
        %vm3908 = vcmask 1044480
        %v3909 = vrot.slane %v3892, 3
        %v3910 = vrot.slane %v3893, 3
        %v3911 = vsel %vm3908, %v3909, %v3910
        %v3912 = vsel %vm632, %v3911, 0
        %3914 = vmatpush.msra.mxu0 0.0
        %3915 = vmatpush.msra.mxu0 0.0
        %3916 = vmatpush.msra.mxu0 0.0
        %3917 = vmatpush.msra.mxu0 0.0
        %3918 = vmatpush.msra.mxu0 0.0
        %3919 = vmatpush.msra.mxu0 0.0
        %3920 = vmatpush.msra.mxu0 0.0
        %3921 = vmatpush.msra.mxu0 0.0
        %3922 = vmatpush.msra.mxu0 %v3901
        %3923 = vmatpush.msra.mxu0 %v3900
        %3924 = vmatpush.msra.mxu0 %v3899
        %3925 = vmatpush.msra.mxu0 %v3898
        %3926 = vmatpush.msra.mxu0 %v3897
        %3927 = vmatpush.msra.mxu0 %v3896
        %3928 = vmatpush.msra.mxu0 %v3895
        %3929 = vmatpush.msra.mxu0 %v3894
        %3930 = vmatmul.f32.gmra.mxu0 %v3912
        %v3931 = vpop.f32.mrf.mxu0
        %v3932 = vadd.f32 %v3904, %v3931
        %3933 = vdwg.mxu0
        %3934 = vst [vmem:[%s622] sm:$0xff] %v3932
        %s3935 = sand.u32 %s467, 1
        %s3936 = scalar_lea.sflag [#allocation3], %s3935
        %s3937 = sand.u32 %s467, 1
        %s3938 = smul.addr %s3937, 8
        %s3939 = scalar_lea.vmem [#allocation2], %s3938
        // Predicated region
        $region101: #{gpt2_backbone_forward.1} parent=99 // pred_check
          %p3940 = pneg %p477
        $region102: #{gpt2_backbone_forward.1} parent=99 // pred_check_branch
          %3942 = sbr.rel (%p3940) target = $region104
        $region103: #{gpt2_backbone_forward.1} parent=99 // pred_region
          %3944 = vsyncadd %s3936, 0
          %s3945 = smul.addr %s34, 8
          %s3946 = scalar_lea.hbm %s20, %s3945
          %s3948 = sshll.u32 %s3939, 4
          %s3949 = int_to_ptr.vmem [resolvable:$true] %s3948
          %s3950 = sshll.u32 %s3946, 4
          %s3951 = int_to_ptr.hbm [resolvable:$true] %s3950
          %3953 = dma.vmem_to_hbm [thread:$0]  %s3949, 128, %s3951, %s3936
        $region104: #{gpt2_backbone_forward.1} parent=99 // pred_fallthru
          _
      $region100: #{gpt2_backbone_forward.1} parent=5 // pred_fallthru
        _
      %p3954 = scmp.le.s32.totalorder 2, %s29
      // Predicated region
      $region105: #{gpt2_backbone_forward.1} parent=5 // pred_check
        %p3955 = pneg %p3954
      $region106: #{gpt2_backbone_forward.1} parent=5 // pred_check_branch
        %3957 = sbr.rel (%p3955) target = $region108
      $region107: #{gpt2_backbone_forward.1} parent=5 // pred_region
        %s3958 = ssub.s32 %s29, 2
        // Predicated region
        $region109: #{gpt2_backbone_forward.1} parent=107 // pred_check
          %p3959 = pneg %p483
        $region110: #{gpt2_backbone_forward.1} parent=107 // pred_check_branch
          %3961 = sbr.rel (%p3959) target = $region112
        $region111: #{gpt2_backbone_forward.1} parent=107 // pred_region
          %s3962 = sand.u32 %s468, 1
          %s3963 = scalar_lea.sflag [#allocation3], %s3962
          %s3964 = sand.u32 %s468, 1
          %s3965 = smul.addr %s3964, 8
          %s3966 = scalar_lea.vmem [#allocation2], %s3965
          %3968 = dma.done %s3963, 128
        $region112: #{gpt2_backbone_forward.1} parent=107 // pred_fallthru
          _
      $region108: #{gpt2_backbone_forward.1} parent=5 // pred_fallthru
        _
    $region6: #{gpt2_backbone_forward.1} parent=1 // loop_footer
      %s33 = sadd.s32 1, %s29
    $region7: #{gpt2_backbone_forward.1} parent=1 // loop_footer_branch
      %28 = sbr.rel target = $region3
    $region8: #{gpt2_backbone_forward.1} parent=1 // loop_exit
      _
    %3969 = vsyncpa [#allocation3], 1
    %s3970 = scalar_lea.sflag [#allocation3], 1
    %3971 = vsyncpa %s3970, 1

</llo_original>
